<compile_context>
chip_gen: v5e
topology: v5e:2x2
jax: 0.10.0
libtpu: 0.0.40
codegen_flags: <defaults>
</compile_context>

<pallas_src>
import functools

import jax
import jax.numpy as jnp
from jax.experimental import pallas as pl
from jax.experimental.pallas import tpu as pltpu

LAYER_SIZES = (128, 64)          # `layer_sizes` ctor argument for ModelIsp
N_FORM = 10                      # formulation features
N_EMS = 65                       # ems features
N_IN_COLS = N_FORM + N_EMS + 1   # 76 columns; last column is dropped (X[:,10:-1])
BRANCH_W = 128                   # first-layer width of each branch


def _round_up(x, m):
    return ((x + m - 1) // m) * m


def _full_spec(shape):
    zeros = (0,) * len(shape)
    return pl.BlockSpec(shape, lambda i, _z=zeros: _z)


def _pick_tile_b(B, tile_b):
    """Static tile-size heuristic: big tiles, but >=2 grid steps for v7x's 2 TCs."""
    tile_b = max(128, min(tile_b, _round_up(B, 128)))
    if B > 256 and pl.cdiv(B, tile_b) < 2:
        tile_b = _round_up(pl.cdiv(B, 2), 128)
    return tile_b


# ---------------------------------------------------------------------------
# kernel
# ---------------------------------------------------------------------------
def model_isp_all_kernel(
    x_ref,
    w1, b1,                              # fused first layer [76,256] (zero-embedded)
    w2f, b2f, w3f, b3f,                  # Features_Formulation layers 2,3
    w2e, b2e, w3e, b3e,                  # Features_EMS layers 2,3
    wi1f, wi1e, bi1,                     # ModelIsp layer 1, concat-free split of wi1
    wi2, bi2,                            # ModelIsp layer 2 (padded to 128 lanes)
    wi3t, bi3,                           # final layer, transposed/padded to [8,128]
    out_ref,
    *, compute_dtype,
):
    cd = compute_dtype
    x = x_ref[...].astype(cd)                                      # [TB, 76]

    def linear(a, w_ref, b_ref):
        y = jnp.dot(a, w_ref[...], preferred_element_type=jnp.float32) + b_ref[...]
        return jnp.maximum(y, 0.0).astype(cd)

    # fused first layer of BOTH branches: x @ [W1F | W1E]  (rows outside each
    # branch's columns are zero-embedded, so this equals the two sliced matmuls)
    y1 = linear(x, w1, b1)                                         # [TB, 256]
    f = y1[:, 0:BRANCH_W]                                          # lane-aligned slice
    e = y1[:, BRANCH_W:2 * BRANCH_W]

    # Features_Formulation branch
    f = linear(f, w2f, b2f)                                        # [TB, 256]
    f = linear(f, w3f, b3f)                                        # [TB, 256]
    # Features_EMS branch
    e = linear(e, w2e, b2e)                                        # [TB, 256]
    e = linear(e, w3e, b3e)                                        # [TB, 256]

    # concat-free first ModelIsp layer: cat(f, e) @ wi1 == f @ wi1[:256] + e @ wi1[256:]
    h = jnp.dot(f, wi1f[...], preferred_element_type=jnp.float32)
    h = h + jnp.dot(e, wi1e[...], preferred_element_type=jnp.float32)
    h = jnp.maximum(h + bi1[...], 0.0).astype(cd)                  # [TB, L0]

    # Dropout(p=0.3) is identity in eval mode
    h = linear(h, wi2, bi2)                                        # [TB, 128] (lanes >=64 are 0)

    # final Linear(64,1) as wi3ᵀ @ hᵀ (A·Bᵀ dot_general) -> lane-dense [1, TB] output
    yt = jax.lax.dot_general(wi3t[...], h, (((1,), (1,)), ((), ())),
                             preferred_element_type=jnp.float32)   # [8, TB], row 0 real
    out_ref[...] = yt[0:1, :] + bi3[...]                           # [1, TB] float32


# ---------------------------------------------------------------------------
# one-time parameter preprocessing (outside the jitted forward)
# ---------------------------------------------------------------------------
def prepare_params(params, compute_dtype=jnp.bfloat16):
    (w1f, b1f, w2f, b2f, w3f, b3f,
     w1e, b1e, w2e, b2e, w3e, b3e,
     wi1, bi1, wi2, bi2, wi3, bi3) = params
    cd = compute_dtype
    L0 = wi1.shape[1]
    L1 = wi2.shape[1]
    L1P = _round_up(L1, 128)

    # fused, zero-embedded first layer: columns [0:128] formulation, [128:256] ems
    W1 = jnp.zeros((N_IN_COLS, 2 * BRANCH_W), cd)
    W1 = W1.at[0:N_FORM, 0:BRANCH_W].set(w1f.astype(cd))
    W1 = W1.at[N_FORM:N_FORM + N_EMS, BRANCH_W:2 * BRANCH_W].set(w1e.astype(cd))
    B1 = jnp.concatenate([b1f, b1e], axis=1).astype(jnp.float32)          # [1, 256]

    # split wi1 so the kernel never concatenates along the lane axis
    wi1f = wi1[:256].astype(cd)
    wi1e = wi1[256:].astype(cd)

    # pad L1 (64) to 128 lanes -> lane-dense intermediate, negligible extra MACs
    wi2p = jnp.zeros((L0, L1P), cd).at[:, :L1].set(wi2.astype(cd))
    bi2p = jnp.zeros((1, L1P), jnp.float32).at[:, :L1].set(bi2.astype(jnp.float32))

    # final layer transposed into an 8-row weight (row 0 real) for the A·Bᵀ dot
    wi3t8 = jnp.zeros((8, L1P), cd).at[0, :L1].set(wi3[:, 0].astype(cd))
    bi3s = bi3.reshape(1, 1).astype(jnp.float32)

    return (
        W1, B1,
        w2f.astype(cd), b2f.astype(jnp.float32), w3f.astype(cd), b3f.astype(jnp.float32),
        w2e.astype(cd), b2e.astype(jnp.float32), w3e.astype(cd), b3e.astype(jnp.float32),
        wi1f, wi1e, bi1.astype(jnp.float32),
        wi2p, bi2p,
        wi3t8, bi3s,
    )


# ---------------------------------------------------------------------------
# jitted forward
# ---------------------------------------------------------------------------
@functools.partial(jax.jit, static_argnames=("tile_b",))
def model_isp_all(x, kernel_params, tile_b=1024):
    """x: [B, 76] float32, kernel_params from prepare_params. Returns [B] float32."""
    B = x.shape[0]
    tb = _pick_tile_b(B, tile_b)
    num_tiles = pl.cdiv(B, tb)          # last tile may be partial (rows discarded)
    cd = kernel_params[0].dtype

    in_specs = [pl.BlockSpec((tb, N_IN_COLS), lambda i: (i, 0))]
    in_specs += [_full_spec(p.shape) for p in kernel_params]

    out = pl.pallas_call(
        functools.partial(model_isp_all_kernel, compute_dtype=cd),
        out_shape=jax.ShapeDtypeStruct((1, num_tiles * tb), jnp.float32),
        grid_spec=pltpu.PrefetchScalarGridSpec(
            num_scalar_prefetch=0,
            grid=(num_tiles,),
            in_specs=in_specs,
            out_specs=pl.BlockSpec((1, tb), lambda i: (0, i)),
        ),
        compiler_params=pltpu.CompilerParams(
            dimension_semantics=("parallel",)),
    )(x, *kernel_params)

    return out[0, :B]                   # lane-dense row -> contiguous slice


# ---------------------------------------------------------------------------
# deterministic parameter init (PyTorch default Linear init: U(-1/sqrt(fan_in)))
# ---------------------------------------------------------------------------
def _init_linear(key, fan_in, fan_out):
    kw, kb = jax.random.split(key)
    bound = 1.0 / float(fan_in) ** 0.5
    w = jax.random.uniform(kw, (fan_in, fan_out), jnp.float32, -bound, bound)
    b = jax.random.uniform(kb, (1, fan_out), jnp.float32, -bound, bound)
    return w, b


def make_params(seed=0):
    dims = [
        (N_FORM, 128), (128, 256), (256, 256),          # Features_Formulation
        (N_EMS, 128), (128, 256), (256, 256),           # Features_EMS
        (512, LAYER_SIZES[0]),                          # ModelIsp
        (LAYER_SIZES[0], LAYER_SIZES[1]),
        (LAYER_SIZES[1], 1),
    ]
    keys = jax.random.split(jax.random.PRNGKey(seed), len(dims))
    params = []
    for k, (fi, fo) in zip(keys, dims):
        w, b = _init_linear(k, fi, fo)
        params += [w, b]
    return tuple(params)


def reference_forward(x, params, compute_dtype=jnp.float32):
    """Pure-JAX reference of the same forward pass (same dtype policy as the kernel)."""
    (w1f, b1f, w2f, b2f, w3f, b3f,
     w1e, b1e, w2e, b2e, w3e, b3e,
     wi1, bi1, wi2, bi2, wi3, bi3) = params
    cd = compute_dtype

    def lin(a, w, b, relu=True):
        y = jnp.dot(a.astype(cd), w.astype(cd),
                    preferred_element_type=jnp.float32) + b
        return jnp.maximum(y, 0.0) if relu else y

    xf, xe = x[:, 0:N_FORM], x[:, N_FORM:N_IN_COLS - 1]
    f = lin(lin(lin(xf, w1f, b1f), w2f, b2f), w3f, b3f)
    e = lin(lin(lin(xe, w1e, b1e), w2e, b2e), w3e, b3e)
    h = jnp.concatenate([f, e], axis=1)
    h = lin(h, wi1, bi1)
    h = lin(h, wi2, bi2)
    y = lin(h, wi3, bi3, relu=False)
    return y[:, 0]


if __name__ == "__main__":
    B = 300                      # deliberately NOT a multiple of the tile (partial-tile path)
    key = jax.random.PRNGKey(0)
    x = jax.random.normal(key, (B, N_IN_COLS), jnp.float32)

    params = make_params(seed=0)

    # default path: bf16 MXU operands, f32 accumulation / bias / ReLU tail
    kp_bf16 = prepare_params(params)                       # compute_dtype=bf16 default
    out = jax.block_until_ready(model_isp_all(x, kp_bf16))
    ref_bf16 = reference_forward(x, params, compute_dtype=jnp.bfloat16)
    assert out.shape == (B,)
    assert jnp.allclose(out, ref_bf16, atol=2e-2, rtol=2e-2), \
        float(jnp.max(jnp.abs(out - ref_bf16)))

    # f32 path (exact PyTorch semantics), also exercises a different tile size
    kp_f32 = prepare_params(params, compute_dtype=jnp.float32)
    out_f32 = jax.block_until_ready(model_isp_all(x, kp_f32, tile_b=256))
    ref_f32 = reference_forward(x, params, compute_dtype=jnp.float32)
    assert jnp.allclose(out_f32, ref_f32, atol=1e-3, rtol=1e-3), \
        float(jnp.max(jnp.abs(out_f32 - ref_f32)))

    print("KERNEL_OK")
</pallas_src>

<mosaic_0001>
module attributes {stable_mosaic.version = 11 : i64} {
  func.func @model_isp_all_kernel(%arg0: i32, %arg1: memref<256x76xf32, #tpu.memory_space<vmem>>, %arg2: memref<76x256xbf16, #tpu.memory_space<vmem>>, %arg3: memref<1x256xf32, #tpu.memory_space<vmem>>, %arg4: memref<128x256xbf16, #tpu.memory_space<vmem>>, %arg5: memref<1x256xf32, #tpu.memory_space<vmem>>, %arg6: memref<256x256xbf16, #tpu.memory_space<vmem>>, %arg7: memref<1x256xf32, #tpu.memory_space<vmem>>, %arg8: memref<128x256xbf16, #tpu.memory_space<vmem>>, %arg9: memref<1x256xf32, #tpu.memory_space<vmem>>, %arg10: memref<256x256xbf16, #tpu.memory_space<vmem>>, %arg11: memref<1x256xf32, #tpu.memory_space<vmem>>, %arg12: memref<256x128xbf16, #tpu.memory_space<vmem>>, %arg13: memref<256x128xbf16, #tpu.memory_space<vmem>>, %arg14: memref<1x128xf32, #tpu.memory_space<vmem>>, %arg15: memref<128x128xbf16, #tpu.memory_space<vmem>>, %arg16: memref<1x128xf32, #tpu.memory_space<vmem>>, %arg17: memref<8x128xbf16, #tpu.memory_space<vmem>>, %arg18: memref<1x1xf32, #tpu.memory_space<vmem>>, %arg19: memref<1x256xf32, #tpu.memory_space<vmem>>) attributes {dimension_semantics = [#tpu.dimension_semantics<parallel>], iteration_bounds = array<i64: 2>, scalar_prefetch = 0 : i64, scratch_operands = 0 : i64, tpu.core_type = #tpu.core_type<tc>, window_params = [{transform_indices = @transform_0, window_bounds = array<i64: 256, 76>}, {pipeline_mode = #tpu.pipeline_mode<synchronous>, transform_indices = @transform_1, window_bounds = array<i64: 76, 256>}, {pipeline_mode = #tpu.pipeline_mode<synchronous>, transform_indices = @transform_2, window_bounds = array<i64: 1, 256>}, {pipeline_mode = #tpu.pipeline_mode<synchronous>, transform_indices = @transform_3, window_bounds = array<i64: 128, 256>}, {pipeline_mode = #tpu.pipeline_mode<synchronous>, transform_indices = @transform_4, window_bounds = array<i64: 1, 256>}, {pipeline_mode = #tpu.pipeline_mode<synchronous>, transform_indices = @transform_5, window_bounds = array<i64: 256, 256>}, {pipeline_mode = #tpu.pipeline_mode<synchronous>, transform_indices = @transform_6, window_bounds = array<i64: 1, 256>}, {pipeline_mode = #tpu.pipeline_mode<synchronous>, transform_indices = @transform_7, window_bounds = array<i64: 128, 256>}, {pipeline_mode = #tpu.pipeline_mode<synchronous>, transform_indices = @transform_8, window_bounds = array<i64: 1, 256>}, {pipeline_mode = #tpu.pipeline_mode<synchronous>, transform_indices = @transform_9, window_bounds = array<i64: 256, 256>}, {pipeline_mode = #tpu.pipeline_mode<synchronous>, transform_indices = @transform_10, window_bounds = array<i64: 1, 256>}, {pipeline_mode = #tpu.pipeline_mode<synchronous>, transform_indices = @transform_11, window_bounds = array<i64: 256, 128>}, {pipeline_mode = #tpu.pipeline_mode<synchronous>, transform_indices = @transform_12, window_bounds = array<i64: 256, 128>}, {pipeline_mode = #tpu.pipeline_mode<synchronous>, transform_indices = @transform_13, window_bounds = array<i64: 1, 128>}, {pipeline_mode = #tpu.pipeline_mode<synchronous>, transform_indices = @transform_14, window_bounds = array<i64: 128, 128>}, {pipeline_mode = #tpu.pipeline_mode<synchronous>, transform_indices = @transform_15, window_bounds = array<i64: 1, 128>}, {pipeline_mode = #tpu.pipeline_mode<synchronous>, transform_indices = @transform_16, window_bounds = array<i64: 8, 128>}, {pipeline_mode = #tpu.pipeline_mode<synchronous>, transform_indices = @transform_17, window_bounds = array<i64: 1, 1>}, {transform_indices = @transform_18, window_bounds = array<i64: 1, 256>}]} {
    %c0 = arith.constant 0 : index
    %c0_0 = arith.constant 0 : index
    %0 = vector.load %arg1[%c0, %c0_0] : memref<256x76xf32, #tpu.memory_space<vmem>>, vector<256x76xf32>
    %1 = arith.truncf %0 : vector<256x76xf32> to vector<256x76xbf16>
    %c0_1 = arith.constant 0 : index
    %c0_2 = arith.constant 0 : index
    %2 = vector.load %arg2[%c0_1, %c0_2] : memref<76x256xbf16, #tpu.memory_space<vmem>>, vector<76x256xbf16>
    %cst = arith.constant dense<0.000000e+00> : vector<256x256xf32>
    %3 = tpu.matmul %1, %2, %cst {dimension_numbers = #tpu.dot_dimension_numbers<[1], [0], [0], [1], [0, 0, 1, 1], [], []>} : vector<256x76xbf16>, vector<76x256xbf16>, vector<256x256xf32> -> vector<256x256xf32>
    %c0_3 = arith.constant 0 : index
    %c0_4 = arith.constant 0 : index
    %4 = vector.load %arg3[%c0_3, %c0_4] : memref<1x256xf32, #tpu.memory_space<vmem>>, vector<1x256xf32>
    %5 = vector.broadcast %4 : vector<1x256xf32> to vector<256x256xf32>
    %6 = arith.addf %3, %5 : vector<256x256xf32>
    %cst_5 = arith.constant 0.000000e+00 : f32
    %7 = vector.broadcast %cst_5 : f32 to vector<256x256xf32>
    %8 = arith.maximumf %6, %7 : vector<256x256xf32>
    %9 = arith.truncf %8 : vector<256x256xf32> to vector<256x256xbf16>
    %10 = vector.extract_strided_slice %9 {offsets = [0, 0], sizes = [256, 128], strides = [1, 1]} : vector<256x256xbf16> to vector<256x128xbf16>
    %11 = vector.extract_strided_slice %9 {offsets = [0, 128], sizes = [256, 128], strides = [1, 1]} : vector<256x256xbf16> to vector<256x128xbf16>
    %c0_6 = arith.constant 0 : index
    %c0_7 = arith.constant 0 : index
    %12 = vector.load %arg4[%c0_6, %c0_7] : memref<128x256xbf16, #tpu.memory_space<vmem>>, vector<128x256xbf16>
    %cst_8 = arith.constant dense<0.000000e+00> : vector<256x256xf32>
    %13 = tpu.matmul %10, %12, %cst_8 {dimension_numbers = #tpu.dot_dimension_numbers<[1], [0], [0], [1], [0, 0, 1, 1], [], []>} : vector<256x128xbf16>, vector<128x256xbf16>, vector<256x256xf32> -> vector<256x256xf32>
    %c0_9 = arith.constant 0 : index
    %c0_10 = arith.constant 0 : index
    %14 = vector.load %arg5[%c0_9, %c0_10] : memref<1x256xf32, #tpu.memory_space<vmem>>, vector<1x256xf32>
    %15 = vector.broadcast %14 : vector<1x256xf32> to vector<256x256xf32>
    %16 = arith.addf %13, %15 : vector<256x256xf32>
    %cst_11 = arith.constant 0.000000e+00 : f32
    %17 = vector.broadcast %cst_11 : f32 to vector<256x256xf32>
    %18 = arith.maximumf %16, %17 : vector<256x256xf32>
    %19 = arith.truncf %18 : vector<256x256xf32> to vector<256x256xbf16>
    %c0_12 = arith.constant 0 : index
    %c0_13 = arith.constant 0 : index
    %20 = vector.load %arg6[%c0_12, %c0_13] : memref<256x256xbf16, #tpu.memory_space<vmem>>, vector<256x256xbf16>
    %cst_14 = arith.constant dense<0.000000e+00> : vector<256x256xf32>
    %21 = tpu.matmul %19, %20, %cst_14 {dimension_numbers = #tpu.dot_dimension_numbers<[1], [0], [0], [1], [0, 0, 1, 1], [], []>} : vector<256x256xbf16>, vector<256x256xbf16>, vector<256x256xf32> -> vector<256x256xf32>
    %c0_15 = arith.constant 0 : index
    %c0_16 = arith.constant 0 : index
    %22 = vector.load %arg7[%c0_15, %c0_16] : memref<1x256xf32, #tpu.memory_space<vmem>>, vector<1x256xf32>
    %23 = vector.broadcast %22 : vector<1x256xf32> to vector<256x256xf32>
    %24 = arith.addf %21, %23 : vector<256x256xf32>
    %cst_17 = arith.constant 0.000000e+00 : f32
    %25 = vector.broadcast %cst_17 : f32 to vector<256x256xf32>
    %26 = arith.maximumf %24, %25 : vector<256x256xf32>
    %27 = arith.truncf %26 : vector<256x256xf32> to vector<256x256xbf16>
    %c0_18 = arith.constant 0 : index
    %c0_19 = arith.constant 0 : index
    %28 = vector.load %arg8[%c0_18, %c0_19] : memref<128x256xbf16, #tpu.memory_space<vmem>>, vector<128x256xbf16>
    %cst_20 = arith.constant dense<0.000000e+00> : vector<256x256xf32>
    %29 = tpu.matmul %11, %28, %cst_20 {dimension_numbers = #tpu.dot_dimension_numbers<[1], [0], [0], [1], [0, 0, 1, 1], [], []>} : vector<256x128xbf16>, vector<128x256xbf16>, vector<256x256xf32> -> vector<256x256xf32>
    %c0_21 = arith.constant 0 : index
    %c0_22 = arith.constant 0 : index
    %30 = vector.load %arg9[%c0_21, %c0_22] : memref<1x256xf32, #tpu.memory_space<vmem>>, vector<1x256xf32>
    %31 = vector.broadcast %30 : vector<1x256xf32> to vector<256x256xf32>
    %32 = arith.addf %29, %31 : vector<256x256xf32>
    %cst_23 = arith.constant 0.000000e+00 : f32
    %33 = vector.broadcast %cst_23 : f32 to vector<256x256xf32>
    %34 = arith.maximumf %32, %33 : vector<256x256xf32>
    %35 = arith.truncf %34 : vector<256x256xf32> to vector<256x256xbf16>
    %c0_24 = arith.constant 0 : index
    %c0_25 = arith.constant 0 : index
    %36 = vector.load %arg10[%c0_24, %c0_25] : memref<256x256xbf16, #tpu.memory_space<vmem>>, vector<256x256xbf16>
    %cst_26 = arith.constant dense<0.000000e+00> : vector<256x256xf32>
    %37 = tpu.matmul %35, %36, %cst_26 {dimension_numbers = #tpu.dot_dimension_numbers<[1], [0], [0], [1], [0, 0, 1, 1], [], []>} : vector<256x256xbf16>, vector<256x256xbf16>, vector<256x256xf32> -> vector<256x256xf32>
    %c0_27 = arith.constant 0 : index
    %c0_28 = arith.constant 0 : index
    %38 = vector.load %arg11[%c0_27, %c0_28] : memref<1x256xf32, #tpu.memory_space<vmem>>, vector<1x256xf32>
    %39 = vector.broadcast %38 : vector<1x256xf32> to vector<256x256xf32>
    %40 = arith.addf %37, %39 : vector<256x256xf32>
    %cst_29 = arith.constant 0.000000e+00 : f32
    %41 = vector.broadcast %cst_29 : f32 to vector<256x256xf32>
    %42 = arith.maximumf %40, %41 : vector<256x256xf32>
    %43 = arith.truncf %42 : vector<256x256xf32> to vector<256x256xbf16>
    %c0_30 = arith.constant 0 : index
    %c0_31 = arith.constant 0 : index
    %44 = vector.load %arg12[%c0_30, %c0_31] : memref<256x128xbf16, #tpu.memory_space<vmem>>, vector<256x128xbf16>
    %cst_32 = arith.constant dense<0.000000e+00> : vector<256x128xf32>
    %45 = tpu.matmul %27, %44, %cst_32 {dimension_numbers = #tpu.dot_dimension_numbers<[1], [0], [0], [1], [0, 0, 1, 1], [], []>} : vector<256x256xbf16>, vector<256x128xbf16>, vector<256x128xf32> -> vector<256x128xf32>
    %c0_33 = arith.constant 0 : index
    %c0_34 = arith.constant 0 : index
    %46 = vector.load %arg13[%c0_33, %c0_34] : memref<256x128xbf16, #tpu.memory_space<vmem>>, vector<256x128xbf16>
    %cst_35 = arith.constant dense<0.000000e+00> : vector<256x128xf32>
    %47 = tpu.matmul %43, %46, %cst_35 {dimension_numbers = #tpu.dot_dimension_numbers<[1], [0], [0], [1], [0, 0, 1, 1], [], []>} : vector<256x256xbf16>, vector<256x128xbf16>, vector<256x128xf32> -> vector<256x128xf32>
    %48 = arith.addf %45, %47 : vector<256x128xf32>
    %c0_36 = arith.constant 0 : index
    %c0_37 = arith.constant 0 : index
    %49 = vector.load %arg14[%c0_36, %c0_37] : memref<1x128xf32, #tpu.memory_space<vmem>>, vector<1x128xf32>
    %50 = vector.broadcast %49 : vector<1x128xf32> to vector<256x128xf32>
    %51 = arith.addf %48, %50 : vector<256x128xf32>
    %cst_38 = arith.constant 0.000000e+00 : f32
    %52 = vector.broadcast %cst_38 : f32 to vector<256x128xf32>
    %53 = arith.maximumf %51, %52 : vector<256x128xf32>
    %54 = arith.truncf %53 : vector<256x128xf32> to vector<256x128xbf16>
    %c0_39 = arith.constant 0 : index
    %c0_40 = arith.constant 0 : index
    %55 = vector.load %arg15[%c0_39, %c0_40] : memref<128x128xbf16, #tpu.memory_space<vmem>>, vector<128x128xbf16>
    %cst_41 = arith.constant dense<0.000000e+00> : vector<256x128xf32>
    %56 = tpu.matmul %54, %55, %cst_41 {dimension_numbers = #tpu.dot_dimension_numbers<[1], [0], [0], [1], [0, 0, 1, 1], [], []>} : vector<256x128xbf16>, vector<128x128xbf16>, vector<256x128xf32> -> vector<256x128xf32>
    %c0_42 = arith.constant 0 : index
    %c0_43 = arith.constant 0 : index
    %57 = vector.load %arg16[%c0_42, %c0_43] : memref<1x128xf32, #tpu.memory_space<vmem>>, vector<1x128xf32>
    %58 = vector.broadcast %57 : vector<1x128xf32> to vector<256x128xf32>
    %59 = arith.addf %56, %58 : vector<256x128xf32>
    %cst_44 = arith.constant 0.000000e+00 : f32
    %60 = vector.broadcast %cst_44 : f32 to vector<256x128xf32>
    %61 = arith.maximumf %59, %60 : vector<256x128xf32>
    %62 = arith.truncf %61 : vector<256x128xf32> to vector<256x128xbf16>
    %c0_45 = arith.constant 0 : index
    %c0_46 = arith.constant 0 : index
    %63 = vector.load %arg17[%c0_45, %c0_46] : memref<8x128xbf16, #tpu.memory_space<vmem>>, vector<8x128xbf16>
    %cst_47 = arith.constant dense<0.000000e+00> : vector<8x256xf32>
    %64 = tpu.matmul %63, %62, %cst_47 {dimension_numbers = #tpu.dot_dimension_numbers<[1], [1], [0], [0], [0, 0, 1, 0], [], []>} : vector<8x128xbf16>, vector<256x128xbf16>, vector<8x256xf32> -> vector<8x256xf32>
    %65 = vector.extract_strided_slice %64 {offsets = [0, 0], sizes = [1, 256], strides = [1, 1]} : vector<8x256xf32> to vector<1x256xf32>
    %c0_48 = arith.constant 0 : index
    %c0_49 = arith.constant 0 : index
    %66 = vector.load %arg18[%c0_48, %c0_49] : memref<1x1xf32, #tpu.memory_space<vmem>>, vector<1x1xf32>
    %67 = vector.broadcast %66 : vector<1x1xf32> to vector<1x256xf32>
    %68 = arith.addf %65, %67 : vector<1x256xf32>
    %c0_50 = arith.constant 0 : index
    %c0_51 = arith.constant 0 : index
    %69 = vector.load %arg19[%c0_50, %c0_51] : memref<1x256xf32, #tpu.memory_space<vmem>>, vector<1x256xf32>
    tpu.vector_store %arg19[%c0_50, %c0_51], %68 {strides = array<i32>} : memref<1x256xf32, #tpu.memory_space<vmem>>, vector<1x256xf32>,
    return
  }
  func.func @transform_0(%arg0: i32) -> (i32, i32) {
    %c0_i32 = arith.constant 0 : i32
    %c0_i32_0 = arith.constant 0 : i32
    return %arg0, %c0_i32 : i32, i32
  }
  func.func @transform_1(%arg0: i32) -> (i32, i32) {
    %c0_i32 = arith.constant 0 : i32
    %c0_i32_0 = arith.constant 0 : i32
    %c0_i32_1 = arith.constant 0 : i32
    return %c0_i32, %c0_i32_0 : i32, i32
  }
  func.func @transform_2(%arg0: i32) -> (i32, i32) {
    %c0_i32 = arith.constant 0 : i32
    %c0_i32_0 = arith.constant 0 : i32
    %c0_i32_1 = arith.constant 0 : i32
    return %c0_i32, %c0_i32_0 : i32, i32
  }
  func.func @transform_3(%arg0: i32) -> (i32, i32) {
    %c0_i32 = arith.constant 0 : i32
    %c0_i32_0 = arith.constant 0 : i32
    %c0_i32_1 = arith.constant 0 : i32
    return %c0_i32, %c0_i32_0 : i32, i32
  }
  func.func @transform_4(%arg0: i32) -> (i32, i32) {
    %c0_i32 = arith.constant 0 : i32
    %c0_i32_0 = arith.constant 0 : i32
    %c0_i32_1 = arith.constant 0 : i32
    return %c0_i32, %c0_i32_0 : i32, i32
  }
  func.func @transform_5(%arg0: i32) -> (i32, i32) {
    %c0_i32 = arith.constant 0 : i32
    %c0_i32_0 = arith.constant 0 : i32
    %c0_i32_1 = arith.constant 0 : i32
    return %c0_i32, %c0_i32_0 : i32, i32
  }
  func.func @transform_6(%arg0: i32) -> (i32, i32) {
    %c0_i32 = arith.constant 0 : i32
    %c0_i32_0 = arith.constant 0 : i32
    %c0_i32_1 = arith.constant 0 : i32
    return %c0_i32, %c0_i32_0 : i32, i32
  }
  func.func @transform_7(%arg0: i32) -> (i32, i32) {
    %c0_i32 = arith.constant 0 : i32
    %c0_i32_0 = arith.constant 0 : i32
    %c0_i32_1 = arith.constant 0 : i32
    return %c0_i32, %c0_i32_0 : i32, i32
  }
  func.func @transform_8(%arg0: i32) -> (i32, i32) {
    %c0_i32 = arith.constant 0 : i32
    %c0_i32_0 = arith.constant 0 : i32
    %c0_i32_1 = arith.constant 0 : i32
    return %c0_i32, %c0_i32_0 : i32, i32
  }
  func.func @transform_9(%arg0: i32) -> (i32, i32) {
    %c0_i32 = arith.constant 0 : i32
    %c0_i32_0 = arith.constant 0 : i32
    %c0_i32_1 = arith.constant 0 : i32
    return %c0_i32, %c0_i32_0 : i32, i32
  }
  func.func @transform_10(%arg0: i32) -> (i32, i32) {
    %c0_i32 = arith.constant 0 : i32
    %c0_i32_0 = arith.constant 0 : i32
    %c0_i32_1 = arith.constant 0 : i32
    return %c0_i32, %c0_i32_0 : i32, i32
  }
  func.func @transform_11(%arg0: i32) -> (i32, i32) {
    %c0_i32 = arith.constant 0 : i32
    %c0_i32_0 = arith.constant 0 : i32
    %c0_i32_1 = arith.constant 0 : i32
    return %c0_i32, %c0_i32_0 : i32, i32
  }
  func.func @transform_12(%arg0: i32) -> (i32, i32) {
    %c0_i32 = arith.constant 0 : i32
    %c0_i32_0 = arith.constant 0 : i32
    %c0_i32_1 = arith.constant 0 : i32
    return %c0_i32, %c0_i32_0 : i32, i32
  }
  func.func @transform_13(%arg0: i32) -> (i32, i32) {
    %c0_i32 = arith.constant 0 : i32
    %c0_i32_0 = arith.constant 0 : i32
    %c0_i32_1 = arith.constant 0 : i32
    return %c0_i32, %c0_i32_0 : i32, i32
  }
  func.func @transform_14(%arg0: i32) -> (i32, i32) {
    %c0_i32 = arith.constant 0 : i32
    %c0_i32_0 = arith.constant 0 : i32
    %c0_i32_1 = arith.constant 0 : i32
    return %c0_i32, %c0_i32_0 : i32, i32
  }
  func.func @transform_15(%arg0: i32) -> (i32, i32) {
    %c0_i32 = arith.constant 0 : i32
    %c0_i32_0 = arith.constant 0 : i32
    %c0_i32_1 = arith.constant 0 : i32
    return %c0_i32, %c0_i32_0 : i32, i32
  }
  func.func @transform_16(%arg0: i32) -> (i32, i32) {
    %c0_i32 = arith.constant 0 : i32
    %c0_i32_0 = arith.constant 0 : i32
    %c0_i32_1 = arith.constant 0 : i32
    return %c0_i32, %c0_i32_0 : i32, i32
  }
  func.func @transform_17(%arg0: i32) -> (i32, i32) {
    %c0_i32 = arith.constant 0 : i32
    %c0_i32_0 = arith.constant 0 : i32
    %c0_i32_1 = arith.constant 0 : i32
    return %c0_i32, %c0_i32_0 : i32, i32
  }
  func.func @transform_18(%arg0: i32) -> (i32, i32) {
    %c0_i32 = arith.constant 0 : i32
    %c0_i32_0 = arith.constant 0 : i32
    return %c0_i32, %arg0 : i32, i32
  }
}

</mosaic_0001>

<llo_original>
// kernel: model_isp_all.1
$region0: #{model_isp_all.1}
  #allocation0 [shape = 'u32[]', space=smem, size = 0x4, offset = 0x4, fixed_abs, tag = 'smem constant byte address 0x4 - core index']
  #allocation1 [shape = 'u32[72,128]{1,0:T(1,128)}', space=vmem, size = 0x9000, scoped, tag = 'internal scratch']
  #allocation2 [shape = 'f32[1,1]{1,0:T(1,128)S(1)}', space=vmem, size = 0x200, scoped, tag = 'scoped memory for model_isp_all.1']
  %s0 = inlined_call_operand.vmem [shape: f32[300,76], index: 0, kind: input, shape index: {}]
  %s1 = inlined_call_operand.hbm [shape: bf16[76,256], index: 1, kind: input, shape index: {}]
  %s2 = inlined_call_operand.vmem [shape: f32[1,256], index: 2, kind: input, shape index: {}]
  %s3 = inlined_call_operand.hbm [shape: bf16[128,256], index: 3, kind: input, shape index: {}]
  %s4 = inlined_call_operand.vmem [shape: f32[1,256], index: 4, kind: input, shape index: {}]
  %s5 = inlined_call_operand.vmem [shape: bf16[256,256], index: 5, kind: input, shape index: {}]
  %s6 = inlined_call_operand.vmem [shape: f32[1,256], index: 6, kind: input, shape index: {}]
  %s7 = inlined_call_operand.hbm [shape: bf16[128,256], index: 7, kind: input, shape index: {}]
  %s8 = inlined_call_operand.vmem [shape: f32[1,256], index: 8, kind: input, shape index: {}]
  %s9 = inlined_call_operand.vmem [shape: bf16[256,256], index: 9, kind: input, shape index: {}]
  %s10 = inlined_call_operand.vmem [shape: f32[1,256], index: 10, kind: input, shape index: {}]
  %s11 = inlined_call_operand.hbm [shape: bf16[256,128], index: 11, kind: input, shape index: {}]
  %s12 = inlined_call_operand.hbm [shape: bf16[256,128], index: 12, kind: input, shape index: {}]
  %s13 = inlined_call_operand.vmem [shape: f32[1,128], index: 13, kind: input, shape index: {}]
  %s14 = inlined_call_operand.hbm [shape: bf16[128,128], index: 14, kind: input, shape index: {}]
  %s15 = inlined_call_operand.vmem [shape: f32[1,128], index: 15, kind: input, shape index: {}]
  %s16 = inlined_call_operand.vmem [shape: bf16[8,128], index: 16, kind: input, shape index: {}]
  %s17 = inlined_call_operand.<no memory space> [shape: f32[1,1], index: 17, kind: input, shape index: {}]
  %s18 = inlined_call_operand.vmem [shape: f32[1,512], index: 18, kind: output, shape index: {}]
  %s19 = sld [smem:[#allocation0]]
  $region129: #{model_isp_all.1} parent=0
    _
  %s21 = ssub.s32 1, %s19
  %s22 = scalar_select 0, %s21, %s19
  %v23 = vstv %s17
  %24 = vst [vmem:[#allocation2] sm:$0x1] %v23
  $region1: #{model_isp_all.1} parent=0
    #allocation3 [shape = 'u8[40960]{0}', space=vmem, size = 0xa000, scoped, tag = 'input window, operand 1, single buffered']
    #allocation4 [shape = 's32[2]{0}', space=sflag, size = 0x8, scoped, tag = 'scoped memory for model_isp_all.1']
    #allocation5 [shape = 'u8[65536]{0}', space=vmem, size = 0x10000, scoped, tag = 'input window, operand 3, single buffered']
    #allocation6 [shape = 's32[1]{0}', space=sflag, size = 0x4, scoped, tag = 'scoped memory for model_isp_all.1']
    #allocation7 [shape = 'u8[65536]{0}', space=vmem, size = 0x10000, scoped, tag = 'input window, operand 7, single buffered']
    #allocation8 [shape = 'u8[65536]{0}', space=vmem, size = 0x10000, scoped, tag = 'input window, operand 11, single buffered']
    #allocation9 [shape = 's32[1]{0}', space=sflag, size = 0x4, scoped, tag = 'scoped memory for model_isp_all.1']
    #allocation10 [shape = 'u8[65536]{0}', space=vmem, size = 0x10000, scoped, tag = 'input window, operand 12, single buffered']
    #allocation11 [shape = 'u8[32768]{0}', space=vmem, size = 0x8000, scoped, tag = 'input window, operand 14, single buffered']
    #allocation12 [shape = 's32[1]{0}', space=sflag, size = 0x4, scoped, tag = 'scoped memory for model_isp_all.1']
    %25 = vsyncpa [#allocation4], 0
    %26 = vsyncpa [#allocation6], 0
    %27 = vsyncpa [#allocation9], 0
    %28 = vsyncpa [#allocation12], 0
    loop: start=0, step=1, limit=4
    $region2: #{model_isp_all.1} parent=1 // loop_pre_header
      _
    $region3: #{model_isp_all.1} parent=1 // loop_header
      %s30 = sphi 0, %s34
      %p31 = scmp.ge.s32.totalorder %s30, 4
      %s40 = sphi 0, %s42
      %s43 = sphi 0, %s40
      %s44 = sphi 0, %s43
      %s60 = sphi 0, %s44
      %s64 = sphi 0, %s64
      %s66 = sphi 0, %s64
      %s67 = sphi 0, %s66
      %s81 = sphi 0, %s67
      %s85 = sphi 0, %s85
      %s87 = sphi 0, %s85
      %s88 = sphi 0, %s87
      %s102 = sphi 0, %s88
      %s106 = sphi 0, %s106
      %s108 = sphi 0, %s106
      %s109 = sphi 0, %s108
      %s123 = sphi 0, %s109
      %s127 = sphi 0, %s127
      %s129 = sphi 0, %s127
      %s130 = sphi 0, %s129
      %s144 = sphi 0, %s130
      %s148 = sphi 0, %s148
      %s150 = sphi 0, %s148
      %s151 = sphi 0, %s150
      %s165 = sphi 0, %s151
      %s169 = sphi 0, %s169
      %s171 = sphi 0, %s169
      %s172 = sphi 0, %s171
      %s186 = sphi 0, %s172
      %s190 = sphi 0, %s190
      %s192 = sphi 0, %s190
      %s193 = sphi 0, %s192
      %s207 = sphi 0, %s193
      %s211 = sphi 0, %s211
      %s213 = sphi 0, %s211
      %s214 = sphi 0, %s213
      %s228 = sphi 0, %s214
      %s232 = sphi 0, %s232
      %s234 = sphi 0, %s232
      %s235 = sphi 0, %s234
      %s249 = sphi 0, %s235
      %s253 = sphi 0, %s253
      %s255 = sphi 0, %s253
      %s256 = sphi 0, %s255
      %s270 = sphi 0, %s256
      %s274 = sphi 0, %s274
      %s276 = sphi 0, %s274
      %s277 = sphi 0, %s276
      %s291 = sphi 0, %s277
      %s295 = sphi 0, %s295
      %s297 = sphi 0, %s295
      %s298 = sphi 0, %s297
      %s312 = sphi 0, %s298
      %s316 = sphi 0, %s316
      %s318 = sphi 0, %s316
      %s319 = sphi 0, %s318
      %s333 = sphi 0, %s319
      %s337 = sphi 0, %s337
      %s339 = sphi 0, %s337
      %s340 = sphi 0, %s339
      %s354 = sphi 0, %s340
      %s358 = sphi 0, %s358
      %s360 = sphi 0, %s358
      %s361 = sphi 0, %s360
      %s375 = sphi 0, %s361
      %s379 = sphi 0, %s379
      %s381 = sphi 0, %s379
      %s382 = sphi 0, %s381
      %s396 = sphi 0, %s382
      %s400 = sphi 0, %s400
      %s402 = sphi 0, %s400
      %s403 = sphi 0, %s402
      %s417 = sphi 0, %s403
      %s423 = sphi 0, %s425
      %s426 = sphi 0, %s423
      %s427 = sphi 0, %s426
      %s443 = sphi 0, %s427
    $region4: #{model_isp_all.1} parent=1 // loop_header_branch
      %33 = sbr.rel (%p31) target = $region8
    $region5: #{model_isp_all.1} parent=1 // loop_body
      %s35 = ssub.s32 %s30, 1
      %s36 = ssub.s32 %s30, 2
      %s37 = sadd.s32 %s30, 1
      %s38 = ssub.s32 %s30, %s37
      %p39 = scmp.eq.s32.totalorder %s38, 0
      %s41 = sadd.s32 %s40, 1
      %s42 = scalar_select %p39, %s40, %s41
      %p45 = pneg %p39
      %p46 = scmp.eq.s32.totalorder %s30, 1
      %p47 = por %p45, %p46
      %p48 = scmp.ne.s32.totalorder %s40, %s43
      %p49 = scmp.eq.s32.totalorder %s30, 0
      %p50 = por %p48, %p49
      %p51 = scmp.ne.s32.totalorder %s40, %s43
      %p52 = scmp.eq.s32.totalorder %s35, 1
      %p53 = por %p51, %p52
      %p54 = scmp.ne.s32.totalorder %s43, %s44
      %p55 = scmp.eq.s32.totalorder %s35, 0
      %p56 = por %p54, %p55
      %p57 = scmp.ne.s32.totalorder %s43, %s44
      %p58 = scmp.eq.s32.totalorder %s36, 1
      %p59 = por %p57, %p58
      %p61 = scmp.ne.s32.totalorder %s44, %s60
      %p62 = scmp.eq.s32.totalorder %s36, 0
      %p63 = por %p61, %p62
      %s65 = sadd.s32 %s64, 1
      %p68 = scmp.eq.s32.totalorder %s30, 1
      %p69 = scmp.ne.s32.totalorder %s64, %s66
      %p70 = scmp.eq.s32.totalorder %s30, 0
      %p71 = por %p69, %p70
      %p72 = scmp.ne.s32.totalorder %s64, %s66
      %p73 = scmp.eq.s32.totalorder %s35, 1
      %p74 = por %p72, %p73
      %p75 = scmp.ne.s32.totalorder %s66, %s67
      %p76 = scmp.eq.s32.totalorder %s35, 0
      %p77 = por %p75, %p76
      %p78 = scmp.ne.s32.totalorder %s66, %s67
      %p79 = scmp.eq.s32.totalorder %s36, 1
      %p80 = por %p78, %p79
      %p82 = scmp.ne.s32.totalorder %s67, %s81
      %p83 = scmp.eq.s32.totalorder %s36, 0
      %p84 = por %p82, %p83
      %s86 = sadd.s32 %s85, 1
      %p89 = scmp.eq.s32.totalorder %s30, 1
      %p90 = scmp.ne.s32.totalorder %s85, %s87
      %p91 = scmp.eq.s32.totalorder %s30, 0
      %p92 = por %p90, %p91
      %p93 = scmp.ne.s32.totalorder %s85, %s87
      %p94 = scmp.eq.s32.totalorder %s35, 1
      %p95 = por %p93, %p94
      %p96 = scmp.ne.s32.totalorder %s87, %s88
      %p97 = scmp.eq.s32.totalorder %s35, 0
      %p98 = por %p96, %p97
      %p99 = scmp.ne.s32.totalorder %s87, %s88
      %p100 = scmp.eq.s32.totalorder %s36, 1
      %p101 = por %p99, %p100
      %p103 = scmp.ne.s32.totalorder %s88, %s102
      %p104 = scmp.eq.s32.totalorder %s36, 0
      %p105 = por %p103, %p104
      %s107 = sadd.s32 %s106, 1
      %p110 = scmp.eq.s32.totalorder %s30, 1
      %p111 = scmp.ne.s32.totalorder %s106, %s108
      %p112 = scmp.eq.s32.totalorder %s30, 0
      %p113 = por %p111, %p112
      %p114 = scmp.ne.s32.totalorder %s106, %s108
      %p115 = scmp.eq.s32.totalorder %s35, 1
      %p116 = por %p114, %p115
      %p117 = scmp.ne.s32.totalorder %s108, %s109
      %p118 = scmp.eq.s32.totalorder %s35, 0
      %p119 = por %p117, %p118
      %p120 = scmp.ne.s32.totalorder %s108, %s109
      %p121 = scmp.eq.s32.totalorder %s36, 1
      %p122 = por %p120, %p121
      %p124 = scmp.ne.s32.totalorder %s109, %s123
      %p125 = scmp.eq.s32.totalorder %s36, 0
      %p126 = por %p124, %p125
      %s128 = sadd.s32 %s127, 1
      %p131 = scmp.eq.s32.totalorder %s30, 1
      %p132 = scmp.ne.s32.totalorder %s127, %s129
      %p133 = scmp.eq.s32.totalorder %s30, 0
      %p134 = por %p132, %p133
      %p135 = scmp.ne.s32.totalorder %s127, %s129
      %p136 = scmp.eq.s32.totalorder %s35, 1
      %p137 = por %p135, %p136
      %p138 = scmp.ne.s32.totalorder %s129, %s130
      %p139 = scmp.eq.s32.totalorder %s35, 0
      %p140 = por %p138, %p139
      %p141 = scmp.ne.s32.totalorder %s129, %s130
      %p142 = scmp.eq.s32.totalorder %s36, 1
      %p143 = por %p141, %p142
      %p145 = scmp.ne.s32.totalorder %s130, %s144
      %p146 = scmp.eq.s32.totalorder %s36, 0
      %p147 = por %p145, %p146
      %s149 = sadd.s32 %s148, 1
      %p152 = scmp.eq.s32.totalorder %s30, 1
      %p153 = scmp.ne.s32.totalorder %s148, %s150
      %p154 = scmp.eq.s32.totalorder %s30, 0
      %p155 = por %p153, %p154
      %p156 = scmp.ne.s32.totalorder %s148, %s150
      %p157 = scmp.eq.s32.totalorder %s35, 1
      %p158 = por %p156, %p157
      %p159 = scmp.ne.s32.totalorder %s150, %s151
      %p160 = scmp.eq.s32.totalorder %s35, 0
      %p161 = por %p159, %p160
      %p162 = scmp.ne.s32.totalorder %s150, %s151
      %p163 = scmp.eq.s32.totalorder %s36, 1
      %p164 = por %p162, %p163
      %p166 = scmp.ne.s32.totalorder %s151, %s165
      %p167 = scmp.eq.s32.totalorder %s36, 0
      %p168 = por %p166, %p167
      %s170 = sadd.s32 %s169, 1
      %p173 = scmp.eq.s32.totalorder %s30, 1
      %p174 = scmp.ne.s32.totalorder %s169, %s171
      %p175 = scmp.eq.s32.totalorder %s30, 0
      %p176 = por %p174, %p175
      %p177 = scmp.ne.s32.totalorder %s169, %s171
      %p178 = scmp.eq.s32.totalorder %s35, 1
      %p179 = por %p177, %p178
      %p180 = scmp.ne.s32.totalorder %s171, %s172
      %p181 = scmp.eq.s32.totalorder %s35, 0
      %p182 = por %p180, %p181
      %p183 = scmp.ne.s32.totalorder %s171, %s172
      %p184 = scmp.eq.s32.totalorder %s36, 1
      %p185 = por %p183, %p184
      %p187 = scmp.ne.s32.totalorder %s172, %s186
      %p188 = scmp.eq.s32.totalorder %s36, 0
      %p189 = por %p187, %p188
      %s191 = sadd.s32 %s190, 1
      %p194 = scmp.eq.s32.totalorder %s30, 1
      %p195 = scmp.ne.s32.totalorder %s190, %s192
      %p196 = scmp.eq.s32.totalorder %s30, 0
      %p197 = por %p195, %p196
      %p198 = scmp.ne.s32.totalorder %s190, %s192
      %p199 = scmp.eq.s32.totalorder %s35, 1
      %p200 = por %p198, %p199
      %p201 = scmp.ne.s32.totalorder %s192, %s193
      %p202 = scmp.eq.s32.totalorder %s35, 0
      %p203 = por %p201, %p202
      %p204 = scmp.ne.s32.totalorder %s192, %s193
      %p205 = scmp.eq.s32.totalorder %s36, 1
      %p206 = por %p204, %p205
      %p208 = scmp.ne.s32.totalorder %s193, %s207
      %p209 = scmp.eq.s32.totalorder %s36, 0
      %p210 = por %p208, %p209
      %s212 = sadd.s32 %s211, 1
      %p215 = scmp.eq.s32.totalorder %s30, 1
      %p216 = scmp.ne.s32.totalorder %s211, %s213
      %p217 = scmp.eq.s32.totalorder %s30, 0
      %p218 = por %p216, %p217
      %p219 = scmp.ne.s32.totalorder %s211, %s213
      %p220 = scmp.eq.s32.totalorder %s35, 1
      %p221 = por %p219, %p220
      %p222 = scmp.ne.s32.totalorder %s213, %s214
      %p223 = scmp.eq.s32.totalorder %s35, 0
      %p224 = por %p222, %p223
      %p225 = scmp.ne.s32.totalorder %s213, %s214
      %p226 = scmp.eq.s32.totalorder %s36, 1
      %p227 = por %p225, %p226
      %p229 = scmp.ne.s32.totalorder %s214, %s228
      %p230 = scmp.eq.s32.totalorder %s36, 0
      %p231 = por %p229, %p230
      %s233 = sadd.s32 %s232, 1
      %p236 = scmp.eq.s32.totalorder %s30, 1
      %p237 = scmp.ne.s32.totalorder %s232, %s234
      %p238 = scmp.eq.s32.totalorder %s30, 0
      %p239 = por %p237, %p238
      %p240 = scmp.ne.s32.totalorder %s232, %s234
      %p241 = scmp.eq.s32.totalorder %s35, 1
      %p242 = por %p240, %p241
      %p243 = scmp.ne.s32.totalorder %s234, %s235
      %p244 = scmp.eq.s32.totalorder %s35, 0
      %p245 = por %p243, %p244
      %p246 = scmp.ne.s32.totalorder %s234, %s235
      %p247 = scmp.eq.s32.totalorder %s36, 1
      %p248 = por %p246, %p247
      %p250 = scmp.ne.s32.totalorder %s235, %s249
      %p251 = scmp.eq.s32.totalorder %s36, 0
      %p252 = por %p250, %p251
      %s254 = sadd.s32 %s253, 1
      %p257 = scmp.eq.s32.totalorder %s30, 1
      %p258 = scmp.ne.s32.totalorder %s253, %s255
      %p259 = scmp.eq.s32.totalorder %s30, 0
      %p260 = por %p258, %p259
      %p261 = scmp.ne.s32.totalorder %s253, %s255
      %p262 = scmp.eq.s32.totalorder %s35, 1
      %p263 = por %p261, %p262
      %p264 = scmp.ne.s32.totalorder %s255, %s256
      %p265 = scmp.eq.s32.totalorder %s35, 0
      %p266 = por %p264, %p265
      %p267 = scmp.ne.s32.totalorder %s255, %s256
      %p268 = scmp.eq.s32.totalorder %s36, 1
      %p269 = por %p267, %p268
      %p271 = scmp.ne.s32.totalorder %s256, %s270
      %p272 = scmp.eq.s32.totalorder %s36, 0
      %p273 = por %p271, %p272
      %s275 = sadd.s32 %s274, 1
      %p278 = scmp.eq.s32.totalorder %s30, 1
      %p279 = scmp.ne.s32.totalorder %s274, %s276
      %p280 = scmp.eq.s32.totalorder %s30, 0
      %p281 = por %p279, %p280
      %p282 = scmp.ne.s32.totalorder %s274, %s276
      %p283 = scmp.eq.s32.totalorder %s35, 1
      %p284 = por %p282, %p283
      %p285 = scmp.ne.s32.totalorder %s276, %s277
      %p286 = scmp.eq.s32.totalorder %s35, 0
      %p287 = por %p285, %p286
      %p288 = scmp.ne.s32.totalorder %s276, %s277
      %p289 = scmp.eq.s32.totalorder %s36, 1
      %p290 = por %p288, %p289
      %p292 = scmp.ne.s32.totalorder %s277, %s291
      %p293 = scmp.eq.s32.totalorder %s36, 0
      %p294 = por %p292, %p293
      %s296 = sadd.s32 %s295, 1
      %p299 = scmp.eq.s32.totalorder %s30, 1
      %p300 = scmp.ne.s32.totalorder %s295, %s297
      %p301 = scmp.eq.s32.totalorder %s30, 0
      %p302 = por %p300, %p301
      %p303 = scmp.ne.s32.totalorder %s295, %s297
      %p304 = scmp.eq.s32.totalorder %s35, 1
      %p305 = por %p303, %p304
      %p306 = scmp.ne.s32.totalorder %s297, %s298
      %p307 = scmp.eq.s32.totalorder %s35, 0
      %p308 = por %p306, %p307
      %p309 = scmp.ne.s32.totalorder %s297, %s298
      %p310 = scmp.eq.s32.totalorder %s36, 1
      %p311 = por %p309, %p310
      %p313 = scmp.ne.s32.totalorder %s298, %s312
      %p314 = scmp.eq.s32.totalorder %s36, 0
      %p315 = por %p313, %p314
      %s317 = sadd.s32 %s316, 1
      %p320 = scmp.eq.s32.totalorder %s30, 1
      %p321 = scmp.ne.s32.totalorder %s316, %s318
      %p322 = scmp.eq.s32.totalorder %s30, 0
      %p323 = por %p321, %p322
      %p324 = scmp.ne.s32.totalorder %s316, %s318
      %p325 = scmp.eq.s32.totalorder %s35, 1
      %p326 = por %p324, %p325
      %p327 = scmp.ne.s32.totalorder %s318, %s319
      %p328 = scmp.eq.s32.totalorder %s35, 0
      %p329 = por %p327, %p328
      %p330 = scmp.ne.s32.totalorder %s318, %s319
      %p331 = scmp.eq.s32.totalorder %s36, 1
      %p332 = por %p330, %p331
      %p334 = scmp.ne.s32.totalorder %s319, %s333
      %p335 = scmp.eq.s32.totalorder %s36, 0
      %p336 = por %p334, %p335
      %s338 = sadd.s32 %s337, 1
      %p341 = scmp.eq.s32.totalorder %s30, 1
      %p342 = scmp.ne.s32.totalorder %s337, %s339
      %p343 = scmp.eq.s32.totalorder %s30, 0
      %p344 = por %p342, %p343
      %p345 = scmp.ne.s32.totalorder %s337, %s339
      %p346 = scmp.eq.s32.totalorder %s35, 1
      %p347 = por %p345, %p346
      %p348 = scmp.ne.s32.totalorder %s339, %s340
      %p349 = scmp.eq.s32.totalorder %s35, 0
      %p350 = por %p348, %p349
      %p351 = scmp.ne.s32.totalorder %s339, %s340
      %p352 = scmp.eq.s32.totalorder %s36, 1
      %p353 = por %p351, %p352
      %p355 = scmp.ne.s32.totalorder %s340, %s354
      %p356 = scmp.eq.s32.totalorder %s36, 0
      %p357 = por %p355, %p356
      %s359 = sadd.s32 %s358, 1
      %p362 = scmp.eq.s32.totalorder %s30, 1
      %p363 = scmp.ne.s32.totalorder %s358, %s360
      %p364 = scmp.eq.s32.totalorder %s30, 0
      %p365 = por %p363, %p364
      %p366 = scmp.ne.s32.totalorder %s358, %s360
      %p367 = scmp.eq.s32.totalorder %s35, 1
      %p368 = por %p366, %p367
      %p369 = scmp.ne.s32.totalorder %s360, %s361
      %p370 = scmp.eq.s32.totalorder %s35, 0
      %p371 = por %p369, %p370
      %p372 = scmp.ne.s32.totalorder %s360, %s361
      %p373 = scmp.eq.s32.totalorder %s36, 1
      %p374 = por %p372, %p373
      %p376 = scmp.ne.s32.totalorder %s361, %s375
      %p377 = scmp.eq.s32.totalorder %s36, 0
      %p378 = por %p376, %p377
      %s380 = sadd.s32 %s379, 1
      %p383 = scmp.eq.s32.totalorder %s30, 1
      %p384 = scmp.ne.s32.totalorder %s379, %s381
      %p385 = scmp.eq.s32.totalorder %s30, 0
      %p386 = por %p384, %p385
      %p387 = scmp.ne.s32.totalorder %s379, %s381
      %p388 = scmp.eq.s32.totalorder %s35, 1
      %p389 = por %p387, %p388
      %p390 = scmp.ne.s32.totalorder %s381, %s382
      %p391 = scmp.eq.s32.totalorder %s35, 0
      %p392 = por %p390, %p391
      %p393 = scmp.ne.s32.totalorder %s381, %s382
      %p394 = scmp.eq.s32.totalorder %s36, 1
      %p395 = por %p393, %p394
      %p397 = scmp.ne.s32.totalorder %s382, %s396
      %p398 = scmp.eq.s32.totalorder %s36, 0
      %p399 = por %p397, %p398
      %s401 = sadd.s32 %s400, 1
      %p404 = scmp.eq.s32.totalorder %s30, 1
      %p405 = scmp.ne.s32.totalorder %s400, %s402
      %p406 = scmp.eq.s32.totalorder %s30, 0
      %p407 = por %p405, %p406
      %p408 = scmp.ne.s32.totalorder %s400, %s402
      %p409 = scmp.eq.s32.totalorder %s35, 1
      %p410 = por %p408, %p409
      %p411 = scmp.ne.s32.totalorder %s402, %s403
      %p412 = scmp.eq.s32.totalorder %s35, 0
      %p413 = por %p411, %p412
      %p414 = scmp.ne.s32.totalorder %s402, %s403
      %p415 = scmp.eq.s32.totalorder %s36, 1
      %p416 = por %p414, %p415
      %p418 = scmp.ne.s32.totalorder %s403, %s417
      %p419 = scmp.eq.s32.totalorder %s36, 0
      %p420 = por %p418, %p419
      %s421 = ssub.s32 %s30, %s37
      %p422 = scmp.eq.s32.totalorder %s421, 0
      %s424 = sadd.s32 %s423, 1
      %s425 = scalar_select %p422, %s423, %s424
      %p428 = pneg %p422
      %p429 = scmp.eq.s32.totalorder %s30, 1
      %p430 = por %p428, %p429
      %p431 = scmp.ne.s32.totalorder %s423, %s426
      %p432 = scmp.eq.s32.totalorder %s30, 0
      %p433 = por %p431, %p432
      %p434 = scmp.ne.s32.totalorder %s423, %s426
      %p435 = scmp.eq.s32.totalorder %s35, 1
      %p436 = por %p434, %p435
      %p437 = scmp.ne.s32.totalorder %s426, %s427
      %p438 = scmp.eq.s32.totalorder %s35, 0
      %p439 = por %p437, %p438
      %p440 = scmp.ne.s32.totalorder %s426, %s427
      %p441 = scmp.eq.s32.totalorder %s36, 1
      %p442 = por %p440, %p441
      %p444 = scmp.ne.s32.totalorder %s427, %s443
      %p445 = scmp.eq.s32.totalorder %s36, 0
      %p446 = por %p444, %p445
      %p447 = scmp.le.s32.totalorder 1, %s30
      %p448 = scmp.lt.s32.totalorder %s30, 3
      %p449 = pnand %p447, %p448
      %p450 = pneg %p449
      // Predicated region
      $region9: #{model_isp_all.1} parent=5 // pred_check
        _
      $region10: #{model_isp_all.1} parent=5 // pred_check_branch
        %452 = sbr.rel (%p449) target = $region12
      $region11: #{model_isp_all.1} parent=5 // pred_region
        %s453 = ssub.s32 %s30, 1
        // Predicated region
        $region13: #{model_isp_all.1} parent=11 // pred_check
          %p454 = pneg %p77
        $region14: #{model_isp_all.1} parent=11 // pred_check_branch
          %456 = sbr.rel (%p454) target = $region16
        $region15: #{model_isp_all.1} parent=11 // pred_region
          %458 = vsyncadd [#allocation4], 0
          %s459 = sshll.u32 %s1, 4
          %s460 = int_to_ptr.hbm [resolvable:$true] %s459
          %s461 = sshll.u32 [#allocation3], 4
          %s462 = int_to_ptr.vmem [resolvable:$true] %s461
          %467 = dma.hbm_to_vmem [thread:$0]  %s460, 1280, %s462, [#allocation4], 128, 128, 8
        $region16: #{model_isp_all.1} parent=11 // pred_fallthru
          _
        // Predicated region
        $region17: #{model_isp_all.1} parent=11 // pred_check
          %p468 = pneg %p98
        $region18: #{model_isp_all.1} parent=11 // pred_check_branch
          %470 = sbr.rel (%p468) target = $region20
        $region19: #{model_isp_all.1} parent=11 // pred_region
          _
        $region20: #{model_isp_all.1} parent=11 // pred_fallthru
          _
        // Predicated region
        $region21: #{model_isp_all.1} parent=11 // pred_check
          %p471 = pneg %p119
        $region22: #{model_isp_all.1} parent=11 // pred_check_branch
          %473 = sbr.rel (%p471) target = $region24
        $region23: #{model_isp_all.1} parent=11 // pred_region
          %475 = vsyncadd [#allocation6], 0
          %s476 = sshll.u32 %s3, 4
          %s477 = int_to_ptr.hbm [resolvable:$true] %s476
          %s478 = sshll.u32 [#allocation5], 4
          %s479 = int_to_ptr.vmem [resolvable:$true] %s478
          %484 = dma.hbm_to_vmem [thread:$0]  %s477, 2048, %s479, [#allocation6], 128, 128, 8
        $region24: #{model_isp_all.1} parent=11 // pred_fallthru
          _
        // Predicated region
        $region25: #{model_isp_all.1} parent=11 // pred_check
          %p485 = pneg %p140
        $region26: #{model_isp_all.1} parent=11 // pred_check_branch
          %487 = sbr.rel (%p485) target = $region28
        $region27: #{model_isp_all.1} parent=11 // pred_region
          _
        $region28: #{model_isp_all.1} parent=11 // pred_fallthru
          _
        // Predicated region
        $region29: #{model_isp_all.1} parent=11 // pred_check
          %p488 = pneg %p161
        $region30: #{model_isp_all.1} parent=11 // pred_check_branch
          %490 = sbr.rel (%p488) target = $region32
        $region31: #{model_isp_all.1} parent=11 // pred_region
          _
        $region32: #{model_isp_all.1} parent=11 // pred_fallthru
          _
        // Predicated region
        $region33: #{model_isp_all.1} parent=11 // pred_check
          %p491 = pneg %p182
        $region34: #{model_isp_all.1} parent=11 // pred_check_branch
          %493 = sbr.rel (%p491) target = $region36
        $region35: #{model_isp_all.1} parent=11 // pred_region
          _
        $region36: #{model_isp_all.1} parent=11 // pred_fallthru
          _
        // Predicated region
        $region37: #{model_isp_all.1} parent=11 // pred_check
          %p494 = pneg %p203
        $region38: #{model_isp_all.1} parent=11 // pred_check_branch
          %496 = sbr.rel (%p494) target = $region40
        $region39: #{model_isp_all.1} parent=11 // pred_region
          %498 = vsyncadd [#allocation6], 0
          %s499 = sshll.u32 %s7, 4
          %s500 = int_to_ptr.hbm [resolvable:$true] %s499
          %s501 = sshll.u32 [#allocation7], 4
          %s502 = int_to_ptr.vmem [resolvable:$true] %s501
          %507 = dma.hbm_to_vmem [thread:$0]  %s500, 2048, %s502, [#allocation6], 128, 128, 8
        $region40: #{model_isp_all.1} parent=11 // pred_fallthru
          _
        // Predicated region
        $region41: #{model_isp_all.1} parent=11 // pred_check
          %p508 = pneg %p224
        $region42: #{model_isp_all.1} parent=11 // pred_check_branch
          %510 = sbr.rel (%p508) target = $region44
        $region43: #{model_isp_all.1} parent=11 // pred_region
          _
        $region44: #{model_isp_all.1} parent=11 // pred_fallthru
          _
        // Predicated region
        $region45: #{model_isp_all.1} parent=11 // pred_check
          %p511 = pneg %p245
        $region46: #{model_isp_all.1} parent=11 // pred_check_branch
          %513 = sbr.rel (%p511) target = $region48
        $region47: #{model_isp_all.1} parent=11 // pred_region
          _
        $region48: #{model_isp_all.1} parent=11 // pred_fallthru
          _
        // Predicated region
        $region49: #{model_isp_all.1} parent=11 // pred_check
          %p514 = pneg %p266
        $region50: #{model_isp_all.1} parent=11 // pred_check_branch
          %516 = sbr.rel (%p514) target = $region52
        $region51: #{model_isp_all.1} parent=11 // pred_region
          _
        $region52: #{model_isp_all.1} parent=11 // pred_fallthru
          _
        // Predicated region
        $region53: #{model_isp_all.1} parent=11 // pred_check
          %p517 = pneg %p287
        $region54: #{model_isp_all.1} parent=11 // pred_check_branch
          %519 = sbr.rel (%p517) target = $region56
        $region55: #{model_isp_all.1} parent=11 // pred_region
          %521 = vsyncadd [#allocation9], 0
          %s522 = sshll.u32 %s11, 4
          %s523 = int_to_ptr.hbm [resolvable:$true] %s522
          %s524 = sshll.u32 [#allocation8], 4
          %s525 = int_to_ptr.vmem [resolvable:$true] %s524
          %530 = dma.hbm_to_vmem [thread:$0]  %s523, 2048, %s525, [#allocation9], 64, 64, 4
        $region56: #{model_isp_all.1} parent=11 // pred_fallthru
          _
        // Predicated region
        $region57: #{model_isp_all.1} parent=11 // pred_check
          %p531 = pneg %p308
        $region58: #{model_isp_all.1} parent=11 // pred_check_branch
          %533 = sbr.rel (%p531) target = $region60
        $region59: #{model_isp_all.1} parent=11 // pred_region
          %535 = vsyncadd [#allocation9], 0
          %s536 = sshll.u32 %s12, 4
          %s537 = int_to_ptr.hbm [resolvable:$true] %s536
          %s538 = sshll.u32 [#allocation10], 4
          %s539 = int_to_ptr.vmem [resolvable:$true] %s538
          %544 = dma.hbm_to_vmem [thread:$0]  %s537, 2048, %s539, [#allocation9], 64, 64, 4
        $region60: #{model_isp_all.1} parent=11 // pred_fallthru
          _
        // Predicated region
        $region61: #{model_isp_all.1} parent=11 // pred_check
          %p545 = pneg %p329
        $region62: #{model_isp_all.1} parent=11 // pred_check_branch
          %547 = sbr.rel (%p545) target = $region64
        $region63: #{model_isp_all.1} parent=11 // pred_region
          _
        $region64: #{model_isp_all.1} parent=11 // pred_fallthru
          _
        // Predicated region
        $region65: #{model_isp_all.1} parent=11 // pred_check
          %p548 = pneg %p350
        $region66: #{model_isp_all.1} parent=11 // pred_check_branch
          %550 = sbr.rel (%p548) target = $region68
        $region67: #{model_isp_all.1} parent=11 // pred_region
          %552 = vsyncadd [#allocation12], 0
          %s553 = sshll.u32 %s14, 4
          %s554 = int_to_ptr.hbm [resolvable:$true] %s553
          %s555 = sshll.u32 [#allocation11], 4
          %s556 = int_to_ptr.vmem [resolvable:$true] %s555
          %561 = dma.hbm_to_vmem [thread:$0]  %s554, 1024, %s556, [#allocation12], 64, 64, 4
        $region68: #{model_isp_all.1} parent=11 // pred_fallthru
          _
        // Predicated region
        $region69: #{model_isp_all.1} parent=11 // pred_check
          %p562 = pneg %p371
        $region70: #{model_isp_all.1} parent=11 // pred_check_branch
          %564 = sbr.rel (%p562) target = $region72
        $region71: #{model_isp_all.1} parent=11 // pred_region
          _
        $region72: #{model_isp_all.1} parent=11 // pred_fallthru
          _
        // Predicated region
        $region73: #{model_isp_all.1} parent=11 // pred_check
          %p565 = pneg %p392
        $region74: #{model_isp_all.1} parent=11 // pred_check_branch
          %567 = sbr.rel (%p565) target = $region76
        $region75: #{model_isp_all.1} parent=11 // pred_region
          _
        $region76: #{model_isp_all.1} parent=11 // pred_fallthru
          _
        // Predicated region
        $region77: #{model_isp_all.1} parent=11 // pred_check
          %p568 = pneg %p413
        $region78: #{model_isp_all.1} parent=11 // pred_check_branch
          %570 = sbr.rel (%p568) target = $region80
        $region79: #{model_isp_all.1} parent=11 // pred_region
          _
        $region80: #{model_isp_all.1} parent=11 // pred_fallthru
          _
      $region12: #{model_isp_all.1} parent=5 // pred_fallthru
        _
      %p571 = scmp.lt.s32.totalorder %s30, 2
      // Predicated region
      $region81: #{model_isp_all.1} parent=5 // pred_check
        %p572 = pneg %p571
      $region82: #{model_isp_all.1} parent=5 // pred_check_branch
        %574 = sbr.rel (%p572) target = $region84
      $region83: #{model_isp_all.1} parent=5 // pred_region
        // Predicated region
        $region85: #{model_isp_all.1} parent=83 // pred_check
          %p575 = pneg %p50
        $region86: #{model_isp_all.1} parent=83 // pred_check_branch
          %577 = sbr.rel (%p575) target = $region88
        $region87: #{model_isp_all.1} parent=83 // pred_region
          %s578 = smul.u32 32, %s30
          %s579 = ssub.s32 38, %s578
          %p580 = scmp.lt.s32.totalorder %s579, 32
          %s581 = scalar_select %p580, %s579, 32
          %s582 = smul.u32 8, %s581
          %p583 = scmp.lt.s32.totalorder %s578, 37
          %s584 = scalar_select %p583, %s578, 37
          %s585 = smul.addr %s584, 8
          %s586 = scalar_lea.vmem %s0, %s585
          %s587 = smul.u32 32, %s30
          %s588 = ssub.s32 38, %s587
          %p589 = scmp.lt.s32.totalorder %s588, 32
          %s590 = scalar_select %p589, %s588, 32
          %s591 = smul.u32 8, %s590
        $region88: #{model_isp_all.1} parent=83 // pred_fallthru
          _
      $region84: #{model_isp_all.1} parent=5 // pred_fallthru
        _
      %p592 = scmp.le.s32.totalorder 1, %s30
      %p593 = scmp.lt.s32.totalorder %s30, 3
      %p594 = pnand %p592, %p593
      %p595 = pneg %p594
      // Predicated region
      $region89: #{model_isp_all.1} parent=5 // pred_check
        _
      $region90: #{model_isp_all.1} parent=5 // pred_check_branch
        %597 = sbr.rel (%p594) target = $region92
      $region91: #{model_isp_all.1} parent=5 // pred_region
        %s598 = ssub.s32 %s30, 1
        // Predicated region
        $region93: #{model_isp_all.1} parent=91 // pred_check
          %p599 = pneg %p77
        $region94: #{model_isp_all.1} parent=91 // pred_check_branch
          %601 = sbr.rel (%p599) target = $region96
        $region95: #{model_isp_all.1} parent=91 // pred_region
          %603 = dma.done [#allocation4], 1280
        $region96: #{model_isp_all.1} parent=91 // pred_fallthru
          _
        // Predicated region
        $region97: #{model_isp_all.1} parent=91 // pred_check
          %p604 = pneg %p119
        $region98: #{model_isp_all.1} parent=91 // pred_check_branch
          %606 = sbr.rel (%p604) target = $region100
        $region99: #{model_isp_all.1} parent=91 // pred_region
          %608 = dma.done [#allocation6], 2048
        $region100: #{model_isp_all.1} parent=91 // pred_fallthru
          _
        // Predicated region
        $region101: #{model_isp_all.1} parent=91 // pred_check
          %p609 = pneg %p203
        $region102: #{model_isp_all.1} parent=91 // pred_check_branch
          %611 = sbr.rel (%p609) target = $region104
        $region103: #{model_isp_all.1} parent=91 // pred_region
          %613 = dma.done [#allocation6], 2048
        $region104: #{model_isp_all.1} parent=91 // pred_fallthru
          _
        // Predicated region
        $region105: #{model_isp_all.1} parent=91 // pred_check
          %p614 = pneg %p287
        $region106: #{model_isp_all.1} parent=91 // pred_check_branch
          %616 = sbr.rel (%p614) target = $region108
        $region107: #{model_isp_all.1} parent=91 // pred_region
          %618 = dma.done [#allocation9], 2048
        $region108: #{model_isp_all.1} parent=91 // pred_fallthru
          _
        // Predicated region
        $region109: #{model_isp_all.1} parent=91 // pred_check
          %p619 = pneg %p308
        $region110: #{model_isp_all.1} parent=91 // pred_check_branch
          %621 = sbr.rel (%p619) target = $region112
        $region111: #{model_isp_all.1} parent=91 // pred_region
          %623 = dma.done [#allocation9], 2048
        $region112: #{model_isp_all.1} parent=91 // pred_fallthru
          _
        // Predicated region
        $region113: #{model_isp_all.1} parent=91 // pred_check
          %p624 = pneg %p350
        $region114: #{model_isp_all.1} parent=91 // pred_check_branch
          %626 = sbr.rel (%p624) target = $region116
        $region115: #{model_isp_all.1} parent=91 // pred_region
          %628 = dma.done [#allocation12], 1024
        $region116: #{model_isp_all.1} parent=91 // pred_fallthru
          _
        %s629 = smul.u32 32, %s35
        %s630 = ssub.s32 38, %s629
        %p631 = scmp.lt.s32.totalorder %s630, 32
        %s632 = scalar_select %p631, %s630, 32
        %s633 = smul.u32 8, %s632
        %p634 = scmp.lt.s32.totalorder %s629, 37
        %s635 = scalar_select %p634, %s629, 37
        %s636 = smul.addr %s635, 8
        %s637 = scalar_lea.vmem %s0, %s636
        %p638 = pneg %p56
        %p639 = pneg %p53
        %p640 = pneg %p77
        %p641 = pneg %p74
        %p642 = pneg %p98
        %p643 = pneg %p95
        %p644 = pneg %p119
        %p645 = pneg %p116
        %p646 = pneg %p140
        %p647 = pneg %p137
        %p648 = pneg %p161
        %p649 = pneg %p158
        %p650 = pneg %p182
        %p651 = pneg %p179
        %p652 = pneg %p203
        %p653 = pneg %p200
        %p654 = pneg %p224
        %p655 = pneg %p221
        %p656 = pneg %p245
        %p657 = pneg %p242
        %p658 = pneg %p266
        %p659 = pneg %p263
        %p660 = pneg %p287
        %p661 = pneg %p284
        %p662 = pneg %p308
        %p663 = pneg %p305
        %p664 = pneg %p329
        %p665 = pneg %p326
        %p666 = pneg %p350
        %p667 = pneg %p347
        %p668 = pneg %p371
        %p669 = pneg %p368
        %p670 = pneg %p392
        %p671 = pneg %p389
        %p672 = pneg %p413
        %p673 = pneg %p410
        %p674 = pneg %p439
        %p675 = pneg %p436
        %s676 = smul.u32 2, %s35
        %p677 = scmp.lt.s32.totalorder %s676, 3
        %s678 = scalar_select %p677, %s676, 3
        %s679 = scalar_lea.vmem %s18, %s678
        %s680 = smul.u32 32, %s35
        %s681 = ssub.s32 38, %s680
        %p682 = scmp.lt.s32.totalorder %s681, 32
        %s683 = scalar_select %p682, %s681, 32
        %s684 = smul.u32 8, %s683
        %p685 = scmp.lt.s32.totalorder %s680, 37
        %s686 = scalar_select %p685, %s680, 37
        %s687 = smul.addr %s686, 8
        %s688 = scalar_lea.vmem %s0, %s687
        %s689 = smul.u32 32, %s35
        %s690 = ssub.s32 38, %s689
        %p691 = scmp.lt.s32.totalorder %s690, 32
        %s692 = scalar_select %p691, %s690, 32
        %s693 = smul.u32 8, %s692
        %s694 = smul.u32 2, %s35
        %p695 = scmp.lt.s32.totalorder %s694, 3
        %s696 = scalar_select %p695, %s694, 3
        %s697 = scalar_lea.vmem %s18, %s696
        %s698 = smul.u32 2, %s35
        %v700 = vld [vmem:[%s688] sm:$0xff]
        %v701 = vld [vmem:[%s688 + $0x8] sm:$0xff]
        %v702 = vld [vmem:[%s688 + $0x10] sm:$0xff]
        %v703 = vld [vmem:[%s688 + $0x18] sm:$0xff]
        %v704 = vld [vmem:[%s688 + $0x20] sm:$0xff]
        %v705 = vld [vmem:[%s688 + $0x28] sm:$0xff]
        %v706 = vld [vmem:[%s688 + $0x30] sm:$0xff]
        %v707 = vld [vmem:[%s688 + $0x38] sm:$0xff]
        %v708 = vld [vmem:[%s688 + $0x40] sm:$0xff]
        %v709 = vld [vmem:[%s688 + $0x48] sm:$0xff]
        %v710 = vld [vmem:[%s688 + $0x50] sm:$0xff]
        %v711 = vld [vmem:[%s688 + $0x58] sm:$0xff]
        %v712 = vld [vmem:[%s688 + $0x60] sm:$0xff]
        %v713 = vld [vmem:[%s688 + $0x68] sm:$0xff]
        %v714 = vld [vmem:[%s688 + $0x70] sm:$0xff]
        %v715 = vld [vmem:[%s688 + $0x78] sm:$0xff]
        %v716 = vld [vmem:[%s688 + $0x80] sm:$0xff]
        %v717 = vld [vmem:[%s688 + $0x88] sm:$0xff]
        %v718 = vld [vmem:[%s688 + $0x90] sm:$0xff]
        %v719 = vld [vmem:[%s688 + $0x98] sm:$0xff]
        %v720 = vld [vmem:[%s688 + $0xa0] sm:$0xff]
        %v721 = vld [vmem:[%s688 + $0xa8] sm:$0xff]
        %v722 = vld [vmem:[%s688 + $0xb0] sm:$0xff]
        %v723 = vld [vmem:[%s688 + $0xb8] sm:$0xff]
        %v724 = vld [vmem:[%s688 + $0xc0] sm:$0xff]
        %v725 = vld [vmem:[%s688 + $0xc8] sm:$0xff]
        %v726 = vld [vmem:[%s688 + $0xd0] sm:$0xff]
        %v727 = vld [vmem:[%s688 + $0xd8] sm:$0xff]
        %v728 = vld [vmem:[%s688 + $0xe0] sm:$0xff]
        %v729 = vld [vmem:[%s688 + $0xe8] sm:$0xff]
        %v730 = vld [vmem:[%s688 + $0xf0] sm:$0xff]
        %v731 = vld [vmem:[%s688 + $0xf8] sm:$0xff]
        %v732 = vpack.c.bf16 %v701, %v700
        %v733 = vpack.c.bf16 %v703, %v702
        %v734 = vpack.c.bf16 %v705, %v704
        %v735 = vpack.c.bf16 %v707, %v706
        %v736 = vpack.c.bf16 %v709, %v708
        %v737 = vpack.c.bf16 %v711, %v710
        %v738 = vpack.c.bf16 %v713, %v712
        %v739 = vpack.c.bf16 %v715, %v714
        %v740 = vpack.c.bf16 %v717, %v716
        %v741 = vpack.c.bf16 %v719, %v718
        %v742 = vpack.c.bf16 %v721, %v720
        %v743 = vpack.c.bf16 %v723, %v722
        %v744 = vpack.c.bf16 %v725, %v724
        %v745 = vpack.c.bf16 %v727, %v726
        %v746 = vpack.c.bf16 %v729, %v728
        %v747 = vpack.c.bf16 %v731, %v730
        %v748 = vld [vmem:[#allocation3] sm:$0xff]
        %v749 = vld [vmem:[#allocation3 + $0x8] sm:$0xff]
        %v750 = vld [vmem:[#allocation3 + $0x10] sm:$0xff]
        %v751 = vld [vmem:[#allocation3 + $0x18] sm:$0xff]
        %v752 = vld [vmem:[#allocation3 + $0x20] sm:$0xff]
        %v753 = vld [vmem:[#allocation3 + $0x28] sm:$0xff]
        %v754 = vld [vmem:[#allocation3 + $0x30] sm:$0xff]
        %v755 = vld [vmem:[#allocation3 + $0x38] sm:$0xff]
        %v756 = vld [vmem:[#allocation3 + $0x40] sm:$0xff]
        %v757 = vld [vmem:[#allocation3 + $0x48] sm:$0x33]
        %v758 = vld [vmem:[%s2] sm:$0x3]
        %v760 = vperm.slane %v758, 0
        %v761 = vperm.slane %v758, 1
        %v774 = vunpack.c.l.b16 %v748
        %v775 = vunpack.c.h.b16 %v748
        %v776 = vunpack.c.l.b16 %v749
        %v777 = vunpack.c.h.b16 %v749
        %v778 = vunpack.c.l.b16 %v750
        %v779 = vunpack.c.h.b16 %v750
        %v780 = vunpack.c.l.b16 %v751
        %v781 = vunpack.c.h.b16 %v751
        %v782 = vunpack.c.l.b16 %v752
        %v783 = vunpack.c.h.b16 %v752
        %v784 = vunpack.c.l.b16 %v753
        %v785 = vunpack.c.h.b16 %v753
        %v786 = vunpack.c.l.b16 %v754
        %v787 = vunpack.c.h.b16 %v754
        %v788 = vunpack.c.l.b16 %v755
        %v789 = vunpack.c.h.b16 %v755
        %v790 = vunpack.c.l.b16 %v756
        %v791 = vunpack.c.h.b16 %v756
        %v792 = vunpack.c.l.b16 %v757
        %v793 = vunpack.c.h.b16 %v757
        %v794 = vpack.c.b16 %v776, %v774
        %v795 = vpack.c.b16 %v777, %v775
        %v796 = vpack.c.b16 %v780, %v778
        %v797 = vpack.c.b16 %v781, %v779
        %v798 = vpack.c.b16 %v784, %v782
        %v799 = vpack.c.b16 %v785, %v783
        %v800 = vpack.c.b16 %v788, %v786
        %v801 = vpack.c.b16 %v789, %v787
        %v802 = vpack.c.b16 %v792, %v790
        %v803 = vpack.c.b16 %v793, %v791
        %vm812 = vcmask 621568
        %v814 = vsel %vm812, %v732, 0
        %v817 = vsel %vm812, %v733, 0
        %v820 = vsel %vm812, %v734, 0
        %v823 = vsel %vm812, %v735, 0
        %v826 = vsel %vm812, %v736, 0
        %v829 = vsel %vm812, %v737, 0
        %v832 = vsel %vm812, %v738, 0
        %v835 = vsel %vm812, %v739, 0
        %v838 = vsel %vm812, %v740, 0
        %v841 = vsel %vm812, %v741, 0
        %v844 = vsel %vm812, %v742, 0
        %v847 = vsel %vm812, %v743, 0
        %v850 = vsel %vm812, %v744, 0
        %v853 = vsel %vm812, %v745, 0
        %v856 = vsel %vm812, %v746, 0
        %v859 = vsel %vm812, %v747, 0
        %vm861 = vcmask 1045504
        %v863 = vsel %vm861, %v802, 0
        %v866 = vsel %vm861, %v803, 0
        %868 = vmatpush.bf16.msra.mxu0 0
        %869 = vmatpush.bf16.msra.mxu0 0
        %870 = vmatpush.bf16.msra.mxu0 0
        %871 = vmatpush.bf16.msra.mxu0 %v863
        %872 = vmatpush.bf16.msra.mxu0 %v800
        %873 = vmatpush.bf16.msra.mxu0 %v798
        %874 = vmatpush.bf16.msra.mxu0 %v796
        %875 = vmatpush.bf16.msra.mxu0 %v794
        %876 = vmatmul.bf16.gmra.mxu0 %v814
        %v877 = vpop.f32.mrf.mxu0
        %v878 = vadd.f32 %v760, %v877
        %v879 = vpop.f32.mrf.mxu0
        %v880 = vadd.f32 %v760, %v879
        %881 = vmatmul.bf16.gmra.mxu0 %v817
        %v882 = vpop.f32.mrf.mxu0
        %v883 = vadd.f32 %v760, %v882
        %v884 = vpop.f32.mrf.mxu0
        %v885 = vadd.f32 %v760, %v884
        %886 = vmatmul.bf16.gmra.mxu0 %v820
        %v887 = vpop.f32.mrf.mxu0
        %v888 = vadd.f32 %v760, %v887
        %v889 = vpop.f32.mrf.mxu0
        %v890 = vadd.f32 %v760, %v889
        %891 = vmatmul.bf16.gmra.mxu0 %v823
        %v892 = vpop.f32.mrf.mxu0
        %v893 = vadd.f32 %v760, %v892
        %v894 = vpop.f32.mrf.mxu0
        %v895 = vadd.f32 %v760, %v894
        %896 = vmatmul.bf16.gmra.mxu0 %v826
        %v897 = vpop.f32.mrf.mxu0
        %v898 = vadd.f32 %v760, %v897
        %v899 = vpop.f32.mrf.mxu0
        %v900 = vadd.f32 %v760, %v899
        %901 = vmatmul.bf16.gmra.mxu0 %v829
        %v902 = vpop.f32.mrf.mxu0
        %v903 = vadd.f32 %v760, %v902
        %v904 = vpop.f32.mrf.mxu0
        %v905 = vadd.f32 %v760, %v904
        %906 = vmatmul.bf16.gmra.mxu0 %v832
        %v907 = vpop.f32.mrf.mxu0
        %v908 = vadd.f32 %v760, %v907
        %v909 = vpop.f32.mrf.mxu0
        %v910 = vadd.f32 %v760, %v909
        %911 = vmatmul.bf16.gmra.mxu0 %v835
        %v912 = vpop.f32.mrf.mxu0
        %v913 = vadd.f32 %v760, %v912
        %v914 = vpop.f32.mrf.mxu0
        %v915 = vadd.f32 %v760, %v914
        %916 = vmatmul.bf16.gmra.mxu0 %v838
        %v917 = vpop.f32.mrf.mxu0
        %v918 = vadd.f32 %v760, %v917
        %v919 = vpop.f32.mrf.mxu0
        %v920 = vadd.f32 %v760, %v919
        %921 = vmatmul.bf16.gmra.mxu0 %v841
        %v922 = vpop.f32.mrf.mxu0
        %v923 = vadd.f32 %v760, %v922
        %v924 = vpop.f32.mrf.mxu0
        %v925 = vadd.f32 %v760, %v924
        %926 = vmatmul.bf16.gmra.mxu0 %v844
        %v927 = vpop.f32.mrf.mxu0
        %v928 = vadd.f32 %v760, %v927
        %v929 = vpop.f32.mrf.mxu0
        %v930 = vadd.f32 %v760, %v929
        %931 = vmatmul.bf16.gmra.mxu0 %v847
        %v932 = vpop.f32.mrf.mxu0
        %v933 = vadd.f32 %v760, %v932
        %v934 = vpop.f32.mrf.mxu0
        %v935 = vadd.f32 %v760, %v934
        %936 = vmatmul.bf16.gmra.mxu0 %v850
        %v937 = vpop.f32.mrf.mxu0
        %v938 = vadd.f32 %v760, %v937
        %v939 = vpop.f32.mrf.mxu0
        %v940 = vadd.f32 %v760, %v939
        %941 = vmatmul.bf16.gmra.mxu0 %v853
        %v942 = vpop.f32.mrf.mxu0
        %v943 = vadd.f32 %v760, %v942
        %v944 = vpop.f32.mrf.mxu0
        %v945 = vadd.f32 %v760, %v944
        %946 = vmatmul.bf16.gmra.mxu0 %v856
        %v947 = vpop.f32.mrf.mxu0
        %v948 = vadd.f32 %v760, %v947
        %v949 = vpop.f32.mrf.mxu0
        %v950 = vadd.f32 %v760, %v949
        %951 = vmatmul.bf16.gmra.mxu0 %v859
        %v952 = vpop.f32.mrf.mxu0
        %v953 = vadd.f32 %v760, %v952
        %v954 = vpop.f32.mrf.mxu0
        %v955 = vadd.f32 %v760, %v954
        %956 = vdwg.mxu0
        %957 = vmatpush.bf16.msra.mxu0 0
        %958 = vmatpush.bf16.msra.mxu0 0
        %959 = vmatpush.bf16.msra.mxu0 0
        %960 = vmatpush.bf16.msra.mxu0 %v866
        %961 = vmatpush.bf16.msra.mxu0 %v801
        %962 = vmatpush.bf16.msra.mxu0 %v799
        %963 = vmatpush.bf16.msra.mxu0 %v797
        %964 = vmatpush.bf16.msra.mxu0 %v795
        %965 = vmatmul.bf16.gmra.mxu0 %v814
        %v966 = vpop.f32.mrf.mxu0
        %v967 = vadd.f32 %v761, %v966
        %v968 = vpop.f32.mrf.mxu0
        %v969 = vadd.f32 %v761, %v968
        %970 = vmatmul.bf16.gmra.mxu0 %v817
        %v971 = vpop.f32.mrf.mxu0
        %v972 = vadd.f32 %v761, %v971
        %v973 = vpop.f32.mrf.mxu0
        %v974 = vadd.f32 %v761, %v973
        %975 = vmatmul.bf16.gmra.mxu0 %v820
        %v976 = vpop.f32.mrf.mxu0
        %v977 = vadd.f32 %v761, %v976
        %v978 = vpop.f32.mrf.mxu0
        %v979 = vadd.f32 %v761, %v978
        %980 = vmatmul.bf16.gmra.mxu0 %v823
        %v981 = vpop.f32.mrf.mxu0
        %v982 = vadd.f32 %v761, %v981
        %v983 = vpop.f32.mrf.mxu0
        %v984 = vadd.f32 %v761, %v983
        %985 = vmatmul.bf16.gmra.mxu0 %v826
        %v986 = vpop.f32.mrf.mxu0
        %v987 = vadd.f32 %v761, %v986
        %v988 = vpop.f32.mrf.mxu0
        %v989 = vadd.f32 %v761, %v988
        %990 = vmatmul.bf16.gmra.mxu0 %v829
        %v991 = vpop.f32.mrf.mxu0
        %v992 = vadd.f32 %v761, %v991
        %v993 = vpop.f32.mrf.mxu0
        %v994 = vadd.f32 %v761, %v993
        %995 = vmatmul.bf16.gmra.mxu0 %v832
        %v996 = vpop.f32.mrf.mxu0
        %v997 = vadd.f32 %v761, %v996
        %v998 = vpop.f32.mrf.mxu0
        %v999 = vadd.f32 %v761, %v998
        %1000 = vmatmul.bf16.gmra.mxu0 %v835
        %v1001 = vpop.f32.mrf.mxu0
        %v1002 = vadd.f32 %v761, %v1001
        %v1003 = vpop.f32.mrf.mxu0
        %v1004 = vadd.f32 %v761, %v1003
        %1005 = vmatmul.bf16.gmra.mxu0 %v838
        %v1006 = vpop.f32.mrf.mxu0
        %v1007 = vadd.f32 %v761, %v1006
        %v1008 = vpop.f32.mrf.mxu0
        %v1009 = vadd.f32 %v761, %v1008
        %1010 = vmatmul.bf16.gmra.mxu0 %v841
        %v1011 = vpop.f32.mrf.mxu0
        %v1012 = vadd.f32 %v761, %v1011
        %v1013 = vpop.f32.mrf.mxu0
        %v1014 = vadd.f32 %v761, %v1013
        %1015 = vmatmul.bf16.gmra.mxu0 %v844
        %v1016 = vpop.f32.mrf.mxu0
        %v1017 = vadd.f32 %v761, %v1016
        %v1018 = vpop.f32.mrf.mxu0
        %v1019 = vadd.f32 %v761, %v1018
        %1020 = vmatmul.bf16.gmra.mxu0 %v847
        %v1021 = vpop.f32.mrf.mxu0
        %v1022 = vadd.f32 %v761, %v1021
        %v1023 = vpop.f32.mrf.mxu0
        %v1024 = vadd.f32 %v761, %v1023
        %1025 = vmatmul.bf16.gmra.mxu0 %v850
        %v1026 = vpop.f32.mrf.mxu0
        %v1027 = vadd.f32 %v761, %v1026
        %v1028 = vpop.f32.mrf.mxu0
        %v1029 = vadd.f32 %v761, %v1028
        %1030 = vmatmul.bf16.gmra.mxu0 %v853
        %v1031 = vpop.f32.mrf.mxu0
        %v1032 = vadd.f32 %v761, %v1031
        %v1033 = vpop.f32.mrf.mxu0
        %v1034 = vadd.f32 %v761, %v1033
        %1035 = vmatmul.bf16.gmra.mxu0 %v856
        %v1036 = vpop.f32.mrf.mxu0
        %v1037 = vadd.f32 %v761, %v1036
        %v1038 = vpop.f32.mrf.mxu0
        %v1039 = vadd.f32 %v761, %v1038
        %1040 = vmatmul.bf16.gmra.mxu0 %v859
        %v1041 = vpop.f32.mrf.mxu0
        %v1042 = vadd.f32 %v761, %v1041
        %v1043 = vpop.f32.mrf.mxu0
        %v1044 = vadd.f32 %v761, %v1043
        %1045 = vdwg.mxu0
        %v1046 = vmax.f32 %v878, 0.0
        %v1047 = vmax.f32 %v967, 0.0
        %v1048 = vmax.f32 %v880, 0.0
        %v1049 = vmax.f32 %v969, 0.0
        %v1050 = vmax.f32 %v883, 0.0
        %v1051 = vmax.f32 %v972, 0.0
        %v1052 = vmax.f32 %v885, 0.0
        %v1053 = vmax.f32 %v974, 0.0
        %v1054 = vmax.f32 %v888, 0.0
        %v1055 = vmax.f32 %v977, 0.0
        %v1056 = vmax.f32 %v890, 0.0
        %v1057 = vmax.f32 %v979, 0.0
        %v1058 = vmax.f32 %v893, 0.0
        %v1059 = vmax.f32 %v982, 0.0
        %v1060 = vmax.f32 %v895, 0.0
        %v1061 = vmax.f32 %v984, 0.0
        %v1062 = vmax.f32 %v898, 0.0
        %v1063 = vmax.f32 %v987, 0.0
        %v1064 = vmax.f32 %v900, 0.0
        %v1065 = vmax.f32 %v989, 0.0
        %v1066 = vmax.f32 %v903, 0.0
        %v1067 = vmax.f32 %v992, 0.0
        %v1068 = vmax.f32 %v905, 0.0
        %v1069 = vmax.f32 %v994, 0.0
        %v1070 = vmax.f32 %v908, 0.0
        %v1071 = vmax.f32 %v997, 0.0
        %v1072 = vmax.f32 %v910, 0.0
        %v1073 = vmax.f32 %v999, 0.0
        %v1074 = vmax.f32 %v913, 0.0
        %v1075 = vmax.f32 %v1002, 0.0
        %v1076 = vmax.f32 %v915, 0.0
        %v1077 = vmax.f32 %v1004, 0.0
        %v1078 = vmax.f32 %v918, 0.0
        %v1079 = vmax.f32 %v1007, 0.0
        %v1080 = vmax.f32 %v920, 0.0
        %v1081 = vmax.f32 %v1009, 0.0
        %v1082 = vmax.f32 %v923, 0.0
        %v1083 = vmax.f32 %v1012, 0.0
        %v1084 = vmax.f32 %v925, 0.0
        %v1085 = vmax.f32 %v1014, 0.0
        %v1086 = vmax.f32 %v928, 0.0
        %v1087 = vmax.f32 %v1017, 0.0
        %v1088 = vmax.f32 %v930, 0.0
        %v1089 = vmax.f32 %v1019, 0.0
        %v1090 = vmax.f32 %v933, 0.0
        %v1091 = vmax.f32 %v1022, 0.0
        %v1092 = vmax.f32 %v935, 0.0
        %v1093 = vmax.f32 %v1024, 0.0
        %v1094 = vmax.f32 %v938, 0.0
        %v1095 = vmax.f32 %v1027, 0.0
        %v1096 = vmax.f32 %v940, 0.0
        %v1097 = vmax.f32 %v1029, 0.0
        %v1098 = vmax.f32 %v943, 0.0
        %v1099 = vmax.f32 %v1032, 0.0
        %v1100 = vmax.f32 %v945, 0.0
        %v1101 = vmax.f32 %v1034, 0.0
        %v1102 = vmax.f32 %v948, 0.0
        %v1103 = vmax.f32 %v1037, 0.0
        %v1104 = vmax.f32 %v950, 0.0
        %v1105 = vmax.f32 %v1039, 0.0
        %v1106 = vmax.f32 %v953, 0.0
        %v1107 = vmax.f32 %v1042, 0.0
        %v1108 = vmax.f32 %v955, 0.0
        %v1109 = vmax.f32 %v1044, 0.0
        %v1110 = vpack.c.bf16 %v1047, %v1046
        %v1111 = vpack.c.bf16 %v1049, %v1048
        %v1112 = vpack.c.bf16 %v1051, %v1050
        %v1113 = vpack.c.bf16 %v1053, %v1052
        %v1114 = vpack.c.bf16 %v1055, %v1054
        %v1115 = vpack.c.bf16 %v1057, %v1056
        %v1116 = vpack.c.bf16 %v1059, %v1058
        %v1117 = vpack.c.bf16 %v1061, %v1060
        %v1118 = vpack.c.bf16 %v1063, %v1062
        %v1119 = vpack.c.bf16 %v1065, %v1064
        %v1120 = vpack.c.bf16 %v1067, %v1066
        %v1121 = vpack.c.bf16 %v1069, %v1068
        %v1122 = vpack.c.bf16 %v1071, %v1070
        %v1123 = vpack.c.bf16 %v1073, %v1072
        %v1124 = vpack.c.bf16 %v1075, %v1074
        %v1125 = vpack.c.bf16 %v1077, %v1076
        %v1126 = vpack.c.bf16 %v1079, %v1078
        %v1127 = vpack.c.bf16 %v1081, %v1080
        %v1128 = vpack.c.bf16 %v1083, %v1082
        %v1129 = vpack.c.bf16 %v1085, %v1084
        %v1130 = vpack.c.bf16 %v1087, %v1086
        %v1131 = vpack.c.bf16 %v1089, %v1088
        %v1132 = vpack.c.bf16 %v1091, %v1090
        %v1133 = vpack.c.bf16 %v1093, %v1092
        %v1134 = vpack.c.bf16 %v1095, %v1094
        %v1135 = vpack.c.bf16 %v1097, %v1096
        %v1136 = vpack.c.bf16 %v1099, %v1098
        %v1137 = vpack.c.bf16 %v1101, %v1100
        %v1138 = vpack.c.bf16 %v1103, %v1102
        %v1139 = vpack.c.bf16 %v1105, %v1104
        %v1140 = vpack.c.bf16 %v1107, %v1106
        %v1141 = vpack.c.bf16 %v1109, %v1108
        %v1142 = vld [vmem:[#allocation5] sm:$0xff]
        %v1143 = vld [vmem:[#allocation5 + $0x8] sm:$0xff]
        %v1144 = vld [vmem:[#allocation5 + $0x10] sm:$0xff]
        %v1145 = vld [vmem:[#allocation5 + $0x18] sm:$0xff]
        %v1146 = vld [vmem:[#allocation5 + $0x20] sm:$0xff]
        %v1147 = vld [vmem:[#allocation5 + $0x28] sm:$0xff]
        %v1148 = vld [vmem:[#allocation5 + $0x30] sm:$0xff]
        %v1149 = vld [vmem:[#allocation5 + $0x38] sm:$0xff]
        %v1150 = vld [vmem:[#allocation5 + $0x40] sm:$0xff]
        %v1151 = vld [vmem:[#allocation5 + $0x48] sm:$0xff]
        %v1152 = vld [vmem:[#allocation5 + $0x50] sm:$0xff]
        %v1153 = vld [vmem:[#allocation5 + $0x58] sm:$0xff]
        %v1154 = vld [vmem:[#allocation5 + $0x60] sm:$0xff]
        %v1155 = vld [vmem:[#allocation5 + $0x68] sm:$0xff]
        %v1156 = vld [vmem:[#allocation5 + $0x70] sm:$0xff]
        %v1157 = vld [vmem:[#allocation5 + $0x78] sm:$0xff]
        %v1158 = vld [vmem:[%s4] sm:$0x3]
        %v1160 = vperm.slane %v1158, 0
        %v1161 = vperm.slane %v1158, 1
        %v1196 = vunpack.c.l.b16 %v1110
        %v1197 = vunpack.c.l.b16 %v1111
        %v1198 = vunpack.c.l.b16 %v1112
        %v1199 = vunpack.c.l.b16 %v1113
        %v1200 = vunpack.c.l.b16 %v1114
        %v1201 = vunpack.c.l.b16 %v1115
        %v1202 = vunpack.c.l.b16 %v1116
        %v1203 = vunpack.c.l.b16 %v1117
        %v1204 = vunpack.c.l.b16 %v1118
        %v1205 = vunpack.c.l.b16 %v1119
        %v1206 = vunpack.c.l.b16 %v1120
        %v1207 = vunpack.c.l.b16 %v1121
        %v1208 = vunpack.c.l.b16 %v1122
        %v1209 = vunpack.c.l.b16 %v1123
        %v1210 = vunpack.c.l.b16 %v1124
        %v1211 = vunpack.c.l.b16 %v1125
        %v1212 = vunpack.c.l.b16 %v1126
        %v1213 = vunpack.c.l.b16 %v1127
        %v1214 = vunpack.c.l.b16 %v1128
        %v1215 = vunpack.c.l.b16 %v1129
        %v1216 = vunpack.c.l.b16 %v1130
        %v1217 = vunpack.c.l.b16 %v1131
        %v1218 = vunpack.c.l.b16 %v1132
        %v1219 = vunpack.c.l.b16 %v1133
        %v1220 = vunpack.c.l.b16 %v1134
        %v1221 = vunpack.c.l.b16 %v1135
        %v1222 = vunpack.c.l.b16 %v1136
        %v1223 = vunpack.c.l.b16 %v1137
        %v1224 = vunpack.c.l.b16 %v1138
        %v1225 = vunpack.c.l.b16 %v1139
        %v1226 = vunpack.c.l.b16 %v1140
        %v1227 = vunpack.c.l.b16 %v1141
        %v1228 = vpack.c.b16 %v1197, %v1196
        %v1229 = vpack.c.b16 %v1199, %v1198
        %v1230 = vpack.c.b16 %v1201, %v1200
        %v1231 = vpack.c.b16 %v1203, %v1202
        %v1232 = vpack.c.b16 %v1205, %v1204
        %v1233 = vpack.c.b16 %v1207, %v1206
        %v1234 = vpack.c.b16 %v1209, %v1208
        %v1235 = vpack.c.b16 %v1211, %v1210
        %v1236 = vpack.c.b16 %v1213, %v1212
        %v1237 = vpack.c.b16 %v1215, %v1214
        %v1238 = vpack.c.b16 %v1217, %v1216
        %v1239 = vpack.c.b16 %v1219, %v1218
        %v1240 = vpack.c.b16 %v1221, %v1220
        %v1241 = vpack.c.b16 %v1223, %v1222
        %v1242 = vpack.c.b16 %v1225, %v1224
        %v1243 = vpack.c.b16 %v1227, %v1226
        %v1276 = vunpack.c.l.b16 %v1142
        %v1277 = vunpack.c.h.b16 %v1142
        %v1278 = vunpack.c.l.b16 %v1143
        %v1279 = vunpack.c.h.b16 %v1143
        %v1280 = vunpack.c.l.b16 %v1144
        %v1281 = vunpack.c.h.b16 %v1144
        %v1282 = vunpack.c.l.b16 %v1145
        %v1283 = vunpack.c.h.b16 %v1145
        %v1284 = vunpack.c.l.b16 %v1146
        %v1285 = vunpack.c.h.b16 %v1146
        %v1286 = vunpack.c.l.b16 %v1147
        %v1287 = vunpack.c.h.b16 %v1147
        %v1288 = vunpack.c.l.b16 %v1148
        %v1289 = vunpack.c.h.b16 %v1148
        %v1290 = vunpack.c.l.b16 %v1149
        %v1291 = vunpack.c.h.b16 %v1149
        %v1292 = vunpack.c.l.b16 %v1150
        %v1293 = vunpack.c.h.b16 %v1150
        %v1294 = vunpack.c.l.b16 %v1151
        %v1295 = vunpack.c.h.b16 %v1151
        %v1296 = vunpack.c.l.b16 %v1152
        %v1297 = vunpack.c.h.b16 %v1152
        %v1298 = vunpack.c.l.b16 %v1153
        %v1299 = vunpack.c.h.b16 %v1153
        %v1300 = vunpack.c.l.b16 %v1154
        %v1301 = vunpack.c.h.b16 %v1154
        %v1302 = vunpack.c.l.b16 %v1155
        %v1303 = vunpack.c.h.b16 %v1155
        %v1304 = vunpack.c.l.b16 %v1156
        %v1305 = vunpack.c.h.b16 %v1156
        %v1306 = vunpack.c.l.b16 %v1157
        %v1307 = vunpack.c.h.b16 %v1157
        %v1308 = vpack.c.b16 %v1278, %v1276
        %v1309 = vpack.c.b16 %v1279, %v1277
        %v1310 = vpack.c.b16 %v1282, %v1280
        %v1311 = vpack.c.b16 %v1283, %v1281
        %v1312 = vpack.c.b16 %v1286, %v1284
        %v1313 = vpack.c.b16 %v1287, %v1285
        %v1314 = vpack.c.b16 %v1290, %v1288
        %v1315 = vpack.c.b16 %v1291, %v1289
        %v1316 = vpack.c.b16 %v1294, %v1292
        %v1317 = vpack.c.b16 %v1295, %v1293
        %v1318 = vpack.c.b16 %v1298, %v1296
        %v1319 = vpack.c.b16 %v1299, %v1297
        %v1320 = vpack.c.b16 %v1302, %v1300
        %v1321 = vpack.c.b16 %v1303, %v1301
        %v1322 = vpack.c.b16 %v1306, %v1304
        %v1323 = vpack.c.b16 %v1307, %v1305
        %1340 = vmatpush.bf16.msra.mxu0 %v1322
        %1341 = vmatpush.bf16.msra.mxu0 %v1320
        %1342 = vmatpush.bf16.msra.mxu0 %v1318
        %1343 = vmatpush.bf16.msra.mxu0 %v1316
        %1344 = vmatpush.bf16.msra.mxu0 %v1314
        %1345 = vmatpush.bf16.msra.mxu0 %v1312
        %1346 = vmatpush.bf16.msra.mxu0 %v1310
        %1347 = vmatpush.bf16.msra.mxu0 %v1308
        %1348 = vmatmul.bf16.gmra.mxu0 %v1228
        %v1349 = vpop.f32.mrf.mxu0
        %v1350 = vadd.f32 %v1160, %v1349
        %v1351 = vpop.f32.mrf.mxu0
        %v1352 = vadd.f32 %v1160, %v1351
        %1353 = vmatmul.bf16.gmra.mxu0 %v1229
        %v1354 = vpop.f32.mrf.mxu0
        %v1355 = vadd.f32 %v1160, %v1354
        %v1356 = vpop.f32.mrf.mxu0
        %v1357 = vadd.f32 %v1160, %v1356
        %1358 = vmatmul.bf16.gmra.mxu0 %v1230
        %v1359 = vpop.f32.mrf.mxu0
        %v1360 = vadd.f32 %v1160, %v1359
        %v1361 = vpop.f32.mrf.mxu0
        %v1362 = vadd.f32 %v1160, %v1361
        %1363 = vmatmul.bf16.gmra.mxu0 %v1231
        %v1364 = vpop.f32.mrf.mxu0
        %v1365 = vadd.f32 %v1160, %v1364
        %v1366 = vpop.f32.mrf.mxu0
        %v1367 = vadd.f32 %v1160, %v1366
        %1368 = vmatmul.bf16.gmra.mxu0 %v1232
        %v1369 = vpop.f32.mrf.mxu0
        %v1370 = vadd.f32 %v1160, %v1369
        %v1371 = vpop.f32.mrf.mxu0
        %v1372 = vadd.f32 %v1160, %v1371
        %1373 = vmatmul.bf16.gmra.mxu0 %v1233
        %v1374 = vpop.f32.mrf.mxu0
        %v1375 = vadd.f32 %v1160, %v1374
        %v1376 = vpop.f32.mrf.mxu0
        %v1377 = vadd.f32 %v1160, %v1376
        %1378 = vmatmul.bf16.gmra.mxu0 %v1234
        %v1379 = vpop.f32.mrf.mxu0
        %v1380 = vadd.f32 %v1160, %v1379
        %v1381 = vpop.f32.mrf.mxu0
        %v1382 = vadd.f32 %v1160, %v1381
        %1383 = vmatmul.bf16.gmra.mxu0 %v1235
        %v1384 = vpop.f32.mrf.mxu0
        %v1385 = vadd.f32 %v1160, %v1384
        %v1386 = vpop.f32.mrf.mxu0
        %v1387 = vadd.f32 %v1160, %v1386
        %1388 = vmatmul.bf16.gmra.mxu0 %v1236
        %v1389 = vpop.f32.mrf.mxu0
        %v1390 = vadd.f32 %v1160, %v1389
        %v1391 = vpop.f32.mrf.mxu0
        %v1392 = vadd.f32 %v1160, %v1391
        %1393 = vmatmul.bf16.gmra.mxu0 %v1237
        %v1394 = vpop.f32.mrf.mxu0
        %v1395 = vadd.f32 %v1160, %v1394
        %v1396 = vpop.f32.mrf.mxu0
        %v1397 = vadd.f32 %v1160, %v1396
        %1398 = vmatmul.bf16.gmra.mxu0 %v1238
        %v1399 = vpop.f32.mrf.mxu0
        %v1400 = vadd.f32 %v1160, %v1399
        %v1401 = vpop.f32.mrf.mxu0
        %v1402 = vadd.f32 %v1160, %v1401
        %1403 = vmatmul.bf16.gmra.mxu0 %v1239
        %v1404 = vpop.f32.mrf.mxu0
        %v1405 = vadd.f32 %v1160, %v1404
        %v1406 = vpop.f32.mrf.mxu0
        %v1407 = vadd.f32 %v1160, %v1406
        %1408 = vmatmul.bf16.gmra.mxu0 %v1240
        %v1409 = vpop.f32.mrf.mxu0
        %v1410 = vadd.f32 %v1160, %v1409
        %v1411 = vpop.f32.mrf.mxu0
        %v1412 = vadd.f32 %v1160, %v1411
        %1413 = vmatmul.bf16.gmra.mxu0 %v1241
        %v1414 = vpop.f32.mrf.mxu0
        %v1415 = vadd.f32 %v1160, %v1414
        %v1416 = vpop.f32.mrf.mxu0
        %v1417 = vadd.f32 %v1160, %v1416
        %1418 = vmatmul.bf16.gmra.mxu0 %v1242
        %v1419 = vpop.f32.mrf.mxu0
        %v1420 = vadd.f32 %v1160, %v1419
        %v1421 = vpop.f32.mrf.mxu0
        %v1422 = vadd.f32 %v1160, %v1421
        %1423 = vmatmul.bf16.gmra.mxu0 %v1243
        %v1424 = vpop.f32.mrf.mxu0
        %v1425 = vadd.f32 %v1160, %v1424
        %v1426 = vpop.f32.mrf.mxu0
        %v1427 = vadd.f32 %v1160, %v1426
        %1428 = vdwg.mxu0
        %1429 = vmatpush.bf16.msra.mxu0 %v1323
        %1430 = vmatpush.bf16.msra.mxu0 %v1321
        %1431 = vmatpush.bf16.msra.mxu0 %v1319
        %1432 = vmatpush.bf16.msra.mxu0 %v1317
        %1433 = vmatpush.bf16.msra.mxu0 %v1315
        %1434 = vmatpush.bf16.msra.mxu0 %v1313
        %1435 = vmatpush.bf16.msra.mxu0 %v1311
        %1436 = vmatpush.bf16.msra.mxu0 %v1309
        %1437 = vmatmul.bf16.gmra.mxu0 %v1228
        %v1438 = vpop.f32.mrf.mxu0
        %v1439 = vadd.f32 %v1161, %v1438
        %v1440 = vpop.f32.mrf.mxu0
        %v1441 = vadd.f32 %v1161, %v1440
        %1442 = vmatmul.bf16.gmra.mxu0 %v1229
        %v1443 = vpop.f32.mrf.mxu0
        %v1444 = vadd.f32 %v1161, %v1443
        %v1445 = vpop.f32.mrf.mxu0
        %v1446 = vadd.f32 %v1161, %v1445
        %1447 = vmatmul.bf16.gmra.mxu0 %v1230
        %v1448 = vpop.f32.mrf.mxu0
        %v1449 = vadd.f32 %v1161, %v1448
        %v1450 = vpop.f32.mrf.mxu0
        %v1451 = vadd.f32 %v1161, %v1450
        %1452 = vmatmul.bf16.gmra.mxu0 %v1231
        %v1453 = vpop.f32.mrf.mxu0
        %v1454 = vadd.f32 %v1161, %v1453
        %v1455 = vpop.f32.mrf.mxu0
        %v1456 = vadd.f32 %v1161, %v1455
        %1457 = vmatmul.bf16.gmra.mxu0 %v1232
        %v1458 = vpop.f32.mrf.mxu0
        %v1459 = vadd.f32 %v1161, %v1458
        %v1460 = vpop.f32.mrf.mxu0
        %v1461 = vadd.f32 %v1161, %v1460
        %1462 = vmatmul.bf16.gmra.mxu0 %v1233
        %v1463 = vpop.f32.mrf.mxu0
        %v1464 = vadd.f32 %v1161, %v1463
        %v1465 = vpop.f32.mrf.mxu0
        %v1466 = vadd.f32 %v1161, %v1465
        %1467 = vmatmul.bf16.gmra.mxu0 %v1234
        %v1468 = vpop.f32.mrf.mxu0
        %v1469 = vadd.f32 %v1161, %v1468
        %v1470 = vpop.f32.mrf.mxu0
        %v1471 = vadd.f32 %v1161, %v1470
        %1472 = vmatmul.bf16.gmra.mxu0 %v1235
        %v1473 = vpop.f32.mrf.mxu0
        %v1474 = vadd.f32 %v1161, %v1473
        %v1475 = vpop.f32.mrf.mxu0
        %v1476 = vadd.f32 %v1161, %v1475
        %1477 = vmatmul.bf16.gmra.mxu0 %v1236
        %v1478 = vpop.f32.mrf.mxu0
        %v1479 = vadd.f32 %v1161, %v1478
        %v1480 = vpop.f32.mrf.mxu0
        %v1481 = vadd.f32 %v1161, %v1480
        %1482 = vmatmul.bf16.gmra.mxu0 %v1237
        %v1483 = vpop.f32.mrf.mxu0
        %v1484 = vadd.f32 %v1161, %v1483
        %v1485 = vpop.f32.mrf.mxu0
        %v1486 = vadd.f32 %v1161, %v1485
        %1487 = vmatmul.bf16.gmra.mxu0 %v1238
        %v1488 = vpop.f32.mrf.mxu0
        %v1489 = vadd.f32 %v1161, %v1488
        %v1490 = vpop.f32.mrf.mxu0
        %v1491 = vadd.f32 %v1161, %v1490
        %1492 = vmatmul.bf16.gmra.mxu0 %v1239
        %v1493 = vpop.f32.mrf.mxu0
        %v1494 = vadd.f32 %v1161, %v1493
        %v1495 = vpop.f32.mrf.mxu0
        %v1496 = vadd.f32 %v1161, %v1495
        %1497 = vmatmul.bf16.gmra.mxu0 %v1240
        %v1498 = vpop.f32.mrf.mxu0
        %v1499 = vadd.f32 %v1161, %v1498
        %v1500 = vpop.f32.mrf.mxu0
        %v1501 = vadd.f32 %v1161, %v1500
        %1502 = vmatmul.bf16.gmra.mxu0 %v1241
        %v1503 = vpop.f32.mrf.mxu0
        %v1504 = vadd.f32 %v1161, %v1503
        %v1505 = vpop.f32.mrf.mxu0
        %v1506 = vadd.f32 %v1161, %v1505
        %1507 = vmatmul.bf16.gmra.mxu0 %v1242
        %v1508 = vpop.f32.mrf.mxu0
        %v1509 = vadd.f32 %v1161, %v1508
        %v1510 = vpop.f32.mrf.mxu0
        %v1511 = vadd.f32 %v1161, %v1510
        %1512 = vmatmul.bf16.gmra.mxu0 %v1243
        %v1513 = vpop.f32.mrf.mxu0
        %v1514 = vadd.f32 %v1161, %v1513
        %v1515 = vpop.f32.mrf.mxu0
        %v1516 = vadd.f32 %v1161, %v1515
        %1517 = vdwg.mxu0
        %v1518 = vmax.f32 %v1350, 0.0
        %v1519 = vmax.f32 %v1439, 0.0
        %v1520 = vmax.f32 %v1352, 0.0
        %v1521 = vmax.f32 %v1441, 0.0
        %v1522 = vmax.f32 %v1355, 0.0
        %v1523 = vmax.f32 %v1444, 0.0
        %v1524 = vmax.f32 %v1357, 0.0
        %v1525 = vmax.f32 %v1446, 0.0
        %v1526 = vmax.f32 %v1360, 0.0
        %v1527 = vmax.f32 %v1449, 0.0
        %v1528 = vmax.f32 %v1362, 0.0
        %v1529 = vmax.f32 %v1451, 0.0
        %v1530 = vmax.f32 %v1365, 0.0
        %v1531 = vmax.f32 %v1454, 0.0
        %v1532 = vmax.f32 %v1367, 0.0
        %v1533 = vmax.f32 %v1456, 0.0
        %v1534 = vmax.f32 %v1370, 0.0
        %v1535 = vmax.f32 %v1459, 0.0
        %v1536 = vmax.f32 %v1372, 0.0
        %v1537 = vmax.f32 %v1461, 0.0
        %v1538 = vmax.f32 %v1375, 0.0
        %v1539 = vmax.f32 %v1464, 0.0
        %v1540 = vmax.f32 %v1377, 0.0
        %v1541 = vmax.f32 %v1466, 0.0
        %v1542 = vmax.f32 %v1380, 0.0
        %v1543 = vmax.f32 %v1469, 0.0
        %v1544 = vmax.f32 %v1382, 0.0
        %v1545 = vmax.f32 %v1471, 0.0
        %v1546 = vmax.f32 %v1385, 0.0
        %v1547 = vmax.f32 %v1474, 0.0
        %v1548 = vmax.f32 %v1387, 0.0
        %v1549 = vmax.f32 %v1476, 0.0
        %v1550 = vmax.f32 %v1390, 0.0
        %v1551 = vmax.f32 %v1479, 0.0
        %v1552 = vmax.f32 %v1392, 0.0
        %v1553 = vmax.f32 %v1481, 0.0
        %v1554 = vmax.f32 %v1395, 0.0
        %v1555 = vmax.f32 %v1484, 0.0
        %v1556 = vmax.f32 %v1397, 0.0
        %v1557 = vmax.f32 %v1486, 0.0
        %v1558 = vmax.f32 %v1400, 0.0
        %v1559 = vmax.f32 %v1489, 0.0
        %v1560 = vmax.f32 %v1402, 0.0
        %v1561 = vmax.f32 %v1491, 0.0
        %v1562 = vmax.f32 %v1405, 0.0
        %v1563 = vmax.f32 %v1494, 0.0
        %v1564 = vmax.f32 %v1407, 0.0
        %v1565 = vmax.f32 %v1496, 0.0
        %v1566 = vmax.f32 %v1410, 0.0
        %v1567 = vmax.f32 %v1499, 0.0
        %v1568 = vmax.f32 %v1412, 0.0
        %v1569 = vmax.f32 %v1501, 0.0
        %v1570 = vmax.f32 %v1415, 0.0
        %v1571 = vmax.f32 %v1504, 0.0
        %v1572 = vmax.f32 %v1417, 0.0
        %v1573 = vmax.f32 %v1506, 0.0
        %v1574 = vmax.f32 %v1420, 0.0
        %v1575 = vmax.f32 %v1509, 0.0
        %v1576 = vmax.f32 %v1422, 0.0
        %v1577 = vmax.f32 %v1511, 0.0
        %v1578 = vmax.f32 %v1425, 0.0
        %v1579 = vmax.f32 %v1514, 0.0
        %v1580 = vmax.f32 %v1427, 0.0
        %v1581 = vmax.f32 %v1516, 0.0
        %v1582 = vpack.c.bf16 %v1520, %v1518
        %v1583 = vpack.c.bf16 %v1521, %v1519
        %v1584 = vpack.c.bf16 %v1524, %v1522
        %v1585 = vpack.c.bf16 %v1525, %v1523
        %v1586 = vpack.c.bf16 %v1528, %v1526
        %v1587 = vpack.c.bf16 %v1529, %v1527
        %v1588 = vpack.c.bf16 %v1532, %v1530
        %v1589 = vpack.c.bf16 %v1533, %v1531
        %v1590 = vpack.c.bf16 %v1536, %v1534
        %v1591 = vpack.c.bf16 %v1537, %v1535
        %v1592 = vpack.c.bf16 %v1540, %v1538
        %v1593 = vpack.c.bf16 %v1541, %v1539
        %v1594 = vpack.c.bf16 %v1544, %v1542
        %v1595 = vpack.c.bf16 %v1545, %v1543
        %v1596 = vpack.c.bf16 %v1548, %v1546
        %v1597 = vpack.c.bf16 %v1549, %v1547
        %v1598 = vpack.c.bf16 %v1552, %v1550
        %v1599 = vpack.c.bf16 %v1553, %v1551
        %v1600 = vpack.c.bf16 %v1556, %v1554
        %v1601 = vpack.c.bf16 %v1557, %v1555
        %v1602 = vpack.c.bf16 %v1560, %v1558
        %v1603 = vpack.c.bf16 %v1561, %v1559
        %v1604 = vpack.c.bf16 %v1564, %v1562
        %v1605 = vpack.c.bf16 %v1565, %v1563
        %v1606 = vpack.c.bf16 %v1568, %v1566
        %v1607 = vpack.c.bf16 %v1569, %v1567
        %v1608 = vpack.c.bf16 %v1572, %v1570
        %v1609 = vpack.c.bf16 %v1573, %v1571
        %v1610 = vpack.c.bf16 %v1576, %v1574
        %v1611 = vpack.c.bf16 %v1577, %v1575
        %v1612 = vpack.c.bf16 %v1580, %v1578
        %v1613 = vpack.c.bf16 %v1581, %v1579
        %v1614 = vld [vmem:[%s5] sm:$0xff]
        %v1615 = vld [vmem:[%s5 + $0x8] sm:$0xff]
        %v1616 = vld [vmem:[%s5 + $0x10] sm:$0xff]
        %v1617 = vld [vmem:[%s5 + $0x18] sm:$0xff]
        %v1618 = vld [vmem:[%s5 + $0x20] sm:$0xff]
        %v1619 = vld [vmem:[%s5 + $0x28] sm:$0xff]
        %v1620 = vld [vmem:[%s5 + $0x30] sm:$0xff]
        %v1621 = vld [vmem:[%s5 + $0x38] sm:$0xff]
        %v1622 = vld [vmem:[%s5 + $0x40] sm:$0xff]
        %v1623 = vld [vmem:[%s5 + $0x48] sm:$0xff]
        %v1624 = vld [vmem:[%s5 + $0x50] sm:$0xff]
        %v1625 = vld [vmem:[%s5 + $0x58] sm:$0xff]
        %v1626 = vld [vmem:[%s5 + $0x60] sm:$0xff]
        %v1627 = vld [vmem:[%s5 + $0x68] sm:$0xff]
        %v1628 = vld [vmem:[%s5 + $0x70] sm:$0xff]
        %v1629 = vld [vmem:[%s5 + $0x78] sm:$0xff]
        %v1630 = vld [vmem:[%s5 + $0x80] sm:$0xff]
        %v1631 = vld [vmem:[%s5 + $0x88] sm:$0xff]
        %v1632 = vld [vmem:[%s5 + $0x90] sm:$0xff]
        %v1633 = vld [vmem:[%s5 + $0x98] sm:$0xff]
        %v1634 = vld [vmem:[%s5 + $0xa0] sm:$0xff]
        %v1635 = vld [vmem:[%s5 + $0xa8] sm:$0xff]
        %v1636 = vld [vmem:[%s5 + $0xb0] sm:$0xff]
        %v1637 = vld [vmem:[%s5 + $0xb8] sm:$0xff]
        %v1638 = vld [vmem:[%s5 + $0xc0] sm:$0xff]
        %v1639 = vld [vmem:[%s5 + $0xc8] sm:$0xff]
        %v1640 = vld [vmem:[%s5 + $0xd0] sm:$0xff]
        %v1641 = vld [vmem:[%s5 + $0xd8] sm:$0xff]
        %v1642 = vld [vmem:[%s5 + $0xe0] sm:$0xff]
        %v1643 = vld [vmem:[%s5 + $0xe8] sm:$0xff]
        %v1644 = vld [vmem:[%s5 + $0xf0] sm:$0xff]
        %v1645 = vld [vmem:[%s5 + $0xf8] sm:$0xff]
        %v1646 = vld [vmem:[%s6] sm:$0x3]
        %v1648 = vperm.slane %v1646, 0
        %v1649 = vperm.slane %v1646, 1
        %v1684 = vunpack.c.l.b16 %v1614
        %v1685 = vunpack.c.h.b16 %v1614
        %v1686 = vunpack.c.l.b16 %v1615
        %v1687 = vunpack.c.h.b16 %v1615
        %v1688 = vunpack.c.l.b16 %v1616
        %v1689 = vunpack.c.h.b16 %v1616
        %v1690 = vunpack.c.l.b16 %v1617
        %v1691 = vunpack.c.h.b16 %v1617
        %v1692 = vunpack.c.l.b16 %v1618
        %v1693 = vunpack.c.h.b16 %v1618
        %v1694 = vunpack.c.l.b16 %v1619
        %v1695 = vunpack.c.h.b16 %v1619
        %v1696 = vunpack.c.l.b16 %v1620
        %v1697 = vunpack.c.h.b16 %v1620
        %v1698 = vunpack.c.l.b16 %v1621
        %v1699 = vunpack.c.h.b16 %v1621
        %v1700 = vunpack.c.l.b16 %v1622
        %v1701 = vunpack.c.h.b16 %v1622
        %v1702 = vunpack.c.l.b16 %v1623
        %v1703 = vunpack.c.h.b16 %v1623
        %v1704 = vunpack.c.l.b16 %v1624
        %v1705 = vunpack.c.h.b16 %v1624
        %v1706 = vunpack.c.l.b16 %v1625
        %v1707 = vunpack.c.h.b16 %v1625
        %v1708 = vunpack.c.l.b16 %v1626
        %v1709 = vunpack.c.h.b16 %v1626
        %v1710 = vunpack.c.l.b16 %v1627
        %v1711 = vunpack.c.h.b16 %v1627
        %v1712 = vunpack.c.l.b16 %v1628
        %v1713 = vunpack.c.h.b16 %v1628
        %v1714 = vunpack.c.l.b16 %v1629
        %v1715 = vunpack.c.h.b16 %v1629
        %v1716 = vunpack.c.l.b16 %v1630
        %v1717 = vunpack.c.h.b16 %v1630
        %v1718 = vunpack.c.l.b16 %v1631
        %v1719 = vunpack.c.h.b16 %v1631
        %v1720 = vunpack.c.l.b16 %v1632
        %v1721 = vunpack.c.h.b16 %v1632
        %v1722 = vunpack.c.l.b16 %v1633
        %v1723 = vunpack.c.h.b16 %v1633
        %v1724 = vunpack.c.l.b16 %v1634
        %v1725 = vunpack.c.h.b16 %v1634
        %v1726 = vunpack.c.l.b16 %v1635
        %v1727 = vunpack.c.h.b16 %v1635
        %v1728 = vunpack.c.l.b16 %v1636
        %v1729 = vunpack.c.h.b16 %v1636
        %v1730 = vunpack.c.l.b16 %v1637
        %v1731 = vunpack.c.h.b16 %v1637
        %v1732 = vunpack.c.l.b16 %v1638
        %v1733 = vunpack.c.h.b16 %v1638
        %v1734 = vunpack.c.l.b16 %v1639
        %v1735 = vunpack.c.h.b16 %v1639
        %v1736 = vunpack.c.l.b16 %v1640
        %v1737 = vunpack.c.h.b16 %v1640
        %v1738 = vunpack.c.l.b16 %v1641
        %v1739 = vunpack.c.h.b16 %v1641
        %v1740 = vunpack.c.l.b16 %v1642
        %v1741 = vunpack.c.h.b16 %v1642
        %v1742 = vunpack.c.l.b16 %v1643
        %v1743 = vunpack.c.h.b16 %v1643
        %v1744 = vunpack.c.l.b16 %v1644
        %v1745 = vunpack.c.h.b16 %v1644
        %v1746 = vunpack.c.l.b16 %v1645
        %v1747 = vunpack.c.h.b16 %v1645
        %v1748 = vpack.c.b16 %v1686, %v1684
        %v1749 = vpack.c.b16 %v1687, %v1685
        %v1750 = vpack.c.b16 %v1690, %v1688
        %v1751 = vpack.c.b16 %v1691, %v1689
        %v1752 = vpack.c.b16 %v1694, %v1692
        %v1753 = vpack.c.b16 %v1695, %v1693
        %v1754 = vpack.c.b16 %v1698, %v1696
        %v1755 = vpack.c.b16 %v1699, %v1697
        %v1756 = vpack.c.b16 %v1702, %v1700
        %v1757 = vpack.c.b16 %v1703, %v1701
        %v1758 = vpack.c.b16 %v1706, %v1704
        %v1759 = vpack.c.b16 %v1707, %v1705
        %v1760 = vpack.c.b16 %v1710, %v1708
        %v1761 = vpack.c.b16 %v1711, %v1709
        %v1762 = vpack.c.b16 %v1714, %v1712
        %v1763 = vpack.c.b16 %v1715, %v1713
        %v1764 = vpack.c.b16 %v1718, %v1716
        %v1765 = vpack.c.b16 %v1719, %v1717
        %v1766 = vpack.c.b16 %v1722, %v1720
        %v1767 = vpack.c.b16 %v1723, %v1721
        %v1768 = vpack.c.b16 %v1726, %v1724
        %v1769 = vpack.c.b16 %v1727, %v1725
        %v1770 = vpack.c.b16 %v1730, %v1728
        %v1771 = vpack.c.b16 %v1731, %v1729
        %v1772 = vpack.c.b16 %v1734, %v1732
        %v1773 = vpack.c.b16 %v1735, %v1733
        %v1774 = vpack.c.b16 %v1738, %v1736
        %v1775 = vpack.c.b16 %v1739, %v1737
        %v1776 = vpack.c.b16 %v1742, %v1740
        %v1777 = vpack.c.b16 %v1743, %v1741
        %v1778 = vpack.c.b16 %v1746, %v1744
        %v1779 = vpack.c.b16 %v1747, %v1745
        %1812 = vmatpush.bf16.msra.mxu0 %v1762
        %1813 = vmatpush.bf16.msra.mxu0 %v1760
        %1814 = vmatpush.bf16.msra.mxu0 %v1758
        %1815 = vmatpush.bf16.msra.mxu0 %v1756
        %1816 = vmatpush.bf16.msra.mxu0 %v1754
        %1817 = vmatpush.bf16.msra.mxu0 %v1752
        %1818 = vmatpush.bf16.msra.mxu0 %v1750
        %1819 = vmatpush.bf16.msra.mxu0 %v1748
        %1820 = vmatmul.bf16.gmra.mxu0 %v1582
        %v1821 = vpop.f32.mrf.mxu0
        %v1822 = vadd.f32 %v1648, %v1821
        %v1823 = vpop.f32.mrf.mxu0
        %v1824 = vadd.f32 %v1648, %v1823
        %1825 = vmatmul.bf16.gmra.mxu0 %v1584
        %v1826 = vpop.f32.mrf.mxu0
        %v1827 = vadd.f32 %v1648, %v1826
        %v1828 = vpop.f32.mrf.mxu0
        %v1829 = vadd.f32 %v1648, %v1828
        %1830 = vmatmul.bf16.gmra.mxu0 %v1586
        %v1831 = vpop.f32.mrf.mxu0
        %v1832 = vadd.f32 %v1648, %v1831
        %v1833 = vpop.f32.mrf.mxu0
        %v1834 = vadd.f32 %v1648, %v1833
        %1835 = vmatmul.bf16.gmra.mxu0 %v1588
        %v1836 = vpop.f32.mrf.mxu0
        %v1837 = vadd.f32 %v1648, %v1836
        %v1838 = vpop.f32.mrf.mxu0
        %v1839 = vadd.f32 %v1648, %v1838
        %1840 = vmatmul.bf16.gmra.mxu0 %v1590
        %v1841 = vpop.f32.mrf.mxu0
        %v1842 = vadd.f32 %v1648, %v1841
        %v1843 = vpop.f32.mrf.mxu0
        %v1844 = vadd.f32 %v1648, %v1843
        %1845 = vmatmul.bf16.gmra.mxu0 %v1592
        %v1846 = vpop.f32.mrf.mxu0
        %v1847 = vadd.f32 %v1648, %v1846
        %v1848 = vpop.f32.mrf.mxu0
        %v1849 = vadd.f32 %v1648, %v1848
        %1850 = vmatmul.bf16.gmra.mxu0 %v1594
        %v1851 = vpop.f32.mrf.mxu0
        %v1852 = vadd.f32 %v1648, %v1851
        %v1853 = vpop.f32.mrf.mxu0
        %v1854 = vadd.f32 %v1648, %v1853
        %1855 = vmatmul.bf16.gmra.mxu0 %v1596
        %v1856 = vpop.f32.mrf.mxu0
        %v1857 = vadd.f32 %v1648, %v1856
        %v1858 = vpop.f32.mrf.mxu0
        %v1859 = vadd.f32 %v1648, %v1858
        %1860 = vmatmul.bf16.gmra.mxu0 %v1598
        %v1861 = vpop.f32.mrf.mxu0
        %v1862 = vadd.f32 %v1648, %v1861
        %v1863 = vpop.f32.mrf.mxu0
        %v1864 = vadd.f32 %v1648, %v1863
        %1865 = vmatmul.bf16.gmra.mxu0 %v1600
        %v1866 = vpop.f32.mrf.mxu0
        %v1867 = vadd.f32 %v1648, %v1866
        %v1868 = vpop.f32.mrf.mxu0
        %v1869 = vadd.f32 %v1648, %v1868
        %1870 = vmatmul.bf16.gmra.mxu0 %v1602
        %v1871 = vpop.f32.mrf.mxu0
        %v1872 = vadd.f32 %v1648, %v1871
        %v1873 = vpop.f32.mrf.mxu0
        %v1874 = vadd.f32 %v1648, %v1873
        %1875 = vmatmul.bf16.gmra.mxu0 %v1604
        %v1876 = vpop.f32.mrf.mxu0
        %v1877 = vadd.f32 %v1648, %v1876
        %v1878 = vpop.f32.mrf.mxu0
        %v1879 = vadd.f32 %v1648, %v1878
        %1880 = vmatmul.bf16.gmra.mxu0 %v1606
        %v1881 = vpop.f32.mrf.mxu0
        %v1882 = vadd.f32 %v1648, %v1881
        %v1883 = vpop.f32.mrf.mxu0
        %v1884 = vadd.f32 %v1648, %v1883
        %1885 = vmatmul.bf16.gmra.mxu0 %v1608
        %v1886 = vpop.f32.mrf.mxu0
        %v1887 = vadd.f32 %v1648, %v1886
        %v1888 = vpop.f32.mrf.mxu0
        %v1889 = vadd.f32 %v1648, %v1888
        %1890 = vmatmul.bf16.gmra.mxu0 %v1610
        %v1891 = vpop.f32.mrf.mxu0
        %v1892 = vadd.f32 %v1648, %v1891
        %v1893 = vpop.f32.mrf.mxu0
        %v1894 = vadd.f32 %v1648, %v1893
        %1895 = vmatmul.bf16.gmra.mxu0 %v1612
        %v1896 = vpop.f32.mrf.mxu0
        %v1897 = vadd.f32 %v1648, %v1896
        %v1898 = vpop.f32.mrf.mxu0
        %v1899 = vadd.f32 %v1648, %v1898
        %1900 = vdwg.mxu0
        %1901 = vmatpush.bf16.msra.mxu0 %v1778
        %1902 = vmatpush.bf16.msra.mxu0 %v1776
        %1903 = vmatpush.bf16.msra.mxu0 %v1774
        %1904 = vmatpush.bf16.msra.mxu0 %v1772
        %1905 = vmatpush.bf16.msra.mxu0 %v1770
        %1906 = vmatpush.bf16.msra.mxu0 %v1768
        %1907 = vmatpush.bf16.msra.mxu0 %v1766
        %1908 = vmatpush.bf16.msra.mxu0 %v1764
        %1909 = vmatmul.bf16.gmra.mxu0 %v1583
        %v1910 = vpop.f32.mrf.mxu0
        %v1911 = vadd.f32 %v1822, %v1910
        %v1912 = vpop.f32.mrf.mxu0
        %v1913 = vadd.f32 %v1824, %v1912
        %1914 = vmatmul.bf16.gmra.mxu0 %v1585
        %v1915 = vpop.f32.mrf.mxu0
        %v1916 = vadd.f32 %v1827, %v1915
        %v1917 = vpop.f32.mrf.mxu0
        %v1918 = vadd.f32 %v1829, %v1917
        %1919 = vmatmul.bf16.gmra.mxu0 %v1587
        %v1920 = vpop.f32.mrf.mxu0
        %v1921 = vadd.f32 %v1832, %v1920
        %v1922 = vpop.f32.mrf.mxu0
        %v1923 = vadd.f32 %v1834, %v1922
        %1924 = vmatmul.bf16.gmra.mxu0 %v1589
        %v1925 = vpop.f32.mrf.mxu0
        %v1926 = vadd.f32 %v1837, %v1925
        %v1927 = vpop.f32.mrf.mxu0
        %v1928 = vadd.f32 %v1839, %v1927
        %1929 = vmatmul.bf16.gmra.mxu0 %v1591
        %v1930 = vpop.f32.mrf.mxu0
        %v1931 = vadd.f32 %v1842, %v1930
        %v1932 = vpop.f32.mrf.mxu0
        %v1933 = vadd.f32 %v1844, %v1932
        %1934 = vmatmul.bf16.gmra.mxu0 %v1593
        %v1935 = vpop.f32.mrf.mxu0
        %v1936 = vadd.f32 %v1847, %v1935
        %v1937 = vpop.f32.mrf.mxu0
        %v1938 = vadd.f32 %v1849, %v1937
        %1939 = vmatmul.bf16.gmra.mxu0 %v1595
        %v1940 = vpop.f32.mrf.mxu0
        %v1941 = vadd.f32 %v1852, %v1940
        %v1942 = vpop.f32.mrf.mxu0
        %v1943 = vadd.f32 %v1854, %v1942
        %1944 = vmatmul.bf16.gmra.mxu0 %v1597
        %v1945 = vpop.f32.mrf.mxu0
        %v1946 = vadd.f32 %v1857, %v1945
        %v1947 = vpop.f32.mrf.mxu0
        %v1948 = vadd.f32 %v1859, %v1947
        %1949 = vmatmul.bf16.gmra.mxu0 %v1599
        %v1950 = vpop.f32.mrf.mxu0
        %v1951 = vadd.f32 %v1862, %v1950
        %v1952 = vpop.f32.mrf.mxu0
        %v1953 = vadd.f32 %v1864, %v1952
        %1954 = vmatmul.bf16.gmra.mxu0 %v1601
        %v1955 = vpop.f32.mrf.mxu0
        %v1956 = vadd.f32 %v1867, %v1955
        %v1957 = vpop.f32.mrf.mxu0
        %v1958 = vadd.f32 %v1869, %v1957
        %1959 = vmatmul.bf16.gmra.mxu0 %v1603
        %v1960 = vpop.f32.mrf.mxu0
        %v1961 = vadd.f32 %v1872, %v1960
        %v1962 = vpop.f32.mrf.mxu0
        %v1963 = vadd.f32 %v1874, %v1962
        %1964 = vmatmul.bf16.gmra.mxu0 %v1605
        %v1965 = vpop.f32.mrf.mxu0
        %v1966 = vadd.f32 %v1877, %v1965
        %v1967 = vpop.f32.mrf.mxu0
        %v1968 = vadd.f32 %v1879, %v1967
        %1969 = vmatmul.bf16.gmra.mxu0 %v1607
        %v1970 = vpop.f32.mrf.mxu0
        %v1971 = vadd.f32 %v1882, %v1970
        %v1972 = vpop.f32.mrf.mxu0
        %v1973 = vadd.f32 %v1884, %v1972
        %1974 = vmatmul.bf16.gmra.mxu0 %v1609
        %v1975 = vpop.f32.mrf.mxu0
        %v1976 = vadd.f32 %v1887, %v1975
        %v1977 = vpop.f32.mrf.mxu0
        %v1978 = vadd.f32 %v1889, %v1977
        %1979 = vmatmul.bf16.gmra.mxu0 %v1611
        %v1980 = vpop.f32.mrf.mxu0
        %v1981 = vadd.f32 %v1892, %v1980
        %v1982 = vpop.f32.mrf.mxu0
        %v1983 = vadd.f32 %v1894, %v1982
        %1984 = vmatmul.bf16.gmra.mxu0 %v1613
        %v1985 = vpop.f32.mrf.mxu0
        %v1986 = vadd.f32 %v1897, %v1985
        %v1987 = vpop.f32.mrf.mxu0
        %v1988 = vadd.f32 %v1899, %v1987
        %1989 = vdwg.mxu0
        %1990 = vmatpush.bf16.msra.mxu0 %v1763
        %1991 = vmatpush.bf16.msra.mxu0 %v1761
        %1992 = vmatpush.bf16.msra.mxu0 %v1759
        %1993 = vmatpush.bf16.msra.mxu0 %v1757
        %1994 = vmatpush.bf16.msra.mxu0 %v1755
        %1995 = vmatpush.bf16.msra.mxu0 %v1753
        %1996 = vmatpush.bf16.msra.mxu0 %v1751
        %1997 = vmatpush.bf16.msra.mxu0 %v1749
        %1998 = vmatmul.bf16.gmra.mxu0 %v1582
        %v1999 = vpop.f32.mrf.mxu0
        %v2000 = vadd.f32 %v1649, %v1999
        %v2001 = vpop.f32.mrf.mxu0
        %v2002 = vadd.f32 %v1649, %v2001
        %2003 = vmatmul.bf16.gmra.mxu0 %v1584
        %v2004 = vpop.f32.mrf.mxu0
        %v2005 = vadd.f32 %v1649, %v2004
        %v2006 = vpop.f32.mrf.mxu0
        %v2007 = vadd.f32 %v1649, %v2006
        %2008 = vmatmul.bf16.gmra.mxu0 %v1586
        %v2009 = vpop.f32.mrf.mxu0
        %v2010 = vadd.f32 %v1649, %v2009
        %v2011 = vpop.f32.mrf.mxu0
        %v2012 = vadd.f32 %v1649, %v2011
        %2013 = vmatmul.bf16.gmra.mxu0 %v1588
        %v2014 = vpop.f32.mrf.mxu0
        %v2015 = vadd.f32 %v1649, %v2014
        %v2016 = vpop.f32.mrf.mxu0
        %v2017 = vadd.f32 %v1649, %v2016
        %2018 = vmatmul.bf16.gmra.mxu0 %v1590
        %v2019 = vpop.f32.mrf.mxu0
        %v2020 = vadd.f32 %v1649, %v2019
        %v2021 = vpop.f32.mrf.mxu0
        %v2022 = vadd.f32 %v1649, %v2021
        %2023 = vmatmul.bf16.gmra.mxu0 %v1592
        %v2024 = vpop.f32.mrf.mxu0
        %v2025 = vadd.f32 %v1649, %v2024
        %v2026 = vpop.f32.mrf.mxu0
        %v2027 = vadd.f32 %v1649, %v2026
        %2028 = vmatmul.bf16.gmra.mxu0 %v1594
        %v2029 = vpop.f32.mrf.mxu0
        %v2030 = vadd.f32 %v1649, %v2029
        %v2031 = vpop.f32.mrf.mxu0
        %v2032 = vadd.f32 %v1649, %v2031
        %2033 = vmatmul.bf16.gmra.mxu0 %v1596
        %v2034 = vpop.f32.mrf.mxu0
        %v2035 = vadd.f32 %v1649, %v2034
        %v2036 = vpop.f32.mrf.mxu0
        %v2037 = vadd.f32 %v1649, %v2036
        %2038 = vmatmul.bf16.gmra.mxu0 %v1598
        %v2039 = vpop.f32.mrf.mxu0
        %v2040 = vadd.f32 %v1649, %v2039
        %v2041 = vpop.f32.mrf.mxu0
        %v2042 = vadd.f32 %v1649, %v2041
        %2043 = vmatmul.bf16.gmra.mxu0 %v1600
        %v2044 = vpop.f32.mrf.mxu0
        %v2045 = vadd.f32 %v1649, %v2044
        %v2046 = vpop.f32.mrf.mxu0
        %v2047 = vadd.f32 %v1649, %v2046
        %2048 = vmatmul.bf16.gmra.mxu0 %v1602
        %v2049 = vpop.f32.mrf.mxu0
        %v2050 = vadd.f32 %v1649, %v2049
        %v2051 = vpop.f32.mrf.mxu0
        %v2052 = vadd.f32 %v1649, %v2051
        %2053 = vmatmul.bf16.gmra.mxu0 %v1604
        %v2054 = vpop.f32.mrf.mxu0
        %v2055 = vadd.f32 %v1649, %v2054
        %v2056 = vpop.f32.mrf.mxu0
        %v2057 = vadd.f32 %v1649, %v2056
        %2058 = vmatmul.bf16.gmra.mxu0 %v1606
        %v2059 = vpop.f32.mrf.mxu0
        %v2060 = vadd.f32 %v1649, %v2059
        %v2061 = vpop.f32.mrf.mxu0
        %v2062 = vadd.f32 %v1649, %v2061
        %2063 = vmatmul.bf16.gmra.mxu0 %v1608
        %v2064 = vpop.f32.mrf.mxu0
        %v2065 = vadd.f32 %v1649, %v2064
        %v2066 = vpop.f32.mrf.mxu0
        %v2067 = vadd.f32 %v1649, %v2066
        %2068 = vmatmul.bf16.gmra.mxu0 %v1610
        %v2069 = vpop.f32.mrf.mxu0
        %v2070 = vadd.f32 %v1649, %v2069
        %v2071 = vpop.f32.mrf.mxu0
        %v2072 = vadd.f32 %v1649, %v2071
        %2073 = vmatmul.bf16.gmra.mxu0 %v1612
        %v2074 = vpop.f32.mrf.mxu0
        %v2075 = vadd.f32 %v1649, %v2074
        %v2076 = vpop.f32.mrf.mxu0
        %v2077 = vadd.f32 %v1649, %v2076
        %2078 = vdwg.mxu0
        %2079 = vmatpush.bf16.msra.mxu0 %v1779
        %2080 = vmatpush.bf16.msra.mxu0 %v1777
        %2081 = vmatpush.bf16.msra.mxu0 %v1775
        %2082 = vmatpush.bf16.msra.mxu0 %v1773
        %2083 = vmatpush.bf16.msra.mxu0 %v1771
        %2084 = vmatpush.bf16.msra.mxu0 %v1769
        %2085 = vmatpush.bf16.msra.mxu0 %v1767
        %2086 = vmatpush.bf16.msra.mxu0 %v1765
        %2087 = vmatmul.bf16.gmra.mxu0 %v1583
        %v2088 = vpop.f32.mrf.mxu0
        %v2089 = vadd.f32 %v2000, %v2088
        %v2090 = vpop.f32.mrf.mxu0
        %v2091 = vadd.f32 %v2002, %v2090
        %2092 = vmatmul.bf16.gmra.mxu0 %v1585
        %v2093 = vpop.f32.mrf.mxu0
        %v2094 = vadd.f32 %v2005, %v2093
        %v2095 = vpop.f32.mrf.mxu0
        %v2096 = vadd.f32 %v2007, %v2095
        %2097 = vmatmul.bf16.gmra.mxu0 %v1587
        %v2098 = vpop.f32.mrf.mxu0
        %v2099 = vadd.f32 %v2010, %v2098
        %v2100 = vpop.f32.mrf.mxu0
        %v2101 = vadd.f32 %v2012, %v2100
        %2102 = vmatmul.bf16.gmra.mxu0 %v1589
        %v2103 = vpop.f32.mrf.mxu0
        %v2104 = vadd.f32 %v2015, %v2103
        %v2105 = vpop.f32.mrf.mxu0
        %v2106 = vadd.f32 %v2017, %v2105
        %2107 = vmatmul.bf16.gmra.mxu0 %v1591
        %v2108 = vpop.f32.mrf.mxu0
        %v2109 = vadd.f32 %v2020, %v2108
        %v2110 = vpop.f32.mrf.mxu0
        %v2111 = vadd.f32 %v2022, %v2110
        %2112 = vmatmul.bf16.gmra.mxu0 %v1593
        %v2113 = vpop.f32.mrf.mxu0
        %v2114 = vadd.f32 %v2025, %v2113
        %v2115 = vpop.f32.mrf.mxu0
        %v2116 = vadd.f32 %v2027, %v2115
        %2117 = vmatmul.bf16.gmra.mxu0 %v1595
        %v2118 = vpop.f32.mrf.mxu0
        %v2119 = vadd.f32 %v2030, %v2118
        %v2120 = vpop.f32.mrf.mxu0
        %v2121 = vadd.f32 %v2032, %v2120
        %2122 = vmatmul.bf16.gmra.mxu0 %v1597
        %v2123 = vpop.f32.mrf.mxu0
        %v2124 = vadd.f32 %v2035, %v2123
        %v2125 = vpop.f32.mrf.mxu0
        %v2126 = vadd.f32 %v2037, %v2125
        %2127 = vmatmul.bf16.gmra.mxu0 %v1599
        %v2128 = vpop.f32.mrf.mxu0
        %v2129 = vadd.f32 %v2040, %v2128
        %v2130 = vpop.f32.mrf.mxu0
        %v2131 = vadd.f32 %v2042, %v2130
        %2132 = vmatmul.bf16.gmra.mxu0 %v1601
        %v2133 = vpop.f32.mrf.mxu0
        %v2134 = vadd.f32 %v2045, %v2133
        %v2135 = vpop.f32.mrf.mxu0
        %v2136 = vadd.f32 %v2047, %v2135
        %2137 = vmatmul.bf16.gmra.mxu0 %v1603
        %v2138 = vpop.f32.mrf.mxu0
        %v2139 = vadd.f32 %v2050, %v2138
        %v2140 = vpop.f32.mrf.mxu0
        %v2141 = vadd.f32 %v2052, %v2140
        %2142 = vmatmul.bf16.gmra.mxu0 %v1605
        %v2143 = vpop.f32.mrf.mxu0
        %v2144 = vadd.f32 %v2055, %v2143
        %v2145 = vpop.f32.mrf.mxu0
        %v2146 = vadd.f32 %v2057, %v2145
        %2147 = vmatmul.bf16.gmra.mxu0 %v1607
        %v2148 = vpop.f32.mrf.mxu0
        %v2149 = vadd.f32 %v2060, %v2148
        %v2150 = vpop.f32.mrf.mxu0
        %v2151 = vadd.f32 %v2062, %v2150
        %2152 = vmatmul.bf16.gmra.mxu0 %v1609
        %v2153 = vpop.f32.mrf.mxu0
        %v2154 = vadd.f32 %v2065, %v2153
        %v2155 = vpop.f32.mrf.mxu0
        %v2156 = vadd.f32 %v2067, %v2155
        %2157 = vmatmul.bf16.gmra.mxu0 %v1611
        %v2158 = vpop.f32.mrf.mxu0
        %v2159 = vadd.f32 %v2070, %v2158
        %v2160 = vpop.f32.mrf.mxu0
        %v2161 = vadd.f32 %v2072, %v2160
        %2162 = vmatmul.bf16.gmra.mxu0 %v1613
        %v2163 = vpop.f32.mrf.mxu0
        %v2164 = vadd.f32 %v2075, %v2163
        %v2165 = vpop.f32.mrf.mxu0
        %v2166 = vadd.f32 %v2077, %v2165
        %2167 = vdwg.mxu0
        %v2168 = vmax.f32 %v1911, 0.0
        %v2169 = vmax.f32 %v2089, 0.0
        %v2170 = vmax.f32 %v1913, 0.0
        %v2171 = vmax.f32 %v2091, 0.0
        %v2172 = vmax.f32 %v1916, 0.0
        %v2173 = vmax.f32 %v2094, 0.0
        %v2174 = vmax.f32 %v1918, 0.0
        %v2175 = vmax.f32 %v2096, 0.0
        %v2176 = vmax.f32 %v1921, 0.0
        %v2177 = vmax.f32 %v2099, 0.0
        %v2178 = vmax.f32 %v1923, 0.0
        %v2179 = vmax.f32 %v2101, 0.0
        %v2180 = vmax.f32 %v1926, 0.0
        %v2181 = vmax.f32 %v2104, 0.0
        %v2182 = vmax.f32 %v1928, 0.0
        %v2183 = vmax.f32 %v2106, 0.0
        %v2184 = vmax.f32 %v1931, 0.0
        %v2185 = vmax.f32 %v2109, 0.0
        %v2186 = vmax.f32 %v1933, 0.0
        %v2187 = vmax.f32 %v2111, 0.0
        %v2188 = vmax.f32 %v1936, 0.0
        %v2189 = vmax.f32 %v2114, 0.0
        %v2190 = vmax.f32 %v1938, 0.0
        %v2191 = vmax.f32 %v2116, 0.0
        %v2192 = vmax.f32 %v1941, 0.0
        %v2193 = vmax.f32 %v2119, 0.0
        %v2194 = vmax.f32 %v1943, 0.0
        %v2195 = vmax.f32 %v2121, 0.0
        %v2196 = vmax.f32 %v1946, 0.0
        %v2197 = vmax.f32 %v2124, 0.0
        %v2198 = vmax.f32 %v1948, 0.0
        %v2199 = vmax.f32 %v2126, 0.0
        %v2200 = vmax.f32 %v1951, 0.0
        %v2201 = vmax.f32 %v2129, 0.0
        %v2202 = vmax.f32 %v1953, 0.0
        %v2203 = vmax.f32 %v2131, 0.0
        %v2204 = vmax.f32 %v1956, 0.0
        %v2205 = vmax.f32 %v2134, 0.0
        %v2206 = vmax.f32 %v1958, 0.0
        %v2207 = vmax.f32 %v2136, 0.0
        %v2208 = vmax.f32 %v1961, 0.0
        %v2209 = vmax.f32 %v2139, 0.0
        %v2210 = vmax.f32 %v1963, 0.0
        %v2211 = vmax.f32 %v2141, 0.0
        %v2212 = vmax.f32 %v1966, 0.0
        %v2213 = vmax.f32 %v2144, 0.0
        %v2214 = vmax.f32 %v1968, 0.0
        %v2215 = vmax.f32 %v2146, 0.0
        %v2216 = vmax.f32 %v1971, 0.0
        %v2217 = vmax.f32 %v2149, 0.0
        %v2218 = vmax.f32 %v1973, 0.0
        %v2219 = vmax.f32 %v2151, 0.0
        %v2220 = vmax.f32 %v1976, 0.0
        %v2221 = vmax.f32 %v2154, 0.0
        %v2222 = vmax.f32 %v1978, 0.0
        %v2223 = vmax.f32 %v2156, 0.0
        %v2224 = vmax.f32 %v1981, 0.0
        %v2225 = vmax.f32 %v2159, 0.0
        %v2226 = vmax.f32 %v1983, 0.0
        %v2227 = vmax.f32 %v2161, 0.0
        %v2228 = vmax.f32 %v1986, 0.0
        %v2229 = vmax.f32 %v2164, 0.0
        %v2230 = vmax.f32 %v1988, 0.0
        %v2231 = vmax.f32 %v2166, 0.0
        %v2232 = vpack.c.bf16 %v2170, %v2168
        %v2233 = vpack.c.bf16 %v2171, %v2169
        %v2234 = vpack.c.bf16 %v2174, %v2172
        %v2235 = vpack.c.bf16 %v2175, %v2173
        %v2236 = vpack.c.bf16 %v2178, %v2176
        %v2237 = vpack.c.bf16 %v2179, %v2177
        %v2238 = vpack.c.bf16 %v2182, %v2180
        %v2239 = vpack.c.bf16 %v2183, %v2181
        %v2240 = vpack.c.bf16 %v2186, %v2184
        %v2241 = vpack.c.bf16 %v2187, %v2185
        %v2242 = vpack.c.bf16 %v2190, %v2188
        %v2243 = vpack.c.bf16 %v2191, %v2189
        %v2244 = vpack.c.bf16 %v2194, %v2192
        %v2245 = vpack.c.bf16 %v2195, %v2193
        %v2246 = vpack.c.bf16 %v2198, %v2196
        %v2247 = vpack.c.bf16 %v2199, %v2197
        %v2248 = vpack.c.bf16 %v2202, %v2200
        %v2249 = vpack.c.bf16 %v2203, %v2201
        %v2250 = vpack.c.bf16 %v2206, %v2204
        %v2251 = vpack.c.bf16 %v2207, %v2205
        %v2252 = vpack.c.bf16 %v2210, %v2208
        %v2253 = vpack.c.bf16 %v2211, %v2209
        %v2254 = vpack.c.bf16 %v2214, %v2212
        %v2255 = vpack.c.bf16 %v2215, %v2213
        %v2256 = vpack.c.bf16 %v2218, %v2216
        %v2257 = vpack.c.bf16 %v2219, %v2217
        %v2258 = vpack.c.bf16 %v2222, %v2220
        %v2259 = vpack.c.bf16 %v2223, %v2221
        %v2260 = vpack.c.bf16 %v2226, %v2224
        %v2261 = vpack.c.bf16 %v2227, %v2225
        %v2262 = vpack.c.bf16 %v2230, %v2228
        %v2263 = vpack.c.bf16 %v2231, %v2229
        %v2264 = vld [vmem:[#allocation7] sm:$0xff]
        %v2265 = vld [vmem:[#allocation7 + $0x8] sm:$0xff]
        %v2266 = vld [vmem:[#allocation7 + $0x10] sm:$0xff]
        %v2267 = vld [vmem:[#allocation7 + $0x18] sm:$0xff]
        %v2268 = vld [vmem:[#allocation7 + $0x20] sm:$0xff]
        %v2269 = vld [vmem:[#allocation7 + $0x28] sm:$0xff]
        %v2270 = vld [vmem:[#allocation7 + $0x30] sm:$0xff]
        %v2271 = vld [vmem:[#allocation7 + $0x38] sm:$0xff]
        %v2272 = vld [vmem:[#allocation7 + $0x40] sm:$0xff]
        %v2273 = vld [vmem:[#allocation7 + $0x48] sm:$0xff]
        %v2274 = vld [vmem:[#allocation7 + $0x50] sm:$0xff]
        %v2275 = vld [vmem:[#allocation7 + $0x58] sm:$0xff]
        %v2276 = vld [vmem:[#allocation7 + $0x60] sm:$0xff]
        %v2277 = vld [vmem:[#allocation7 + $0x68] sm:$0xff]
        %v2278 = vld [vmem:[#allocation7 + $0x70] sm:$0xff]
        %v2279 = vld [vmem:[#allocation7 + $0x78] sm:$0xff]
        %v2280 = vld [vmem:[%s8] sm:$0x3]
        %v2282 = vperm.slane %v2280, 0
        %v2283 = vperm.slane %v2280, 1
        %v2286 = vunpack.c.h.b16 %v1110
        %v2287 = vunpack.c.h.b16 %v1111
        %v2288 = vunpack.c.h.b16 %v1112
        %v2289 = vunpack.c.h.b16 %v1113
        %v2290 = vunpack.c.h.b16 %v1114
        %v2291 = vunpack.c.h.b16 %v1115
        %v2292 = vunpack.c.h.b16 %v1116
        %v2293 = vunpack.c.h.b16 %v1117
        %v2294 = vunpack.c.h.b16 %v1118
        %v2295 = vunpack.c.h.b16 %v1119
        %v2296 = vunpack.c.h.b16 %v1120
        %v2297 = vunpack.c.h.b16 %v1121
        %v2298 = vunpack.c.h.b16 %v1122
        %v2299 = vunpack.c.h.b16 %v1123
        %v2300 = vunpack.c.h.b16 %v1124
        %v2301 = vunpack.c.h.b16 %v1125
        %v2302 = vunpack.c.h.b16 %v1126
        %v2303 = vunpack.c.h.b16 %v1127
        %v2304 = vunpack.c.h.b16 %v1128
        %v2305 = vunpack.c.h.b16 %v1129
        %v2306 = vunpack.c.h.b16 %v1130
        %v2307 = vunpack.c.h.b16 %v1131
        %v2308 = vunpack.c.h.b16 %v1132
        %v2309 = vunpack.c.h.b16 %v1133
        %v2310 = vunpack.c.h.b16 %v1134
        %v2311 = vunpack.c.h.b16 %v1135
        %v2312 = vunpack.c.h.b16 %v1136
        %v2313 = vunpack.c.h.b16 %v1137
        %v2314 = vunpack.c.h.b16 %v1138
        %v2315 = vunpack.c.h.b16 %v1139
        %v2316 = vunpack.c.h.b16 %v1140
        %v2317 = vunpack.c.h.b16 %v1141
        %v2318 = vpack.c.b16 %v2287, %v2286
        %v2319 = vpack.c.b16 %v2289, %v2288
        %v2320 = vpack.c.b16 %v2291, %v2290
        %v2321 = vpack.c.b16 %v2293, %v2292
        %v2322 = vpack.c.b16 %v2295, %v2294
        %v2323 = vpack.c.b16 %v2297, %v2296
        %v2324 = vpack.c.b16 %v2299, %v2298
        %v2325 = vpack.c.b16 %v2301, %v2300
        %v2326 = vpack.c.b16 %v2303, %v2302
        %v2327 = vpack.c.b16 %v2305, %v2304
        %v2328 = vpack.c.b16 %v2307, %v2306
        %v2329 = vpack.c.b16 %v2309, %v2308
        %v2330 = vpack.c.b16 %v2311, %v2310
        %v2331 = vpack.c.b16 %v2313, %v2312
        %v2332 = vpack.c.b16 %v2315, %v2314
        %v2333 = vpack.c.b16 %v2317, %v2316
        %v2366 = vunpack.c.l.b16 %v2264
        %v2367 = vunpack.c.h.b16 %v2264
        %v2368 = vunpack.c.l.b16 %v2265
        %v2369 = vunpack.c.h.b16 %v2265
        %v2370 = vunpack.c.l.b16 %v2266
        %v2371 = vunpack.c.h.b16 %v2266
        %v2372 = vunpack.c.l.b16 %v2267
        %v2373 = vunpack.c.h.b16 %v2267
        %v2374 = vunpack.c.l.b16 %v2268
        %v2375 = vunpack.c.h.b16 %v2268
        %v2376 = vunpack.c.l.b16 %v2269
        %v2377 = vunpack.c.h.b16 %v2269
        %v2378 = vunpack.c.l.b16 %v2270
        %v2379 = vunpack.c.h.b16 %v2270
        %v2380 = vunpack.c.l.b16 %v2271
        %v2381 = vunpack.c.h.b16 %v2271
        %v2382 = vunpack.c.l.b16 %v2272
        %v2383 = vunpack.c.h.b16 %v2272
        %v2384 = vunpack.c.l.b16 %v2273
        %v2385 = vunpack.c.h.b16 %v2273
        %v2386 = vunpack.c.l.b16 %v2274
        %v2387 = vunpack.c.h.b16 %v2274
        %v2388 = vunpack.c.l.b16 %v2275
        %v2389 = vunpack.c.h.b16 %v2275
        %v2390 = vunpack.c.l.b16 %v2276
        %v2391 = vunpack.c.h.b16 %v2276
        %v2392 = vunpack.c.l.b16 %v2277
        %v2393 = vunpack.c.h.b16 %v2277
        %v2394 = vunpack.c.l.b16 %v2278
        %v2395 = vunpack.c.h.b16 %v2278
        %v2396 = vunpack.c.l.b16 %v2279
        %v2397 = vunpack.c.h.b16 %v2279
        %v2398 = vpack.c.b16 %v2368, %v2366
        %v2399 = vpack.c.b16 %v2369, %v2367
        %v2400 = vpack.c.b16 %v2372, %v2370
        %v2401 = vpack.c.b16 %v2373, %v2371
        %v2402 = vpack.c.b16 %v2376, %v2374
        %v2403 = vpack.c.b16 %v2377, %v2375
        %v2404 = vpack.c.b16 %v2380, %v2378
        %v2405 = vpack.c.b16 %v2381, %v2379
        %v2406 = vpack.c.b16 %v2384, %v2382
        %v2407 = vpack.c.b16 %v2385, %v2383
        %v2408 = vpack.c.b16 %v2388, %v2386
        %v2409 = vpack.c.b16 %v2389, %v2387
        %v2410 = vpack.c.b16 %v2392, %v2390
        %v2411 = vpack.c.b16 %v2393, %v2391
        %v2412 = vpack.c.b16 %v2396, %v2394
        %v2413 = vpack.c.b16 %v2397, %v2395
        %2430 = vmatpush.bf16.msra.mxu0 %v2412
        %2431 = vmatpush.bf16.msra.mxu0 %v2410
        %2432 = vmatpush.bf16.msra.mxu0 %v2408
        %2433 = vmatpush.bf16.msra.mxu0 %v2406
        %2434 = vmatpush.bf16.msra.mxu0 %v2404
        %2435 = vmatpush.bf16.msra.mxu0 %v2402
        %2436 = vmatpush.bf16.msra.mxu0 %v2400
        %2437 = vmatpush.bf16.msra.mxu0 %v2398
        %2438 = vmatmul.bf16.gmra.mxu0 %v2318
        %v2439 = vpop.f32.mrf.mxu0
        %v2440 = vadd.f32 %v2282, %v2439
        %v2441 = vpop.f32.mrf.mxu0
        %v2442 = vadd.f32 %v2282, %v2441
        %2443 = vmatmul.bf16.gmra.mxu0 %v2319
        %v2444 = vpop.f32.mrf.mxu0
        %v2445 = vadd.f32 %v2282, %v2444
        %v2446 = vpop.f32.mrf.mxu0
        %v2447 = vadd.f32 %v2282, %v2446
        %2448 = vmatmul.bf16.gmra.mxu0 %v2320
        %v2449 = vpop.f32.mrf.mxu0
        %v2450 = vadd.f32 %v2282, %v2449
        %v2451 = vpop.f32.mrf.mxu0
        %v2452 = vadd.f32 %v2282, %v2451
        %2453 = vmatmul.bf16.gmra.mxu0 %v2321
        %v2454 = vpop.f32.mrf.mxu0
        %v2455 = vadd.f32 %v2282, %v2454
        %v2456 = vpop.f32.mrf.mxu0
        %v2457 = vadd.f32 %v2282, %v2456
        %2458 = vmatmul.bf16.gmra.mxu0 %v2322
        %v2459 = vpop.f32.mrf.mxu0
        %v2460 = vadd.f32 %v2282, %v2459
        %v2461 = vpop.f32.mrf.mxu0
        %v2462 = vadd.f32 %v2282, %v2461
        %2463 = vmatmul.bf16.gmra.mxu0 %v2323
        %v2464 = vpop.f32.mrf.mxu0
        %v2465 = vadd.f32 %v2282, %v2464
        %v2466 = vpop.f32.mrf.mxu0
        %v2467 = vadd.f32 %v2282, %v2466
        %2468 = vmatmul.bf16.gmra.mxu0 %v2324
        %v2469 = vpop.f32.mrf.mxu0
        %v2470 = vadd.f32 %v2282, %v2469
        %v2471 = vpop.f32.mrf.mxu0
        %v2472 = vadd.f32 %v2282, %v2471
        %2473 = vmatmul.bf16.gmra.mxu0 %v2325
        %v2474 = vpop.f32.mrf.mxu0
        %v2475 = vadd.f32 %v2282, %v2474
        %v2476 = vpop.f32.mrf.mxu0
        %v2477 = vadd.f32 %v2282, %v2476
        %2478 = vmatmul.bf16.gmra.mxu0 %v2326
        %v2479 = vpop.f32.mrf.mxu0
        %v2480 = vadd.f32 %v2282, %v2479
        %v2481 = vpop.f32.mrf.mxu0
        %v2482 = vadd.f32 %v2282, %v2481
        %2483 = vmatmul.bf16.gmra.mxu0 %v2327
        %v2484 = vpop.f32.mrf.mxu0
        %v2485 = vadd.f32 %v2282, %v2484
        %v2486 = vpop.f32.mrf.mxu0
        %v2487 = vadd.f32 %v2282, %v2486
        %2488 = vmatmul.bf16.gmra.mxu0 %v2328
        %v2489 = vpop.f32.mrf.mxu0
        %v2490 = vadd.f32 %v2282, %v2489
        %v2491 = vpop.f32.mrf.mxu0
        %v2492 = vadd.f32 %v2282, %v2491
        %2493 = vmatmul.bf16.gmra.mxu0 %v2329
        %v2494 = vpop.f32.mrf.mxu0
        %v2495 = vadd.f32 %v2282, %v2494
        %v2496 = vpop.f32.mrf.mxu0
        %v2497 = vadd.f32 %v2282, %v2496
        %2498 = vmatmul.bf16.gmra.mxu0 %v2330
        %v2499 = vpop.f32.mrf.mxu0
        %v2500 = vadd.f32 %v2282, %v2499
        %v2501 = vpop.f32.mrf.mxu0
        %v2502 = vadd.f32 %v2282, %v2501
        %2503 = vmatmul.bf16.gmra.mxu0 %v2331
        %v2504 = vpop.f32.mrf.mxu0
        %v2505 = vadd.f32 %v2282, %v2504
        %v2506 = vpop.f32.mrf.mxu0
        %v2507 = vadd.f32 %v2282, %v2506
        %2508 = vmatmul.bf16.gmra.mxu0 %v2332
        %v2509 = vpop.f32.mrf.mxu0
        %v2510 = vadd.f32 %v2282, %v2509
        %v2511 = vpop.f32.mrf.mxu0
        %v2512 = vadd.f32 %v2282, %v2511
        %2513 = vmatmul.bf16.gmra.mxu0 %v2333
        %v2514 = vpop.f32.mrf.mxu0
        %v2515 = vadd.f32 %v2282, %v2514
        %v2516 = vpop.f32.mrf.mxu0
        %v2517 = vadd.f32 %v2282, %v2516
        %2518 = vdwg.mxu0
        %2519 = vmatpush.bf16.msra.mxu0 %v2413
        %2520 = vmatpush.bf16.msra.mxu0 %v2411
        %2521 = vmatpush.bf16.msra.mxu0 %v2409
        %2522 = vmatpush.bf16.msra.mxu0 %v2407
        %2523 = vmatpush.bf16.msra.mxu0 %v2405
        %2524 = vmatpush.bf16.msra.mxu0 %v2403
        %2525 = vmatpush.bf16.msra.mxu0 %v2401
        %2526 = vmatpush.bf16.msra.mxu0 %v2399
        %2527 = vmatmul.bf16.gmra.mxu0 %v2318
        %v2528 = vpop.f32.mrf.mxu0
        %v2529 = vadd.f32 %v2283, %v2528
        %v2530 = vpop.f32.mrf.mxu0
        %v2531 = vadd.f32 %v2283, %v2530
        %2532 = vmatmul.bf16.gmra.mxu0 %v2319
        %v2533 = vpop.f32.mrf.mxu0
        %v2534 = vadd.f32 %v2283, %v2533
        %v2535 = vpop.f32.mrf.mxu0
        %v2536 = vadd.f32 %v2283, %v2535
        %2537 = vmatmul.bf16.gmra.mxu0 %v2320
        %v2538 = vpop.f32.mrf.mxu0
        %v2539 = vadd.f32 %v2283, %v2538
        %v2540 = vpop.f32.mrf.mxu0
        %v2541 = vadd.f32 %v2283, %v2540
        %2542 = vmatmul.bf16.gmra.mxu0 %v2321
        %v2543 = vpop.f32.mrf.mxu0
        %v2544 = vadd.f32 %v2283, %v2543
        %v2545 = vpop.f32.mrf.mxu0
        %v2546 = vadd.f32 %v2283, %v2545
        %2547 = vmatmul.bf16.gmra.mxu0 %v2322
        %v2548 = vpop.f32.mrf.mxu0
        %v2549 = vadd.f32 %v2283, %v2548
        %v2550 = vpop.f32.mrf.mxu0
        %v2551 = vadd.f32 %v2283, %v2550
        %2552 = vmatmul.bf16.gmra.mxu0 %v2323
        %v2553 = vpop.f32.mrf.mxu0
        %v2554 = vadd.f32 %v2283, %v2553
        %v2555 = vpop.f32.mrf.mxu0
        %v2556 = vadd.f32 %v2283, %v2555
        %2557 = vmatmul.bf16.gmra.mxu0 %v2324
        %v2558 = vpop.f32.mrf.mxu0
        %v2559 = vadd.f32 %v2283, %v2558
        %v2560 = vpop.f32.mrf.mxu0
        %v2561 = vadd.f32 %v2283, %v2560
        %2562 = vmatmul.bf16.gmra.mxu0 %v2325
        %v2563 = vpop.f32.mrf.mxu0
        %v2564 = vadd.f32 %v2283, %v2563
        %v2565 = vpop.f32.mrf.mxu0
        %v2566 = vadd.f32 %v2283, %v2565
        %2567 = vmatmul.bf16.gmra.mxu0 %v2326
        %v2568 = vpop.f32.mrf.mxu0
        %v2569 = vadd.f32 %v2283, %v2568
        %v2570 = vpop.f32.mrf.mxu0
        %v2571 = vadd.f32 %v2283, %v2570
        %2572 = vmatmul.bf16.gmra.mxu0 %v2327
        %v2573 = vpop.f32.mrf.mxu0
        %v2574 = vadd.f32 %v2283, %v2573
        %v2575 = vpop.f32.mrf.mxu0
        %v2576 = vadd.f32 %v2283, %v2575
        %2577 = vmatmul.bf16.gmra.mxu0 %v2328
        %v2578 = vpop.f32.mrf.mxu0
        %v2579 = vadd.f32 %v2283, %v2578
        %v2580 = vpop.f32.mrf.mxu0
        %v2581 = vadd.f32 %v2283, %v2580
        %2582 = vmatmul.bf16.gmra.mxu0 %v2329
        %v2583 = vpop.f32.mrf.mxu0
        %v2584 = vadd.f32 %v2283, %v2583
        %v2585 = vpop.f32.mrf.mxu0
        %v2586 = vadd.f32 %v2283, %v2585
        %2587 = vmatmul.bf16.gmra.mxu0 %v2330
        %v2588 = vpop.f32.mrf.mxu0
        %v2589 = vadd.f32 %v2283, %v2588
        %v2590 = vpop.f32.mrf.mxu0
        %v2591 = vadd.f32 %v2283, %v2590
        %2592 = vmatmul.bf16.gmra.mxu0 %v2331
        %v2593 = vpop.f32.mrf.mxu0
        %v2594 = vadd.f32 %v2283, %v2593
        %v2595 = vpop.f32.mrf.mxu0
        %v2596 = vadd.f32 %v2283, %v2595
        %2597 = vmatmul.bf16.gmra.mxu0 %v2332
        %v2598 = vpop.f32.mrf.mxu0
        %v2599 = vadd.f32 %v2283, %v2598
        %v2600 = vpop.f32.mrf.mxu0
        %v2601 = vadd.f32 %v2283, %v2600
        %2602 = vmatmul.bf16.gmra.mxu0 %v2333
        %v2603 = vpop.f32.mrf.mxu0
        %v2604 = vadd.f32 %v2283, %v2603
        %v2605 = vpop.f32.mrf.mxu0
        %v2606 = vadd.f32 %v2283, %v2605
        %2607 = vdwg.mxu0
        %v2608 = vmax.f32 %v2440, 0.0
        %v2609 = vmax.f32 %v2529, 0.0
        %v2610 = vmax.f32 %v2442, 0.0
        %v2611 = vmax.f32 %v2531, 0.0
        %v2612 = vmax.f32 %v2445, 0.0
        %v2613 = vmax.f32 %v2534, 0.0
        %v2614 = vmax.f32 %v2447, 0.0
        %v2615 = vmax.f32 %v2536, 0.0
        %v2616 = vmax.f32 %v2450, 0.0
        %v2617 = vmax.f32 %v2539, 0.0
        %v2618 = vmax.f32 %v2452, 0.0
        %v2619 = vmax.f32 %v2541, 0.0
        %v2620 = vmax.f32 %v2455, 0.0
        %v2621 = vmax.f32 %v2544, 0.0
        %v2622 = vmax.f32 %v2457, 0.0
        %v2623 = vmax.f32 %v2546, 0.0
        %v2624 = vmax.f32 %v2460, 0.0
        %v2625 = vmax.f32 %v2549, 0.0
        %v2626 = vmax.f32 %v2462, 0.0
        %v2627 = vmax.f32 %v2551, 0.0
        %v2628 = vmax.f32 %v2465, 0.0
        %v2629 = vmax.f32 %v2554, 0.0
        %v2630 = vmax.f32 %v2467, 0.0
        %v2631 = vmax.f32 %v2556, 0.0
        %v2632 = vmax.f32 %v2470, 0.0
        %v2633 = vmax.f32 %v2559, 0.0
        %v2634 = vmax.f32 %v2472, 0.0
        %v2635 = vmax.f32 %v2561, 0.0
        %v2636 = vmax.f32 %v2475, 0.0
        %v2637 = vmax.f32 %v2564, 0.0
        %v2638 = vmax.f32 %v2477, 0.0
        %v2639 = vmax.f32 %v2566, 0.0
        %v2640 = vmax.f32 %v2480, 0.0
        %v2641 = vmax.f32 %v2569, 0.0
        %v2642 = vmax.f32 %v2482, 0.0
        %v2643 = vmax.f32 %v2571, 0.0
        %v2644 = vmax.f32 %v2485, 0.0
        %v2645 = vmax.f32 %v2574, 0.0
        %v2646 = vmax.f32 %v2487, 0.0
        %v2647 = vmax.f32 %v2576, 0.0
        %v2648 = vmax.f32 %v2490, 0.0
        %v2649 = vmax.f32 %v2579, 0.0
        %v2650 = vmax.f32 %v2492, 0.0
        %v2651 = vmax.f32 %v2581, 0.0
        %v2652 = vmax.f32 %v2495, 0.0
        %v2653 = vmax.f32 %v2584, 0.0
        %v2654 = vmax.f32 %v2497, 0.0
        %v2655 = vmax.f32 %v2586, 0.0
        %v2656 = vmax.f32 %v2500, 0.0
        %v2657 = vmax.f32 %v2589, 0.0
        %v2658 = vmax.f32 %v2502, 0.0
        %v2659 = vmax.f32 %v2591, 0.0
        %v2660 = vmax.f32 %v2505, 0.0
        %v2661 = vmax.f32 %v2594, 0.0
        %v2662 = vmax.f32 %v2507, 0.0
        %v2663 = vmax.f32 %v2596, 0.0
        %v2664 = vmax.f32 %v2510, 0.0
        %v2665 = vmax.f32 %v2599, 0.0
        %v2666 = vmax.f32 %v2512, 0.0
        %v2667 = vmax.f32 %v2601, 0.0
        %v2668 = vmax.f32 %v2515, 0.0
        %v2669 = vmax.f32 %v2604, 0.0
        %v2670 = vmax.f32 %v2517, 0.0
        %v2671 = vmax.f32 %v2606, 0.0
        %v2672 = vpack.c.bf16 %v2610, %v2608
        %v2673 = vpack.c.bf16 %v2611, %v2609
        %v2674 = vpack.c.bf16 %v2614, %v2612
        %v2675 = vpack.c.bf16 %v2615, %v2613
        %v2676 = vpack.c.bf16 %v2618, %v2616
        %v2677 = vpack.c.bf16 %v2619, %v2617
        %v2678 = vpack.c.bf16 %v2622, %v2620
        %v2679 = vpack.c.bf16 %v2623, %v2621
        %v2680 = vpack.c.bf16 %v2626, %v2624
        %v2681 = vpack.c.bf16 %v2627, %v2625
        %v2682 = vpack.c.bf16 %v2630, %v2628
        %v2683 = vpack.c.bf16 %v2631, %v2629
        %v2684 = vpack.c.bf16 %v2634, %v2632
        %v2685 = vpack.c.bf16 %v2635, %v2633
        %v2686 = vpack.c.bf16 %v2638, %v2636
        %v2687 = vpack.c.bf16 %v2639, %v2637
        %v2688 = vpack.c.bf16 %v2642, %v2640
        %v2689 = vpack.c.bf16 %v2643, %v2641
        %v2690 = vpack.c.bf16 %v2646, %v2644
        %v2691 = vpack.c.bf16 %v2647, %v2645
        %v2692 = vpack.c.bf16 %v2650, %v2648
        %v2693 = vpack.c.bf16 %v2651, %v2649
        %v2694 = vpack.c.bf16 %v2654, %v2652
        %v2695 = vpack.c.bf16 %v2655, %v2653
        %v2696 = vpack.c.bf16 %v2658, %v2656
        %v2697 = vpack.c.bf16 %v2659, %v2657
        %v2698 = vpack.c.bf16 %v2662, %v2660
        %v2699 = vpack.c.bf16 %v2663, %v2661
        %v2700 = vpack.c.bf16 %v2666, %v2664
        %v2701 = vpack.c.bf16 %v2667, %v2665
        %v2702 = vpack.c.bf16 %v2670, %v2668
        %v2703 = vpack.c.bf16 %v2671, %v2669
        %v2704 = vld [vmem:[%s9] sm:$0xff]
        %v2705 = vld [vmem:[%s9 + $0x8] sm:$0xff]
        %v2706 = vld [vmem:[%s9 + $0x10] sm:$0xff]
        %v2707 = vld [vmem:[%s9 + $0x18] sm:$0xff]
        %v2708 = vld [vmem:[%s9 + $0x20] sm:$0xff]
        %v2709 = vld [vmem:[%s9 + $0x28] sm:$0xff]
        %v2710 = vld [vmem:[%s9 + $0x30] sm:$0xff]
        %v2711 = vld [vmem:[%s9 + $0x38] sm:$0xff]
        %v2712 = vld [vmem:[%s9 + $0x40] sm:$0xff]
        %v2713 = vld [vmem:[%s9 + $0x48] sm:$0xff]
        %v2714 = vld [vmem:[%s9 + $0x50] sm:$0xff]
        %v2715 = vld [vmem:[%s9 + $0x58] sm:$0xff]
        %v2716 = vld [vmem:[%s9 + $0x60] sm:$0xff]
        %v2717 = vld [vmem:[%s9 + $0x68] sm:$0xff]
        %v2718 = vld [vmem:[%s9 + $0x70] sm:$0xff]
        %v2719 = vld [vmem:[%s9 + $0x78] sm:$0xff]
        %v2720 = vld [vmem:[%s9 + $0x80] sm:$0xff]
        %v2721 = vld [vmem:[%s9 + $0x88] sm:$0xff]
        %v2722 = vld [vmem:[%s9 + $0x90] sm:$0xff]
        %v2723 = vld [vmem:[%s9 + $0x98] sm:$0xff]
        %v2724 = vld [vmem:[%s9 + $0xa0] sm:$0xff]
        %v2725 = vld [vmem:[%s9 + $0xa8] sm:$0xff]
        %v2726 = vld [vmem:[%s9 + $0xb0] sm:$0xff]
        %v2727 = vld [vmem:[%s9 + $0xb8] sm:$0xff]
        %v2728 = vld [vmem:[%s9 + $0xc0] sm:$0xff]
        %v2729 = vld [vmem:[%s9 + $0xc8] sm:$0xff]
        %v2730 = vld [vmem:[%s9 + $0xd0] sm:$0xff]
        %v2731 = vld [vmem:[%s9 + $0xd8] sm:$0xff]
        %v2732 = vld [vmem:[%s9 + $0xe0] sm:$0xff]
        %v2733 = vld [vmem:[%s9 + $0xe8] sm:$0xff]
        %v2734 = vld [vmem:[%s9 + $0xf0] sm:$0xff]
        %v2735 = vld [vmem:[%s9 + $0xf8] sm:$0xff]
        %v2736 = vld [vmem:[%s10] sm:$0x3]
        %v2738 = vperm.slane %v2736, 0
        %v2739 = vperm.slane %v2736, 1
        %v2774 = vunpack.c.l.b16 %v2704
        %v2775 = vunpack.c.h.b16 %v2704
        %v2776 = vunpack.c.l.b16 %v2705
        %v2777 = vunpack.c.h.b16 %v2705
        %v2778 = vunpack.c.l.b16 %v2706
        %v2779 = vunpack.c.h.b16 %v2706
        %v2780 = vunpack.c.l.b16 %v2707
        %v2781 = vunpack.c.h.b16 %v2707
        %v2782 = vunpack.c.l.b16 %v2708
        %v2783 = vunpack.c.h.b16 %v2708
        %v2784 = vunpack.c.l.b16 %v2709
        %v2785 = vunpack.c.h.b16 %v2709
        %v2786 = vunpack.c.l.b16 %v2710
        %v2787 = vunpack.c.h.b16 %v2710
        %v2788 = vunpack.c.l.b16 %v2711
        %v2789 = vunpack.c.h.b16 %v2711
        %v2790 = vunpack.c.l.b16 %v2712
        %v2791 = vunpack.c.h.b16 %v2712
        %v2792 = vunpack.c.l.b16 %v2713
        %v2793 = vunpack.c.h.b16 %v2713
        %v2794 = vunpack.c.l.b16 %v2714
        %v2795 = vunpack.c.h.b16 %v2714
        %v2796 = vunpack.c.l.b16 %v2715
        %v2797 = vunpack.c.h.b16 %v2715
        %v2798 = vunpack.c.l.b16 %v2716
        %v2799 = vunpack.c.h.b16 %v2716
        %v2800 = vunpack.c.l.b16 %v2717
        %v2801 = vunpack.c.h.b16 %v2717
        %v2802 = vunpack.c.l.b16 %v2718
        %v2803 = vunpack.c.h.b16 %v2718
        %v2804 = vunpack.c.l.b16 %v2719
        %v2805 = vunpack.c.h.b16 %v2719
        %v2806 = vunpack.c.l.b16 %v2720
        %v2807 = vunpack.c.h.b16 %v2720
        %v2808 = vunpack.c.l.b16 %v2721
        %v2809 = vunpack.c.h.b16 %v2721
        %v2810 = vunpack.c.l.b16 %v2722
        %v2811 = vunpack.c.h.b16 %v2722
        %v2812 = vunpack.c.l.b16 %v2723
        %v2813 = vunpack.c.h.b16 %v2723
        %v2814 = vunpack.c.l.b16 %v2724
        %v2815 = vunpack.c.h.b16 %v2724
        %v2816 = vunpack.c.l.b16 %v2725
        %v2817 = vunpack.c.h.b16 %v2725
        %v2818 = vunpack.c.l.b16 %v2726
        %v2819 = vunpack.c.h.b16 %v2726
        %v2820 = vunpack.c.l.b16 %v2727
        %v2821 = vunpack.c.h.b16 %v2727
        %v2822 = vunpack.c.l.b16 %v2728
        %v2823 = vunpack.c.h.b16 %v2728
        %v2824 = vunpack.c.l.b16 %v2729
        %v2825 = vunpack.c.h.b16 %v2729
        %v2826 = vunpack.c.l.b16 %v2730
        %v2827 = vunpack.c.h.b16 %v2730
        %v2828 = vunpack.c.l.b16 %v2731
        %v2829 = vunpack.c.h.b16 %v2731
        %v2830 = vunpack.c.l.b16 %v2732
        %v2831 = vunpack.c.h.b16 %v2732
        %v2832 = vunpack.c.l.b16 %v2733
        %v2833 = vunpack.c.h.b16 %v2733
        %v2834 = vunpack.c.l.b16 %v2734
        %v2835 = vunpack.c.h.b16 %v2734
        %v2836 = vunpack.c.l.b16 %v2735
        %v2837 = vunpack.c.h.b16 %v2735
        %v2838 = vpack.c.b16 %v2776, %v2774
        %v2839 = vpack.c.b16 %v2777, %v2775
        %v2840 = vpack.c.b16 %v2780, %v2778
        %v2841 = vpack.c.b16 %v2781, %v2779
        %v2842 = vpack.c.b16 %v2784, %v2782
        %v2843 = vpack.c.b16 %v2785, %v2783
        %v2844 = vpack.c.b16 %v2788, %v2786
        %v2845 = vpack.c.b16 %v2789, %v2787
        %v2846 = vpack.c.b16 %v2792, %v2790
        %v2847 = vpack.c.b16 %v2793, %v2791
        %v2848 = vpack.c.b16 %v2796, %v2794
        %v2849 = vpack.c.b16 %v2797, %v2795
        %v2850 = vpack.c.b16 %v2800, %v2798
        %v2851 = vpack.c.b16 %v2801, %v2799
        %v2852 = vpack.c.b16 %v2804, %v2802
        %v2853 = vpack.c.b16 %v2805, %v2803
        %v2854 = vpack.c.b16 %v2808, %v2806
        %v2855 = vpack.c.b16 %v2809, %v2807
        %v2856 = vpack.c.b16 %v2812, %v2810
        %v2857 = vpack.c.b16 %v2813, %v2811
        %v2858 = vpack.c.b16 %v2816, %v2814
        %v2859 = vpack.c.b16 %v2817, %v2815
        %v2860 = vpack.c.b16 %v2820, %v2818
        %v2861 = vpack.c.b16 %v2821, %v2819
        %v2862 = vpack.c.b16 %v2824, %v2822
        %v2863 = vpack.c.b16 %v2825, %v2823
        %v2864 = vpack.c.b16 %v2828, %v2826
        %v2865 = vpack.c.b16 %v2829, %v2827
        %v2866 = vpack.c.b16 %v2832, %v2830
        %v2867 = vpack.c.b16 %v2833, %v2831
        %v2868 = vpack.c.b16 %v2836, %v2834
        %v2869 = vpack.c.b16 %v2837, %v2835
        %2902 = vmatpush.bf16.msra.mxu0 %v2852
        %2903 = vmatpush.bf16.msra.mxu0 %v2850
        %2904 = vmatpush.bf16.msra.mxu0 %v2848
        %2905 = vmatpush.bf16.msra.mxu0 %v2846
        %2906 = vmatpush.bf16.msra.mxu0 %v2844
        %2907 = vmatpush.bf16.msra.mxu0 %v2842
        %2908 = vmatpush.bf16.msra.mxu0 %v2840
        %2909 = vmatpush.bf16.msra.mxu0 %v2838
        %2910 = vmatmul.bf16.gmra.mxu0 %v2672
        %v2911 = vpop.f32.mrf.mxu0
        %v2912 = vadd.f32 %v2738, %v2911
        %v2913 = vpop.f32.mrf.mxu0
        %v2914 = vadd.f32 %v2738, %v2913
        %2915 = vmatmul.bf16.gmra.mxu0 %v2674
        %v2916 = vpop.f32.mrf.mxu0
        %v2917 = vadd.f32 %v2738, %v2916
        %v2918 = vpop.f32.mrf.mxu0
        %v2919 = vadd.f32 %v2738, %v2918
        %2920 = vmatmul.bf16.gmra.mxu0 %v2676
        %v2921 = vpop.f32.mrf.mxu0
        %v2922 = vadd.f32 %v2738, %v2921
        %v2923 = vpop.f32.mrf.mxu0
        %v2924 = vadd.f32 %v2738, %v2923
        %2925 = vmatmul.bf16.gmra.mxu0 %v2678
        %v2926 = vpop.f32.mrf.mxu0
        %v2927 = vadd.f32 %v2738, %v2926
        %v2928 = vpop.f32.mrf.mxu0
        %v2929 = vadd.f32 %v2738, %v2928
        %2930 = vmatmul.bf16.gmra.mxu0 %v2680
        %v2931 = vpop.f32.mrf.mxu0
        %v2932 = vadd.f32 %v2738, %v2931
        %v2933 = vpop.f32.mrf.mxu0
        %v2934 = vadd.f32 %v2738, %v2933
        %2935 = vmatmul.bf16.gmra.mxu0 %v2682
        %v2936 = vpop.f32.mrf.mxu0
        %v2937 = vadd.f32 %v2738, %v2936
        %v2938 = vpop.f32.mrf.mxu0
        %v2939 = vadd.f32 %v2738, %v2938
        %2940 = vmatmul.bf16.gmra.mxu0 %v2684
        %v2941 = vpop.f32.mrf.mxu0
        %v2942 = vadd.f32 %v2738, %v2941
        %v2943 = vpop.f32.mrf.mxu0
        %v2944 = vadd.f32 %v2738, %v2943
        %2945 = vmatmul.bf16.gmra.mxu0 %v2686
        %v2946 = vpop.f32.mrf.mxu0
        %v2947 = vadd.f32 %v2738, %v2946
        %v2948 = vpop.f32.mrf.mxu0
        %v2949 = vadd.f32 %v2738, %v2948
        %2950 = vmatmul.bf16.gmra.mxu0 %v2688
        %v2951 = vpop.f32.mrf.mxu0
        %v2952 = vadd.f32 %v2738, %v2951
        %v2953 = vpop.f32.mrf.mxu0
        %v2954 = vadd.f32 %v2738, %v2953
        %2955 = vmatmul.bf16.gmra.mxu0 %v2690
        %v2956 = vpop.f32.mrf.mxu0
        %v2957 = vadd.f32 %v2738, %v2956
        %v2958 = vpop.f32.mrf.mxu0
        %v2959 = vadd.f32 %v2738, %v2958
        %2960 = vmatmul.bf16.gmra.mxu0 %v2692
        %v2961 = vpop.f32.mrf.mxu0
        %v2962 = vadd.f32 %v2738, %v2961
        %v2963 = vpop.f32.mrf.mxu0
        %v2964 = vadd.f32 %v2738, %v2963
        %2965 = vmatmul.bf16.gmra.mxu0 %v2694
        %v2966 = vpop.f32.mrf.mxu0
        %v2967 = vadd.f32 %v2738, %v2966
        %v2968 = vpop.f32.mrf.mxu0
        %v2969 = vadd.f32 %v2738, %v2968
        %2970 = vmatmul.bf16.gmra.mxu0 %v2696
        %v2971 = vpop.f32.mrf.mxu0
        %v2972 = vadd.f32 %v2738, %v2971
        %v2973 = vpop.f32.mrf.mxu0
        %v2974 = vadd.f32 %v2738, %v2973
        %2975 = vmatmul.bf16.gmra.mxu0 %v2698
        %v2976 = vpop.f32.mrf.mxu0
        %v2977 = vadd.f32 %v2738, %v2976
        %v2978 = vpop.f32.mrf.mxu0
        %v2979 = vadd.f32 %v2738, %v2978
        %2980 = vmatmul.bf16.gmra.mxu0 %v2700
        %v2981 = vpop.f32.mrf.mxu0
        %v2982 = vadd.f32 %v2738, %v2981
        %v2983 = vpop.f32.mrf.mxu0
        %v2984 = vadd.f32 %v2738, %v2983
        %2985 = vmatmul.bf16.gmra.mxu0 %v2702
        %v2986 = vpop.f32.mrf.mxu0
        %v2987 = vadd.f32 %v2738, %v2986
        %v2988 = vpop.f32.mrf.mxu0
        %v2989 = vadd.f32 %v2738, %v2988
        %2990 = vdwg.mxu0
        %2991 = vmatpush.bf16.msra.mxu0 %v2868
        %2992 = vmatpush.bf16.msra.mxu0 %v2866
        %2993 = vmatpush.bf16.msra.mxu0 %v2864
        %2994 = vmatpush.bf16.msra.mxu0 %v2862
        %2995 = vmatpush.bf16.msra.mxu0 %v2860
        %2996 = vmatpush.bf16.msra.mxu0 %v2858
        %2997 = vmatpush.bf16.msra.mxu0 %v2856
        %2998 = vmatpush.bf16.msra.mxu0 %v2854
        %2999 = vmatmul.bf16.gmra.mxu0 %v2673
        %v3000 = vpop.f32.mrf.mxu0
        %v3001 = vadd.f32 %v2912, %v3000
        %v3002 = vpop.f32.mrf.mxu0
        %v3003 = vadd.f32 %v2914, %v3002
        %3004 = vmatmul.bf16.gmra.mxu0 %v2675
        %v3005 = vpop.f32.mrf.mxu0
        %v3006 = vadd.f32 %v2917, %v3005
        %v3007 = vpop.f32.mrf.mxu0
        %v3008 = vadd.f32 %v2919, %v3007
        %3009 = vmatmul.bf16.gmra.mxu0 %v2677
        %v3010 = vpop.f32.mrf.mxu0
        %v3011 = vadd.f32 %v2922, %v3010
        %v3012 = vpop.f32.mrf.mxu0
        %v3013 = vadd.f32 %v2924, %v3012
        %3014 = vmatmul.bf16.gmra.mxu0 %v2679
        %v3015 = vpop.f32.mrf.mxu0
        %v3016 = vadd.f32 %v2927, %v3015
        %v3017 = vpop.f32.mrf.mxu0
        %v3018 = vadd.f32 %v2929, %v3017
        %3019 = vmatmul.bf16.gmra.mxu0 %v2681
        %v3020 = vpop.f32.mrf.mxu0
        %v3021 = vadd.f32 %v2932, %v3020
        %v3022 = vpop.f32.mrf.mxu0
        %v3023 = vadd.f32 %v2934, %v3022
        %3024 = vmatmul.bf16.gmra.mxu0 %v2683
        %v3025 = vpop.f32.mrf.mxu0
        %v3026 = vadd.f32 %v2937, %v3025
        %v3027 = vpop.f32.mrf.mxu0
        %v3028 = vadd.f32 %v2939, %v3027
        %3029 = vmatmul.bf16.gmra.mxu0 %v2685
        %v3030 = vpop.f32.mrf.mxu0
        %v3031 = vadd.f32 %v2942, %v3030
        %v3032 = vpop.f32.mrf.mxu0
        %v3033 = vadd.f32 %v2944, %v3032
        %3034 = vmatmul.bf16.gmra.mxu0 %v2687
        %v3035 = vpop.f32.mrf.mxu0
        %v3036 = vadd.f32 %v2947, %v3035
        %v3037 = vpop.f32.mrf.mxu0
        %v3038 = vadd.f32 %v2949, %v3037
        %3039 = vmatmul.bf16.gmra.mxu0 %v2689
        %v3040 = vpop.f32.mrf.mxu0
        %v3041 = vadd.f32 %v2952, %v3040
        %v3042 = vpop.f32.mrf.mxu0
        %v3043 = vadd.f32 %v2954, %v3042
        %3044 = vmatmul.bf16.gmra.mxu0 %v2691
        %v3045 = vpop.f32.mrf.mxu0
        %v3046 = vadd.f32 %v2957, %v3045
        %v3047 = vpop.f32.mrf.mxu0
        %v3048 = vadd.f32 %v2959, %v3047
        %3049 = vmatmul.bf16.gmra.mxu0 %v2693
        %v3050 = vpop.f32.mrf.mxu0
        %v3051 = vadd.f32 %v2962, %v3050
        %v3052 = vpop.f32.mrf.mxu0
        %v3053 = vadd.f32 %v2964, %v3052
        %3054 = vmatmul.bf16.gmra.mxu0 %v2695
        %v3055 = vpop.f32.mrf.mxu0
        %v3056 = vadd.f32 %v2967, %v3055
        %v3057 = vpop.f32.mrf.mxu0
        %v3058 = vadd.f32 %v2969, %v3057
        %3059 = vmatmul.bf16.gmra.mxu0 %v2697
        %v3060 = vpop.f32.mrf.mxu0
        %v3061 = vadd.f32 %v2972, %v3060
        %v3062 = vpop.f32.mrf.mxu0
        %v3063 = vadd.f32 %v2974, %v3062
        %3064 = vmatmul.bf16.gmra.mxu0 %v2699
        %v3065 = vpop.f32.mrf.mxu0
        %v3066 = vadd.f32 %v2977, %v3065
        %v3067 = vpop.f32.mrf.mxu0
        %v3068 = vadd.f32 %v2979, %v3067
        %3069 = vmatmul.bf16.gmra.mxu0 %v2701
        %v3070 = vpop.f32.mrf.mxu0
        %v3071 = vadd.f32 %v2982, %v3070
        %v3072 = vpop.f32.mrf.mxu0
        %v3073 = vadd.f32 %v2984, %v3072
        %3074 = vmatmul.bf16.gmra.mxu0 %v2703
        %v3075 = vpop.f32.mrf.mxu0
        %v3076 = vadd.f32 %v2987, %v3075
        %v3077 = vpop.f32.mrf.mxu0
        %v3078 = vadd.f32 %v2989, %v3077
        %3079 = vdwg.mxu0
        %3080 = vmatpush.bf16.msra.mxu0 %v2853
        %3081 = vmatpush.bf16.msra.mxu0 %v2851
        %3082 = vmatpush.bf16.msra.mxu0 %v2849
        %3083 = vmatpush.bf16.msra.mxu0 %v2847
        %3084 = vmatpush.bf16.msra.mxu0 %v2845
        %3085 = vmatpush.bf16.msra.mxu0 %v2843
        %3086 = vmatpush.bf16.msra.mxu0 %v2841
        %3087 = vmatpush.bf16.msra.mxu0 %v2839
        %3088 = vmatmul.bf16.gmra.mxu0 %v2672
        %v3089 = vpop.f32.mrf.mxu0
        %v3090 = vadd.f32 %v2739, %v3089
        %v3091 = vpop.f32.mrf.mxu0
        %v3092 = vadd.f32 %v2739, %v3091
        %3093 = vmatmul.bf16.gmra.mxu0 %v2674
        %v3094 = vpop.f32.mrf.mxu0
        %v3095 = vadd.f32 %v2739, %v3094
        %v3096 = vpop.f32.mrf.mxu0
        %v3097 = vadd.f32 %v2739, %v3096
        %3098 = vmatmul.bf16.gmra.mxu0 %v2676
        %v3099 = vpop.f32.mrf.mxu0
        %v3100 = vadd.f32 %v2739, %v3099
        %v3101 = vpop.f32.mrf.mxu0
        %v3102 = vadd.f32 %v2739, %v3101
        %3103 = vmatmul.bf16.gmra.mxu0 %v2678
        %v3104 = vpop.f32.mrf.mxu0
        %v3105 = vadd.f32 %v2739, %v3104
        %v3106 = vpop.f32.mrf.mxu0
        %v3107 = vadd.f32 %v2739, %v3106
        %3108 = vmatmul.bf16.gmra.mxu0 %v2680
        %v3109 = vpop.f32.mrf.mxu0
        %v3110 = vadd.f32 %v2739, %v3109
        %v3111 = vpop.f32.mrf.mxu0
        %v3112 = vadd.f32 %v2739, %v3111
        %3113 = vmatmul.bf16.gmra.mxu0 %v2682
        %v3114 = vpop.f32.mrf.mxu0
        %v3115 = vadd.f32 %v2739, %v3114
        %v3116 = vpop.f32.mrf.mxu0
        %v3117 = vadd.f32 %v2739, %v3116
        %3118 = vmatmul.bf16.gmra.mxu0 %v2684
        %v3119 = vpop.f32.mrf.mxu0
        %v3120 = vadd.f32 %v2739, %v3119
        %v3121 = vpop.f32.mrf.mxu0
        %v3122 = vadd.f32 %v2739, %v3121
        %3123 = vmatmul.bf16.gmra.mxu0 %v2686
        %v3124 = vpop.f32.mrf.mxu0
        %v3125 = vadd.f32 %v2739, %v3124
        %v3126 = vpop.f32.mrf.mxu0
        %v3127 = vadd.f32 %v2739, %v3126
        %3128 = vmatmul.bf16.gmra.mxu0 %v2688
        %v3129 = vpop.f32.mrf.mxu0
        %v3130 = vadd.f32 %v2739, %v3129
        %v3131 = vpop.f32.mrf.mxu0
        %v3132 = vadd.f32 %v2739, %v3131
        %3133 = vmatmul.bf16.gmra.mxu0 %v2690
        %v3134 = vpop.f32.mrf.mxu0
        %v3135 = vadd.f32 %v2739, %v3134
        %v3136 = vpop.f32.mrf.mxu0
        %v3137 = vadd.f32 %v2739, %v3136
        %3138 = vmatmul.bf16.gmra.mxu0 %v2692
        %v3139 = vpop.f32.mrf.mxu0
        %v3140 = vadd.f32 %v2739, %v3139
        %v3141 = vpop.f32.mrf.mxu0
        %v3142 = vadd.f32 %v2739, %v3141
        %3143 = vmatmul.bf16.gmra.mxu0 %v2694
        %v3144 = vpop.f32.mrf.mxu0
        %v3145 = vadd.f32 %v2739, %v3144
        %v3146 = vpop.f32.mrf.mxu0
        %v3147 = vadd.f32 %v2739, %v3146
        %3148 = vmatmul.bf16.gmra.mxu0 %v2696
        %v3149 = vpop.f32.mrf.mxu0
        %v3150 = vadd.f32 %v2739, %v3149
        %v3151 = vpop.f32.mrf.mxu0
        %v3152 = vadd.f32 %v2739, %v3151
        %3153 = vmatmul.bf16.gmra.mxu0 %v2698
        %v3154 = vpop.f32.mrf.mxu0
        %v3155 = vadd.f32 %v2739, %v3154
        %v3156 = vpop.f32.mrf.mxu0
        %v3157 = vadd.f32 %v2739, %v3156
        %3158 = vmatmul.bf16.gmra.mxu0 %v2700
        %v3159 = vpop.f32.mrf.mxu0
        %v3160 = vadd.f32 %v2739, %v3159
        %v3161 = vpop.f32.mrf.mxu0
        %v3162 = vadd.f32 %v2739, %v3161
        %3163 = vmatmul.bf16.gmra.mxu0 %v2702
        %v3164 = vpop.f32.mrf.mxu0
        %v3165 = vadd.f32 %v2739, %v3164
        %v3166 = vpop.f32.mrf.mxu0
        %v3167 = vadd.f32 %v2739, %v3166
        %3168 = vdwg.mxu0
        %3169 = vmatpush.bf16.msra.mxu0 %v2869
        %3170 = vmatpush.bf16.msra.mxu0 %v2867
        %3171 = vmatpush.bf16.msra.mxu0 %v2865
        %3172 = vmatpush.bf16.msra.mxu0 %v2863
        %3173 = vmatpush.bf16.msra.mxu0 %v2861
        %3174 = vmatpush.bf16.msra.mxu0 %v2859
        %3175 = vmatpush.bf16.msra.mxu0 %v2857
        %3176 = vmatpush.bf16.msra.mxu0 %v2855
        %3177 = vmatmul.bf16.gmra.mxu0 %v2673
        %v3178 = vpop.f32.mrf.mxu0
        %v3179 = vadd.f32 %v3090, %v3178
        %v3180 = vpop.f32.mrf.mxu0
        %v3181 = vadd.f32 %v3092, %v3180
        %3182 = vmatmul.bf16.gmra.mxu0 %v2675
        %v3183 = vpop.f32.mrf.mxu0
        %v3184 = vadd.f32 %v3095, %v3183
        %v3185 = vpop.f32.mrf.mxu0
        %v3186 = vadd.f32 %v3097, %v3185
        %3187 = vmatmul.bf16.gmra.mxu0 %v2677
        %v3188 = vpop.f32.mrf.mxu0
        %v3189 = vadd.f32 %v3100, %v3188
        %v3190 = vpop.f32.mrf.mxu0
        %v3191 = vadd.f32 %v3102, %v3190
        %3192 = vmatmul.bf16.gmra.mxu0 %v2679
        %v3193 = vpop.f32.mrf.mxu0
        %v3194 = vadd.f32 %v3105, %v3193
        %v3195 = vpop.f32.mrf.mxu0
        %v3196 = vadd.f32 %v3107, %v3195
        %3197 = vmatmul.bf16.gmra.mxu0 %v2681
        %v3198 = vpop.f32.mrf.mxu0
        %v3199 = vadd.f32 %v3110, %v3198
        %v3200 = vpop.f32.mrf.mxu0
        %v3201 = vadd.f32 %v3112, %v3200
        %3202 = vmatmul.bf16.gmra.mxu0 %v2683
        %v3203 = vpop.f32.mrf.mxu0
        %v3204 = vadd.f32 %v3115, %v3203
        %v3205 = vpop.f32.mrf.mxu0
        %v3206 = vadd.f32 %v3117, %v3205
        %3207 = vmatmul.bf16.gmra.mxu0 %v2685
        %v3208 = vpop.f32.mrf.mxu0
        %v3209 = vadd.f32 %v3120, %v3208
        %v3210 = vpop.f32.mrf.mxu0
        %v3211 = vadd.f32 %v3122, %v3210
        %3212 = vmatmul.bf16.gmra.mxu0 %v2687
        %v3213 = vpop.f32.mrf.mxu0
        %v3214 = vadd.f32 %v3125, %v3213
        %v3215 = vpop.f32.mrf.mxu0
        %v3216 = vadd.f32 %v3127, %v3215
        %3217 = vmatmul.bf16.gmra.mxu0 %v2689
        %v3218 = vpop.f32.mrf.mxu0
        %v3219 = vadd.f32 %v3130, %v3218
        %v3220 = vpop.f32.mrf.mxu0
        %v3221 = vadd.f32 %v3132, %v3220
        %3222 = vmatmul.bf16.gmra.mxu0 %v2691
        %v3223 = vpop.f32.mrf.mxu0
        %v3224 = vadd.f32 %v3135, %v3223
        %v3225 = vpop.f32.mrf.mxu0
        %v3226 = vadd.f32 %v3137, %v3225
        %3227 = vmatmul.bf16.gmra.mxu0 %v2693
        %v3228 = vpop.f32.mrf.mxu0
        %v3229 = vadd.f32 %v3140, %v3228
        %v3230 = vpop.f32.mrf.mxu0
        %v3231 = vadd.f32 %v3142, %v3230
        %3232 = vmatmul.bf16.gmra.mxu0 %v2695
        %v3233 = vpop.f32.mrf.mxu0
        %v3234 = vadd.f32 %v3145, %v3233
        %v3235 = vpop.f32.mrf.mxu0
        %v3236 = vadd.f32 %v3147, %v3235
        %3237 = vmatmul.bf16.gmra.mxu0 %v2697
        %v3238 = vpop.f32.mrf.mxu0
        %v3239 = vadd.f32 %v3150, %v3238
        %v3240 = vpop.f32.mrf.mxu0
        %v3241 = vadd.f32 %v3152, %v3240
        %3242 = vmatmul.bf16.gmra.mxu0 %v2699
        %v3243 = vpop.f32.mrf.mxu0
        %v3244 = vadd.f32 %v3155, %v3243
        %v3245 = vpop.f32.mrf.mxu0
        %v3246 = vadd.f32 %v3157, %v3245
        %3247 = vmatmul.bf16.gmra.mxu0 %v2701
        %v3248 = vpop.f32.mrf.mxu0
        %v3249 = vadd.f32 %v3160, %v3248
        %v3250 = vpop.f32.mrf.mxu0
        %v3251 = vadd.f32 %v3162, %v3250
        %3252 = vmatmul.bf16.gmra.mxu0 %v2703
        %v3253 = vpop.f32.mrf.mxu0
        %v3254 = vadd.f32 %v3165, %v3253
        %v3255 = vpop.f32.mrf.mxu0
        %v3256 = vadd.f32 %v3167, %v3255
        %3257 = vdwg.mxu0
        %v3258 = vmax.f32 %v3001, 0.0
        %v3259 = vmax.f32 %v3179, 0.0
        %v3260 = vmax.f32 %v3003, 0.0
        %v3261 = vmax.f32 %v3181, 0.0
        %v3262 = vmax.f32 %v3006, 0.0
        %v3263 = vmax.f32 %v3184, 0.0
        %v3264 = vmax.f32 %v3008, 0.0
        %v3265 = vmax.f32 %v3186, 0.0
        %v3266 = vmax.f32 %v3011, 0.0
        %v3267 = vmax.f32 %v3189, 0.0
        %v3268 = vmax.f32 %v3013, 0.0
        %v3269 = vmax.f32 %v3191, 0.0
        %v3270 = vmax.f32 %v3016, 0.0
        %v3271 = vmax.f32 %v3194, 0.0
        %v3272 = vmax.f32 %v3018, 0.0
        %v3273 = vmax.f32 %v3196, 0.0
        %v3274 = vmax.f32 %v3021, 0.0
        %v3275 = vmax.f32 %v3199, 0.0
        %v3276 = vmax.f32 %v3023, 0.0
        %v3277 = vmax.f32 %v3201, 0.0
        %v3278 = vmax.f32 %v3026, 0.0
        %v3279 = vmax.f32 %v3204, 0.0
        %v3280 = vmax.f32 %v3028, 0.0
        %v3281 = vmax.f32 %v3206, 0.0
        %v3282 = vmax.f32 %v3031, 0.0
        %v3283 = vmax.f32 %v3209, 0.0
        %v3284 = vmax.f32 %v3033, 0.0
        %v3285 = vmax.f32 %v3211, 0.0
        %v3286 = vmax.f32 %v3036, 0.0
        %v3287 = vmax.f32 %v3214, 0.0
        %v3288 = vmax.f32 %v3038, 0.0
        %v3289 = vmax.f32 %v3216, 0.0
        %v3290 = vmax.f32 %v3041, 0.0
        %v3291 = vmax.f32 %v3219, 0.0
        %v3292 = vmax.f32 %v3043, 0.0
        %v3293 = vmax.f32 %v3221, 0.0
        %v3294 = vmax.f32 %v3046, 0.0
        %v3295 = vmax.f32 %v3224, 0.0
        %v3296 = vmax.f32 %v3048, 0.0
        %v3297 = vmax.f32 %v3226, 0.0
        %v3298 = vmax.f32 %v3051, 0.0
        %v3299 = vmax.f32 %v3229, 0.0
        %v3300 = vmax.f32 %v3053, 0.0
        %v3301 = vmax.f32 %v3231, 0.0
        %v3302 = vmax.f32 %v3056, 0.0
        %v3303 = vmax.f32 %v3234, 0.0
        %v3304 = vmax.f32 %v3058, 0.0
        %v3305 = vmax.f32 %v3236, 0.0
        %v3306 = vmax.f32 %v3061, 0.0
        %v3307 = vmax.f32 %v3239, 0.0
        %v3308 = vmax.f32 %v3063, 0.0
        %v3309 = vmax.f32 %v3241, 0.0
        %v3310 = vmax.f32 %v3066, 0.0
        %v3311 = vmax.f32 %v3244, 0.0
        %v3312 = vmax.f32 %v3068, 0.0
        %v3313 = vmax.f32 %v3246, 0.0
        %v3314 = vmax.f32 %v3071, 0.0
        %v3315 = vmax.f32 %v3249, 0.0
        %v3316 = vmax.f32 %v3073, 0.0
        %v3317 = vmax.f32 %v3251, 0.0
        %v3318 = vmax.f32 %v3076, 0.0
        %v3319 = vmax.f32 %v3254, 0.0
        %v3320 = vmax.f32 %v3078, 0.0
        %v3321 = vmax.f32 %v3256, 0.0
        %v3322 = vpack.c.bf16 %v3260, %v3258
        %v3323 = vpack.c.bf16 %v3261, %v3259
        %v3324 = vpack.c.bf16 %v3264, %v3262
        %v3325 = vpack.c.bf16 %v3265, %v3263
        %v3326 = vpack.c.bf16 %v3268, %v3266
        %v3327 = vpack.c.bf16 %v3269, %v3267
        %v3328 = vpack.c.bf16 %v3272, %v3270
        %v3329 = vpack.c.bf16 %v3273, %v3271
        %v3330 = vpack.c.bf16 %v3276, %v3274
        %v3331 = vpack.c.bf16 %v3277, %v3275
        %v3332 = vpack.c.bf16 %v3280, %v3278
        %v3333 = vpack.c.bf16 %v3281, %v3279
        %v3334 = vpack.c.bf16 %v3284, %v3282
        %v3335 = vpack.c.bf16 %v3285, %v3283
        %v3336 = vpack.c.bf16 %v3288, %v3286
        %v3337 = vpack.c.bf16 %v3289, %v3287
        %v3338 = vpack.c.bf16 %v3292, %v3290
        %v3339 = vpack.c.bf16 %v3293, %v3291
        %v3340 = vpack.c.bf16 %v3296, %v3294
        %v3341 = vpack.c.bf16 %v3297, %v3295
        %v3342 = vpack.c.bf16 %v3300, %v3298
        %v3343 = vpack.c.bf16 %v3301, %v3299
        %v3344 = vpack.c.bf16 %v3304, %v3302
        %v3345 = vpack.c.bf16 %v3305, %v3303
        %v3346 = vpack.c.bf16 %v3308, %v3306
        %v3347 = vpack.c.bf16 %v3309, %v3307
        %v3348 = vpack.c.bf16 %v3312, %v3310
        %v3349 = vpack.c.bf16 %v3313, %v3311
        %v3350 = vpack.c.bf16 %v3316, %v3314
        %v3351 = vpack.c.bf16 %v3317, %v3315
        %v3352 = vpack.c.bf16 %v3320, %v3318
        %v3353 = vpack.c.bf16 %v3321, %v3319
        %v3354 = vld [vmem:[#allocation8] sm:$0xf]
        %v3355 = vld [vmem:[#allocation8 + $0x4] sm:$0xf]
        %v3356 = vld [vmem:[#allocation8 + $0x8] sm:$0xf]
        %v3357 = vld [vmem:[#allocation8 + $0xc] sm:$0xf]
        %v3358 = vld [vmem:[#allocation8 + $0x10] sm:$0xf]
        %v3359 = vld [vmem:[#allocation8 + $0x14] sm:$0xf]
        %v3360 = vld [vmem:[#allocation8 + $0x18] sm:$0xf]
        %v3361 = vld [vmem:[#allocation8 + $0x1c] sm:$0xf]
        %v3362 = vld [vmem:[#allocation8 + $0x20] sm:$0xf]
        %v3363 = vld [vmem:[#allocation8 + $0x24] sm:$0xf]
        %v3364 = vld [vmem:[#allocation8 + $0x28] sm:$0xf]
        %v3365 = vld [vmem:[#allocation8 + $0x2c] sm:$0xf]
        %v3366 = vld [vmem:[#allocation8 + $0x30] sm:$0xf]
        %v3367 = vld [vmem:[#allocation8 + $0x34] sm:$0xf]
        %v3368 = vld [vmem:[#allocation8 + $0x38] sm:$0xf]
        %v3369 = vld [vmem:[#allocation8 + $0x3c] sm:$0xf]
        %v3370 = vld [vmem:[#allocation8 + $0x40] sm:$0xf]
        %v3371 = vld [vmem:[#allocation8 + $0x44] sm:$0xf]
        %v3372 = vld [vmem:[#allocation8 + $0x48] sm:$0xf]
        %v3373 = vld [vmem:[#allocation8 + $0x4c] sm:$0xf]
        %v3374 = vld [vmem:[#allocation8 + $0x50] sm:$0xf]
        %v3375 = vld [vmem:[#allocation8 + $0x54] sm:$0xf]
        %v3376 = vld [vmem:[#allocation8 + $0x58] sm:$0xf]
        %v3377 = vld [vmem:[#allocation8 + $0x5c] sm:$0xf]
        %v3378 = vld [vmem:[#allocation8 + $0x60] sm:$0xf]
        %v3379 = vld [vmem:[#allocation8 + $0x64] sm:$0xf]
        %v3380 = vld [vmem:[#allocation8 + $0x68] sm:$0xf]
        %v3381 = vld [vmem:[#allocation8 + $0x6c] sm:$0xf]
        %v3382 = vld [vmem:[#allocation8 + $0x70] sm:$0xf]
        %v3383 = vld [vmem:[#allocation8 + $0x74] sm:$0xf]
        %v3384 = vld [vmem:[#allocation8 + $0x78] sm:$0xf]
        %v3385 = vld [vmem:[#allocation8 + $0x7c] sm:$0xf]
        %v3386 = vld [vmem:[#allocation10] sm:$0xf]
        %v3387 = vld [vmem:[#allocation10 + $0x4] sm:$0xf]
        %v3388 = vld [vmem:[#allocation10 + $0x8] sm:$0xf]
        %v3389 = vld [vmem:[#allocation10 + $0xc] sm:$0xf]
        %v3390 = vld [vmem:[#allocation10 + $0x10] sm:$0xf]
        %v3391 = vld [vmem:[#allocation10 + $0x14] sm:$0xf]
        %v3392 = vld [vmem:[#allocation10 + $0x18] sm:$0xf]
        %v3393 = vld [vmem:[#allocation10 + $0x1c] sm:$0xf]
        %v3394 = vld [vmem:[#allocation10 + $0x20] sm:$0xf]
        %v3395 = vld [vmem:[#allocation10 + $0x24] sm:$0xf]
        %v3396 = vld [vmem:[#allocation10 + $0x28] sm:$0xf]
        %v3397 = vld [vmem:[#allocation10 + $0x2c] sm:$0xf]
        %v3398 = vld [vmem:[#allocation10 + $0x30] sm:$0xf]
        %v3399 = vld [vmem:[#allocation10 + $0x34] sm:$0xf]
        %v3400 = vld [vmem:[#allocation10 + $0x38] sm:$0xf]
        %v3401 = vld [vmem:[#allocation10 + $0x3c] sm:$0xf]
        %v3402 = vld [vmem:[#allocation10 + $0x40] sm:$0xf]
        %v3403 = vld [vmem:[#allocation10 + $0x44] sm:$0xf]
        %v3404 = vld [vmem:[#allocation10 + $0x48] sm:$0xf]
        %v3405 = vld [vmem:[#allocation10 + $0x4c] sm:$0xf]
        %v3406 = vld [vmem:[#allocation10 + $0x50] sm:$0xf]
        %v3407 = vld [vmem:[#allocation10 + $0x54] sm:$0xf]
        %v3408 = vld [vmem:[#allocation10 + $0x58] sm:$0xf]
        %v3409 = vld [vmem:[#allocation10 + $0x5c] sm:$0xf]
        %v3410 = vld [vmem:[#allocation10 + $0x60] sm:$0xf]
        %v3411 = vld [vmem:[#allocation10 + $0x64] sm:$0xf]
        %v3412 = vld [vmem:[#allocation10 + $0x68] sm:$0xf]
        %v3413 = vld [vmem:[#allocation10 + $0x6c] sm:$0xf]
        %v3414 = vld [vmem:[#allocation10 + $0x70] sm:$0xf]
        %v3415 = vld [vmem:[#allocation10 + $0x74] sm:$0xf]
        %v3416 = vld [vmem:[#allocation10 + $0x78] sm:$0xf]
        %v3417 = vld [vmem:[#allocation10 + $0x7c] sm:$0xf]
        %v3450 = vunpack.c.l.b16 %v3386
        %v3451 = vunpack.c.l.b16 %v3387
        %v3452 = vunpack.c.l.b16 %v3388
        %v3453 = vunpack.c.l.b16 %v3389
        %v3454 = vunpack.c.l.b16 %v3390
        %v3455 = vunpack.c.l.b16 %v3391
        %v3456 = vunpack.c.l.b16 %v3392
        %v3457 = vunpack.c.l.b16 %v3393
        %v3458 = vunpack.c.l.b16 %v3394
        %v3459 = vunpack.c.l.b16 %v3395
        %v3460 = vunpack.c.l.b16 %v3396
        %v3461 = vunpack.c.l.b16 %v3397
        %v3462 = vunpack.c.l.b16 %v3398
        %v3463 = vunpack.c.l.b16 %v3399
        %v3464 = vunpack.c.l.b16 %v3400
        %v3465 = vunpack.c.l.b16 %v3401
        %v3466 = vunpack.c.l.b16 %v3402
        %v3467 = vunpack.c.l.b16 %v3403
        %v3468 = vunpack.c.l.b16 %v3404
        %v3469 = vunpack.c.l.b16 %v3405
        %v3470 = vunpack.c.l.b16 %v3406
        %v3471 = vunpack.c.l.b16 %v3407
        %v3472 = vunpack.c.l.b16 %v3408
        %v3473 = vunpack.c.l.b16 %v3409
        %v3474 = vunpack.c.l.b16 %v3410
        %v3475 = vunpack.c.l.b16 %v3411
        %v3476 = vunpack.c.l.b16 %v3412
        %v3477 = vunpack.c.l.b16 %v3413
        %v3478 = vunpack.c.l.b16 %v3414
        %v3479 = vunpack.c.l.b16 %v3415
        %v3480 = vunpack.c.l.b16 %v3416
        %v3481 = vunpack.c.l.b16 %v3417
        %v3482 = vpack.c.b16 %v3451, %v3450
        %v3483 = vpack.c.b16 %v3453, %v3452
        %v3484 = vpack.c.b16 %v3455, %v3454
        %v3485 = vpack.c.b16 %v3457, %v3456
        %v3486 = vpack.c.b16 %v3459, %v3458
        %v3487 = vpack.c.b16 %v3461, %v3460
        %v3488 = vpack.c.b16 %v3463, %v3462
        %v3489 = vpack.c.b16 %v3465, %v3464
        %v3490 = vpack.c.b16 %v3467, %v3466
        %v3491 = vpack.c.b16 %v3469, %v3468
        %v3492 = vpack.c.b16 %v3471, %v3470
        %v3493 = vpack.c.b16 %v3473, %v3472
        %v3494 = vpack.c.b16 %v3475, %v3474
        %v3495 = vpack.c.b16 %v3477, %v3476
        %v3496 = vpack.c.b16 %v3479, %v3478
        %v3497 = vpack.c.b16 %v3481, %v3480
        %3514 = vmatpush.bf16.msra.mxu0 %v3489
        %3515 = vmatpush.bf16.msra.mxu0 %v3488
        %3516 = vmatpush.bf16.msra.mxu0 %v3487
        %3517 = vmatpush.bf16.msra.mxu0 %v3486
        %3518 = vmatpush.bf16.msra.mxu0 %v3485
        %3519 = vmatpush.bf16.msra.mxu0 %v3484
        %3520 = vmatpush.bf16.msra.mxu0 %v3483
        %3521 = vmatpush.bf16.msra.mxu0 %v3482
        %3522 = vmatmul.bf16.gmra.mxu0 %v3322
        %v3523 = vpop.f32.mrf.mxu0
        %v3524 = vadd.f32 0.0, %v3523
        %v3525 = vpop.f32.mrf.mxu0
        %v3526 = vadd.f32 0.0, %v3525
        %3527 = vmatmul.bf16.gmra.mxu0 %v3324
        %v3528 = vpop.f32.mrf.mxu0
        %v3529 = vadd.f32 0.0, %v3528
        %v3530 = vpop.f32.mrf.mxu0
        %v3531 = vadd.f32 0.0, %v3530
        %3532 = vmatmul.bf16.gmra.mxu0 %v3326
        %v3533 = vpop.f32.mrf.mxu0
        %v3534 = vadd.f32 0.0, %v3533
        %v3535 = vpop.f32.mrf.mxu0
        %v3536 = vadd.f32 0.0, %v3535
        %3537 = vmatmul.bf16.gmra.mxu0 %v3328
        %v3538 = vpop.f32.mrf.mxu0
        %v3539 = vadd.f32 0.0, %v3538
        %v3540 = vpop.f32.mrf.mxu0
        %v3541 = vadd.f32 0.0, %v3540
        %3542 = vmatmul.bf16.gmra.mxu0 %v3330
        %v3543 = vpop.f32.mrf.mxu0
        %v3544 = vadd.f32 0.0, %v3543
        %v3545 = vpop.f32.mrf.mxu0
        %v3546 = vadd.f32 0.0, %v3545
        %3547 = vmatmul.bf16.gmra.mxu0 %v3332
        %v3548 = vpop.f32.mrf.mxu0
        %v3549 = vadd.f32 0.0, %v3548
        %v3550 = vpop.f32.mrf.mxu0
        %v3551 = vadd.f32 0.0, %v3550
        %3552 = vmatmul.bf16.gmra.mxu0 %v3334
        %v3553 = vpop.f32.mrf.mxu0
        %v3554 = vadd.f32 0.0, %v3553
        %v3555 = vpop.f32.mrf.mxu0
        %v3556 = vadd.f32 0.0, %v3555
        %3557 = vmatmul.bf16.gmra.mxu0 %v3336
        %v3558 = vpop.f32.mrf.mxu0
        %v3559 = vadd.f32 0.0, %v3558
        %v3560 = vpop.f32.mrf.mxu0
        %v3561 = vadd.f32 0.0, %v3560
        %3562 = vmatmul.bf16.gmra.mxu0 %v3338
        %v3563 = vpop.f32.mrf.mxu0
        %v3564 = vadd.f32 0.0, %v3563
        %v3565 = vpop.f32.mrf.mxu0
        %v3566 = vadd.f32 0.0, %v3565
        %3567 = vmatmul.bf16.gmra.mxu0 %v3340
        %v3568 = vpop.f32.mrf.mxu0
        %v3569 = vadd.f32 0.0, %v3568
        %v3570 = vpop.f32.mrf.mxu0
        %v3571 = vadd.f32 0.0, %v3570
        %3572 = vmatmul.bf16.gmra.mxu0 %v3342
        %v3573 = vpop.f32.mrf.mxu0
        %v3574 = vadd.f32 0.0, %v3573
        %v3575 = vpop.f32.mrf.mxu0
        %v3576 = vadd.f32 0.0, %v3575
        %3577 = vmatmul.bf16.gmra.mxu0 %v3344
        %v3578 = vpop.f32.mrf.mxu0
        %v3579 = vadd.f32 0.0, %v3578
        %v3580 = vpop.f32.mrf.mxu0
        %v3581 = vadd.f32 0.0, %v3580
        %3582 = vmatmul.bf16.gmra.mxu0 %v3346
        %v3583 = vpop.f32.mrf.mxu0
        %v3584 = vadd.f32 0.0, %v3583
        %v3585 = vpop.f32.mrf.mxu0
        %v3586 = vadd.f32 0.0, %v3585
        %3587 = vmatmul.bf16.gmra.mxu0 %v3348
        %v3588 = vpop.f32.mrf.mxu0
        %v3589 = vadd.f32 0.0, %v3588
        %v3590 = vpop.f32.mrf.mxu0
        %v3591 = vadd.f32 0.0, %v3590
        %3592 = vmatmul.bf16.gmra.mxu0 %v3350
        %v3593 = vpop.f32.mrf.mxu0
        %v3594 = vadd.f32 0.0, %v3593
        %v3595 = vpop.f32.mrf.mxu0
        %v3596 = vadd.f32 0.0, %v3595
        %3597 = vmatmul.bf16.gmra.mxu0 %v3352
        %v3598 = vpop.f32.mrf.mxu0
        %v3599 = vadd.f32 0.0, %v3598
        %v3600 = vpop.f32.mrf.mxu0
        %v3601 = vadd.f32 0.0, %v3600
        %3602 = vdwg.mxu0
        %3603 = vmatpush.bf16.msra.mxu0 %v3497
        %3604 = vmatpush.bf16.msra.mxu0 %v3496
        %3605 = vmatpush.bf16.msra.mxu0 %v3495
        %3606 = vmatpush.bf16.msra.mxu0 %v3494
        %3607 = vmatpush.bf16.msra.mxu0 %v3493
        %3608 = vmatpush.bf16.msra.mxu0 %v3492
        %3609 = vmatpush.bf16.msra.mxu0 %v3491
        %3610 = vmatpush.bf16.msra.mxu0 %v3490
        %3611 = vmatmul.bf16.gmra.mxu0 %v3323
        %v3612 = vpop.f32.mrf.mxu0
        %v3613 = vadd.f32 %v3524, %v3612
        %v3614 = vpop.f32.mrf.mxu0
        %v3615 = vadd.f32 %v3526, %v3614
        %3616 = vmatmul.bf16.gmra.mxu0 %v3325
        %v3617 = vpop.f32.mrf.mxu0
        %v3618 = vadd.f32 %v3529, %v3617
        %v3619 = vpop.f32.mrf.mxu0
        %v3620 = vadd.f32 %v3531, %v3619
        %3621 = vmatmul.bf16.gmra.mxu0 %v3327
        %v3622 = vpop.f32.mrf.mxu0
        %v3623 = vadd.f32 %v3534, %v3622
        %v3624 = vpop.f32.mrf.mxu0
        %v3625 = vadd.f32 %v3536, %v3624
        %3626 = vmatmul.bf16.gmra.mxu0 %v3329
        %v3627 = vpop.f32.mrf.mxu0
        %v3628 = vadd.f32 %v3539, %v3627
        %v3629 = vpop.f32.mrf.mxu0
        %v3630 = vadd.f32 %v3541, %v3629
        %3631 = vmatmul.bf16.gmra.mxu0 %v3331
        %v3632 = vpop.f32.mrf.mxu0
        %v3633 = vadd.f32 %v3544, %v3632
        %v3634 = vpop.f32.mrf.mxu0
        %v3635 = vadd.f32 %v3546, %v3634
        %3636 = vmatmul.bf16.gmra.mxu0 %v3333
        %v3637 = vpop.f32.mrf.mxu0
        %v3638 = vadd.f32 %v3549, %v3637
        %v3639 = vpop.f32.mrf.mxu0
        %v3640 = vadd.f32 %v3551, %v3639
        %3641 = vmatmul.bf16.gmra.mxu0 %v3335
        %v3642 = vpop.f32.mrf.mxu0
        %v3643 = vadd.f32 %v3554, %v3642
        %v3644 = vpop.f32.mrf.mxu0
        %v3645 = vadd.f32 %v3556, %v3644
        %3646 = vmatmul.bf16.gmra.mxu0 %v3337
        %v3647 = vpop.f32.mrf.mxu0
        %v3648 = vadd.f32 %v3559, %v3647
        %v3649 = vpop.f32.mrf.mxu0
        %v3650 = vadd.f32 %v3561, %v3649
        %3651 = vmatmul.bf16.gmra.mxu0 %v3339
        %v3652 = vpop.f32.mrf.mxu0
        %v3653 = vadd.f32 %v3564, %v3652
        %v3654 = vpop.f32.mrf.mxu0
        %v3655 = vadd.f32 %v3566, %v3654
        %3656 = vmatmul.bf16.gmra.mxu0 %v3341
        %v3657 = vpop.f32.mrf.mxu0
        %v3658 = vadd.f32 %v3569, %v3657
        %v3659 = vpop.f32.mrf.mxu0
        %v3660 = vadd.f32 %v3571, %v3659
        %3661 = vmatmul.bf16.gmra.mxu0 %v3343
        %v3662 = vpop.f32.mrf.mxu0
        %v3663 = vadd.f32 %v3574, %v3662
        %v3664 = vpop.f32.mrf.mxu0
        %v3665 = vadd.f32 %v3576, %v3664
        %3666 = vmatmul.bf16.gmra.mxu0 %v3345
        %v3667 = vpop.f32.mrf.mxu0
        %v3668 = vadd.f32 %v3579, %v3667
        %v3669 = vpop.f32.mrf.mxu0
        %v3670 = vadd.f32 %v3581, %v3669
        %3671 = vmatmul.bf16.gmra.mxu0 %v3347
        %v3672 = vpop.f32.mrf.mxu0
        %v3673 = vadd.f32 %v3584, %v3672
        %v3674 = vpop.f32.mrf.mxu0
        %v3675 = vadd.f32 %v3586, %v3674
        %3676 = vmatmul.bf16.gmra.mxu0 %v3349
        %v3677 = vpop.f32.mrf.mxu0
        %v3678 = vadd.f32 %v3589, %v3677
        %v3679 = vpop.f32.mrf.mxu0
        %v3680 = vadd.f32 %v3591, %v3679
        %3681 = vmatmul.bf16.gmra.mxu0 %v3351
        %v3682 = vpop.f32.mrf.mxu0
        %v3683 = vadd.f32 %v3594, %v3682
        %v3684 = vpop.f32.mrf.mxu0
        %v3685 = vadd.f32 %v3596, %v3684
        %3686 = vmatmul.bf16.gmra.mxu0 %v3353
        %v3687 = vpop.f32.mrf.mxu0
        %v3688 = vadd.f32 %v3599, %v3687
        %v3689 = vpop.f32.mrf.mxu0
        %v3690 = vadd.f32 %v3601, %v3689
        %3691 = vdwg.mxu0
        %v3724 = vunpack.c.l.b16 %v3354
        %v3725 = vunpack.c.l.b16 %v3355
        %v3726 = vunpack.c.l.b16 %v3356
        %v3727 = vunpack.c.l.b16 %v3357
        %v3728 = vunpack.c.l.b16 %v3358
        %v3729 = vunpack.c.l.b16 %v3359
        %v3730 = vunpack.c.l.b16 %v3360
        %v3731 = vunpack.c.l.b16 %v3361
        %v3732 = vunpack.c.l.b16 %v3362
        %v3733 = vunpack.c.l.b16 %v3363
        %v3734 = vunpack.c.l.b16 %v3364
        %v3735 = vunpack.c.l.b16 %v3365
        %v3736 = vunpack.c.l.b16 %v3366
        %v3737 = vunpack.c.l.b16 %v3367
        %v3738 = vunpack.c.l.b16 %v3368
        %v3739 = vunpack.c.l.b16 %v3369
        %v3740 = vunpack.c.l.b16 %v3370
        %v3741 = vunpack.c.l.b16 %v3371
        %v3742 = vunpack.c.l.b16 %v3372
        %v3743 = vunpack.c.l.b16 %v3373
        %v3744 = vunpack.c.l.b16 %v3374
        %v3745 = vunpack.c.l.b16 %v3375
        %v3746 = vunpack.c.l.b16 %v3376
        %v3747 = vunpack.c.l.b16 %v3377
        %v3748 = vunpack.c.l.b16 %v3378
        %v3749 = vunpack.c.l.b16 %v3379
        %v3750 = vunpack.c.l.b16 %v3380
        %v3751 = vunpack.c.l.b16 %v3381
        %v3752 = vunpack.c.l.b16 %v3382
        %v3753 = vunpack.c.l.b16 %v3383
        %v3754 = vunpack.c.l.b16 %v3384
        %v3755 = vunpack.c.l.b16 %v3385
        %v3756 = vpack.c.b16 %v3725, %v3724
        %v3757 = vpack.c.b16 %v3727, %v3726
        %v3758 = vpack.c.b16 %v3729, %v3728
        %v3759 = vpack.c.b16 %v3731, %v3730
        %v3760 = vpack.c.b16 %v3733, %v3732
        %v3761 = vpack.c.b16 %v3735, %v3734
        %v3762 = vpack.c.b16 %v3737, %v3736
        %v3763 = vpack.c.b16 %v3739, %v3738
        %v3764 = vpack.c.b16 %v3741, %v3740
        %v3765 = vpack.c.b16 %v3743, %v3742
        %v3766 = vpack.c.b16 %v3745, %v3744
        %v3767 = vpack.c.b16 %v3747, %v3746
        %v3768 = vpack.c.b16 %v3749, %v3748
        %v3769 = vpack.c.b16 %v3751, %v3750
        %v3770 = vpack.c.b16 %v3753, %v3752
        %v3771 = vpack.c.b16 %v3755, %v3754
        %3788 = vmatpush.bf16.msra.mxu0 %v3763
        %3789 = vmatpush.bf16.msra.mxu0 %v3762
        %3790 = vmatpush.bf16.msra.mxu0 %v3761
        %3791 = vmatpush.bf16.msra.mxu0 %v3760
        %3792 = vmatpush.bf16.msra.mxu0 %v3759
        %3793 = vmatpush.bf16.msra.mxu0 %v3758
        %3794 = vmatpush.bf16.msra.mxu0 %v3757
        %3795 = vmatpush.bf16.msra.mxu0 %v3756
        %3796 = vmatmul.bf16.gmra.mxu0 %v2232
        %v3797 = vpop.f32.mrf.mxu0
        %v3798 = vadd.f32 %v3613, %v3797
        %v3799 = vpop.f32.mrf.mxu0
        %v3800 = vadd.f32 %v3615, %v3799
        %3801 = vmatmul.bf16.gmra.mxu0 %v2234
        %v3802 = vpop.f32.mrf.mxu0
        %v3803 = vadd.f32 %v3618, %v3802
        %v3804 = vpop.f32.mrf.mxu0
        %v3805 = vadd.f32 %v3620, %v3804
        %3806 = vmatmul.bf16.gmra.mxu0 %v2236
        %v3807 = vpop.f32.mrf.mxu0
        %v3808 = vadd.f32 %v3623, %v3807
        %v3809 = vpop.f32.mrf.mxu0
        %v3810 = vadd.f32 %v3625, %v3809
        %3811 = vmatmul.bf16.gmra.mxu0 %v2238
        %v3812 = vpop.f32.mrf.mxu0
        %v3813 = vadd.f32 %v3628, %v3812
        %v3814 = vpop.f32.mrf.mxu0
        %v3815 = vadd.f32 %v3630, %v3814
        %3816 = vmatmul.bf16.gmra.mxu0 %v2240
        %v3817 = vpop.f32.mrf.mxu0
        %v3818 = vadd.f32 %v3633, %v3817
        %v3819 = vpop.f32.mrf.mxu0
        %v3820 = vadd.f32 %v3635, %v3819
        %3821 = vmatmul.bf16.gmra.mxu0 %v2242
        %v3822 = vpop.f32.mrf.mxu0
        %v3823 = vadd.f32 %v3638, %v3822
        %v3824 = vpop.f32.mrf.mxu0
        %v3825 = vadd.f32 %v3640, %v3824
        %3826 = vmatmul.bf16.gmra.mxu0 %v2244
        %v3827 = vpop.f32.mrf.mxu0
        %v3828 = vadd.f32 %v3643, %v3827
        %v3829 = vpop.f32.mrf.mxu0
        %v3830 = vadd.f32 %v3645, %v3829
        %3831 = vmatmul.bf16.gmra.mxu0 %v2246
        %v3832 = vpop.f32.mrf.mxu0
        %v3833 = vadd.f32 %v3648, %v3832
        %v3834 = vpop.f32.mrf.mxu0
        %v3835 = vadd.f32 %v3650, %v3834
        %3836 = vmatmul.bf16.gmra.mxu0 %v2248
        %v3837 = vpop.f32.mrf.mxu0
        %v3838 = vadd.f32 %v3653, %v3837
        %v3839 = vpop.f32.mrf.mxu0
        %v3840 = vadd.f32 %v3655, %v3839
        %3841 = vmatmul.bf16.gmra.mxu0 %v2250
        %v3842 = vpop.f32.mrf.mxu0
        %v3843 = vadd.f32 %v3658, %v3842
        %v3844 = vpop.f32.mrf.mxu0
        %v3845 = vadd.f32 %v3660, %v3844
        %3846 = vmatmul.bf16.gmra.mxu0 %v2252
        %v3847 = vpop.f32.mrf.mxu0
        %v3848 = vadd.f32 %v3663, %v3847
        %v3849 = vpop.f32.mrf.mxu0
        %v3850 = vadd.f32 %v3665, %v3849
        %3851 = vmatmul.bf16.gmra.mxu0 %v2254
        %v3852 = vpop.f32.mrf.mxu0
        %v3853 = vadd.f32 %v3668, %v3852
        %v3854 = vpop.f32.mrf.mxu0
        %v3855 = vadd.f32 %v3670, %v3854
        %3856 = vmatmul.bf16.gmra.mxu0 %v2256
        %v3857 = vpop.f32.mrf.mxu0
        %v3858 = vadd.f32 %v3673, %v3857
        %v3859 = vpop.f32.mrf.mxu0
        %v3860 = vadd.f32 %v3675, %v3859
        %3861 = vmatmul.bf16.gmra.mxu0 %v2258
        %v3862 = vpop.f32.mrf.mxu0
        %v3863 = vadd.f32 %v3678, %v3862
        %v3864 = vpop.f32.mrf.mxu0
        %v3865 = vadd.f32 %v3680, %v3864
        %3866 = vmatmul.bf16.gmra.mxu0 %v2260
        %v3867 = vpop.f32.mrf.mxu0
        %v3868 = vadd.f32 %v3683, %v3867
        %v3869 = vpop.f32.mrf.mxu0
        %v3870 = vadd.f32 %v3685, %v3869
        %3871 = vmatmul.bf16.gmra.mxu0 %v2262
        %v3872 = vpop.f32.mrf.mxu0
        %v3873 = vadd.f32 %v3688, %v3872
        %v3874 = vpop.f32.mrf.mxu0
        %v3875 = vadd.f32 %v3690, %v3874
        %3876 = vdwg.mxu0
        %3877 = vmatpush.bf16.msra.mxu0 %v3771
        %3878 = vmatpush.bf16.msra.mxu0 %v3770
        %3879 = vmatpush.bf16.msra.mxu0 %v3769
        %3880 = vmatpush.bf16.msra.mxu0 %v3768
        %3881 = vmatpush.bf16.msra.mxu0 %v3767
        %3882 = vmatpush.bf16.msra.mxu0 %v3766
        %3883 = vmatpush.bf16.msra.mxu0 %v3765
        %3884 = vmatpush.bf16.msra.mxu0 %v3764
        %3885 = vmatmul.bf16.gmra.mxu0 %v2233
        %v3886 = vpop.f32.mrf.mxu0
        %v3887 = vadd.f32 %v3798, %v3886
        %v3888 = vpop.f32.mrf.mxu0
        %v3889 = vadd.f32 %v3800, %v3888
        %3890 = vmatmul.bf16.gmra.mxu0 %v2235
        %v3891 = vpop.f32.mrf.mxu0
        %v3892 = vadd.f32 %v3803, %v3891
        %v3893 = vpop.f32.mrf.mxu0
        %v3894 = vadd.f32 %v3805, %v3893
        %3895 = vmatmul.bf16.gmra.mxu0 %v2237
        %v3896 = vpop.f32.mrf.mxu0
        %v3897 = vadd.f32 %v3808, %v3896
        %v3898 = vpop.f32.mrf.mxu0
        %v3899 = vadd.f32 %v3810, %v3898
        %3900 = vmatmul.bf16.gmra.mxu0 %v2239
        %v3901 = vpop.f32.mrf.mxu0
        %v3902 = vadd.f32 %v3813, %v3901
        %v3903 = vpop.f32.mrf.mxu0
        %v3904 = vadd.f32 %v3815, %v3903
        %3905 = vmatmul.bf16.gmra.mxu0 %v2241
        %v3906 = vpop.f32.mrf.mxu0
        %v3907 = vadd.f32 %v3818, %v3906
        %v3908 = vpop.f32.mrf.mxu0
        %v3909 = vadd.f32 %v3820, %v3908
        %3910 = vmatmul.bf16.gmra.mxu0 %v2243
        %v3911 = vpop.f32.mrf.mxu0
        %v3912 = vadd.f32 %v3823, %v3911
        %v3913 = vpop.f32.mrf.mxu0
        %v3914 = vadd.f32 %v3825, %v3913
        %3915 = vmatmul.bf16.gmra.mxu0 %v2245
        %v3916 = vpop.f32.mrf.mxu0
        %v3917 = vadd.f32 %v3828, %v3916
        %v3918 = vpop.f32.mrf.mxu0
        %v3919 = vadd.f32 %v3830, %v3918
        %3920 = vmatmul.bf16.gmra.mxu0 %v2247
        %v3921 = vpop.f32.mrf.mxu0
        %v3922 = vadd.f32 %v3833, %v3921
        %v3923 = vpop.f32.mrf.mxu0
        %v3924 = vadd.f32 %v3835, %v3923
        %3925 = vmatmul.bf16.gmra.mxu0 %v2249
        %v3926 = vpop.f32.mrf.mxu0
        %v3927 = vadd.f32 %v3838, %v3926
        %v3928 = vpop.f32.mrf.mxu0
        %v3929 = vadd.f32 %v3840, %v3928
        %3930 = vmatmul.bf16.gmra.mxu0 %v2251
        %v3931 = vpop.f32.mrf.mxu0
        %v3932 = vadd.f32 %v3843, %v3931
        %v3933 = vpop.f32.mrf.mxu0
        %v3934 = vadd.f32 %v3845, %v3933
        %3935 = vmatmul.bf16.gmra.mxu0 %v2253
        %v3936 = vpop.f32.mrf.mxu0
        %v3937 = vadd.f32 %v3848, %v3936
        %v3938 = vpop.f32.mrf.mxu0
        %v3939 = vadd.f32 %v3850, %v3938
        %3940 = vmatmul.bf16.gmra.mxu0 %v2255
        %v3941 = vpop.f32.mrf.mxu0
        %v3942 = vadd.f32 %v3853, %v3941
        %v3943 = vpop.f32.mrf.mxu0
        %v3944 = vadd.f32 %v3855, %v3943
        %3945 = vmatmul.bf16.gmra.mxu0 %v2257
        %v3946 = vpop.f32.mrf.mxu0
        %v3947 = vadd.f32 %v3858, %v3946
        %v3948 = vpop.f32.mrf.mxu0
        %v3949 = vadd.f32 %v3860, %v3948
        %3950 = vmatmul.bf16.gmra.mxu0 %v2259
        %v3951 = vpop.f32.mrf.mxu0
        %v3952 = vadd.f32 %v3863, %v3951
        %v3953 = vpop.f32.mrf.mxu0
        %v3954 = vadd.f32 %v3865, %v3953
        %3955 = vmatmul.bf16.gmra.mxu0 %v2261
        %v3956 = vpop.f32.mrf.mxu0
        %v3957 = vadd.f32 %v3868, %v3956
        %v3958 = vpop.f32.mrf.mxu0
        %v3959 = vadd.f32 %v3870, %v3958
        %3960 = vmatmul.bf16.gmra.mxu0 %v2263
        %v3961 = vpop.f32.mrf.mxu0
        %v3962 = vadd.f32 %v3873, %v3961
        %v3963 = vpop.f32.mrf.mxu0
        %v3964 = vadd.f32 %v3875, %v3963
        %3965 = vdwg.mxu0
        %v3966 = vld [vmem:[%s13] sm:$0x1]
        %v3968 = vperm.slane %v3966, 0
        %v3970 = vadd.f32 %v3887, %v3968
        %v3971 = vadd.f32 %v3889, %v3968
        %v3972 = vadd.f32 %v3892, %v3968
        %v3973 = vadd.f32 %v3894, %v3968
        %v3974 = vadd.f32 %v3897, %v3968
        %v3975 = vadd.f32 %v3899, %v3968
        %v3976 = vadd.f32 %v3902, %v3968
        %v3977 = vadd.f32 %v3904, %v3968
        %v3978 = vadd.f32 %v3907, %v3968
        %v3979 = vadd.f32 %v3909, %v3968
        %v3980 = vadd.f32 %v3912, %v3968
        %v3981 = vadd.f32 %v3914, %v3968
        %v3982 = vadd.f32 %v3917, %v3968
        %v3983 = vadd.f32 %v3919, %v3968
        %v3984 = vadd.f32 %v3922, %v3968
        %v3985 = vadd.f32 %v3924, %v3968
        %v3986 = vadd.f32 %v3927, %v3968
        %v3987 = vadd.f32 %v3929, %v3968
        %v3988 = vadd.f32 %v3932, %v3968
        %v3989 = vadd.f32 %v3934, %v3968
        %v3990 = vadd.f32 %v3937, %v3968
        %v3991 = vadd.f32 %v3939, %v3968
        %v3992 = vadd.f32 %v3942, %v3968
        %v3993 = vadd.f32 %v3944, %v3968
        %v3994 = vadd.f32 %v3947, %v3968
        %v3995 = vadd.f32 %v3949, %v3968
        %v3996 = vadd.f32 %v3952, %v3968
        %v3997 = vadd.f32 %v3954, %v3968
        %v3998 = vadd.f32 %v3957, %v3968
        %v3999 = vadd.f32 %v3959, %v3968
        %v4000 = vadd.f32 %v3962, %v3968
        %v4001 = vadd.f32 %v3964, %v3968
        %v4002 = vmax.f32 %v3970, 0.0
        %v4003 = vmax.f32 %v3971, 0.0
        %v4004 = vmax.f32 %v3972, 0.0
        %v4005 = vmax.f32 %v3973, 0.0
        %v4006 = vmax.f32 %v3974, 0.0
        %v4007 = vmax.f32 %v3975, 0.0
        %v4008 = vmax.f32 %v3976, 0.0
        %v4009 = vmax.f32 %v3977, 0.0
        %v4010 = vmax.f32 %v3978, 0.0
        %v4011 = vmax.f32 %v3979, 0.0
        %v4012 = vmax.f32 %v3980, 0.0
        %v4013 = vmax.f32 %v3981, 0.0
        %v4014 = vmax.f32 %v3982, 0.0
        %v4015 = vmax.f32 %v3983, 0.0
        %v4016 = vmax.f32 %v3984, 0.0
        %v4017 = vmax.f32 %v3985, 0.0
        %v4018 = vmax.f32 %v3986, 0.0
        %v4019 = vmax.f32 %v3987, 0.0
        %v4020 = vmax.f32 %v3988, 0.0
        %v4021 = vmax.f32 %v3989, 0.0
        %v4022 = vmax.f32 %v3990, 0.0
        %v4023 = vmax.f32 %v3991, 0.0
        %v4024 = vmax.f32 %v3992, 0.0
        %v4025 = vmax.f32 %v3993, 0.0
        %v4026 = vmax.f32 %v3994, 0.0
        %v4027 = vmax.f32 %v3995, 0.0
        %v4028 = vmax.f32 %v3996, 0.0
        %v4029 = vmax.f32 %v3997, 0.0
        %v4030 = vmax.f32 %v3998, 0.0
        %v4031 = vmax.f32 %v3999, 0.0
        %v4032 = vmax.f32 %v4000, 0.0
        %v4033 = vmax.f32 %v4001, 0.0
        %v4034 = vpack.c.bf16 %v4003, %v4002
        %v4035 = vpack.c.bf16 %v4005, %v4004
        %v4036 = vpack.c.bf16 %v4007, %v4006
        %v4037 = vpack.c.bf16 %v4009, %v4008
        %v4038 = vpack.c.bf16 %v4011, %v4010
        %v4039 = vpack.c.bf16 %v4013, %v4012
        %v4040 = vpack.c.bf16 %v4015, %v4014
        %v4041 = vpack.c.bf16 %v4017, %v4016
        %v4042 = vpack.c.bf16 %v4019, %v4018
        %v4043 = vpack.c.bf16 %v4021, %v4020
        %v4044 = vpack.c.bf16 %v4023, %v4022
        %v4045 = vpack.c.bf16 %v4025, %v4024
        %v4046 = vpack.c.bf16 %v4027, %v4026
        %v4047 = vpack.c.bf16 %v4029, %v4028
        %v4048 = vpack.c.bf16 %v4031, %v4030
        %v4049 = vpack.c.bf16 %v4033, %v4032
        %v4050 = vld [vmem:[#allocation11] sm:$0xf]
        %v4051 = vld [vmem:[#allocation11 + $0x4] sm:$0xf]
        %v4052 = vld [vmem:[#allocation11 + $0x8] sm:$0xf]
        %v4053 = vld [vmem:[#allocation11 + $0xc] sm:$0xf]
        %v4054 = vld [vmem:[#allocation11 + $0x10] sm:$0xf]
        %v4055 = vld [vmem:[#allocation11 + $0x14] sm:$0xf]
        %v4056 = vld [vmem:[#allocation11 + $0x18] sm:$0xf]
        %v4057 = vld [vmem:[#allocation11 + $0x1c] sm:$0xf]
        %v4058 = vld [vmem:[#allocation11 + $0x20] sm:$0xf]
        %v4059 = vld [vmem:[#allocation11 + $0x24] sm:$0xf]
        %v4060 = vld [vmem:[#allocation11 + $0x28] sm:$0xf]
        %v4061 = vld [vmem:[#allocation11 + $0x2c] sm:$0xf]
        %v4062 = vld [vmem:[#allocation11 + $0x30] sm:$0xf]
        %v4063 = vld [vmem:[#allocation11 + $0x34] sm:$0xf]
        %v4064 = vld [vmem:[#allocation11 + $0x38] sm:$0xf]
        %v4065 = vld [vmem:[#allocation11 + $0x3c] sm:$0xf]
        %v4066 = vld [vmem:[%s15] sm:$0x1]
        %v4068 = vperm.slane %v4066, 0
        %v4086 = vunpack.c.l.b16 %v4050
        %v4087 = vunpack.c.l.b16 %v4051
        %v4088 = vunpack.c.l.b16 %v4052
        %v4089 = vunpack.c.l.b16 %v4053
        %v4090 = vunpack.c.l.b16 %v4054
        %v4091 = vunpack.c.l.b16 %v4055
        %v4092 = vunpack.c.l.b16 %v4056
        %v4093 = vunpack.c.l.b16 %v4057
        %v4094 = vunpack.c.l.b16 %v4058
        %v4095 = vunpack.c.l.b16 %v4059
        %v4096 = vunpack.c.l.b16 %v4060
        %v4097 = vunpack.c.l.b16 %v4061
        %v4098 = vunpack.c.l.b16 %v4062
        %v4099 = vunpack.c.l.b16 %v4063
        %v4100 = vunpack.c.l.b16 %v4064
        %v4101 = vunpack.c.l.b16 %v4065
        %v4102 = vpack.c.b16 %v4087, %v4086
        %v4103 = vpack.c.b16 %v4089, %v4088
        %v4104 = vpack.c.b16 %v4091, %v4090
        %v4105 = vpack.c.b16 %v4093, %v4092
        %v4106 = vpack.c.b16 %v4095, %v4094
        %v4107 = vpack.c.b16 %v4097, %v4096
        %v4108 = vpack.c.b16 %v4099, %v4098
        %v4109 = vpack.c.b16 %v4101, %v4100
        %4118 = vmatpush.bf16.msra.mxu0 %v4109
        %4119 = vmatpush.bf16.msra.mxu0 %v4108
        %4120 = vmatpush.bf16.msra.mxu0 %v4107
        %4121 = vmatpush.bf16.msra.mxu0 %v4106
        %4122 = vmatpush.bf16.msra.mxu0 %v4105
        %4123 = vmatpush.bf16.msra.mxu0 %v4104
        %4124 = vmatpush.bf16.msra.mxu0 %v4103
        %4125 = vmatpush.bf16.msra.mxu0 %v4102
        %4126 = vmatmul.bf16.gmra.mxu0 %v4034
        %v4127 = vpop.f32.mrf.mxu0
        %v4128 = vadd.f32 %v4068, %v4127
        %v4129 = vpop.f32.mrf.mxu0
        %v4130 = vadd.f32 %v4068, %v4129
        %4131 = vmatmul.bf16.gmra.mxu0 %v4035
        %v4132 = vpop.f32.mrf.mxu0
        %v4133 = vadd.f32 %v4068, %v4132
        %v4134 = vpop.f32.mrf.mxu0
        %v4135 = vadd.f32 %v4068, %v4134
        %4136 = vmatmul.bf16.gmra.mxu0 %v4036
        %v4137 = vpop.f32.mrf.mxu0
        %v4138 = vadd.f32 %v4068, %v4137
        %v4139 = vpop.f32.mrf.mxu0
        %v4140 = vadd.f32 %v4068, %v4139
        %4141 = vmatmul.bf16.gmra.mxu0 %v4037
        %v4142 = vpop.f32.mrf.mxu0
        %v4143 = vadd.f32 %v4068, %v4142
        %v4144 = vpop.f32.mrf.mxu0
        %v4145 = vadd.f32 %v4068, %v4144
        %4146 = vmatmul.bf16.gmra.mxu0 %v4038
        %v4147 = vpop.f32.mrf.mxu0
        %v4148 = vadd.f32 %v4068, %v4147
        %v4149 = vpop.f32.mrf.mxu0
        %v4150 = vadd.f32 %v4068, %v4149
        %4151 = vmatmul.bf16.gmra.mxu0 %v4039
        %v4152 = vpop.f32.mrf.mxu0
        %v4153 = vadd.f32 %v4068, %v4152
        %v4154 = vpop.f32.mrf.mxu0
        %v4155 = vadd.f32 %v4068, %v4154
        %4156 = vmatmul.bf16.gmra.mxu0 %v4040
        %v4157 = vpop.f32.mrf.mxu0
        %v4158 = vadd.f32 %v4068, %v4157
        %v4159 = vpop.f32.mrf.mxu0
        %v4160 = vadd.f32 %v4068, %v4159
        %4161 = vmatmul.bf16.gmra.mxu0 %v4041
        %v4162 = vpop.f32.mrf.mxu0
        %v4163 = vadd.f32 %v4068, %v4162
        %v4164 = vpop.f32.mrf.mxu0
        %v4165 = vadd.f32 %v4068, %v4164
        %4166 = vmatmul.bf16.gmra.mxu0 %v4042
        %v4167 = vpop.f32.mrf.mxu0
        %v4168 = vadd.f32 %v4068, %v4167
        %v4169 = vpop.f32.mrf.mxu0
        %v4170 = vadd.f32 %v4068, %v4169
        %4171 = vmatmul.bf16.gmra.mxu0 %v4043
        %v4172 = vpop.f32.mrf.mxu0
        %v4173 = vadd.f32 %v4068, %v4172
        %v4174 = vpop.f32.mrf.mxu0
        %v4175 = vadd.f32 %v4068, %v4174
        %4176 = vmatmul.bf16.gmra.mxu0 %v4044
        %v4177 = vpop.f32.mrf.mxu0
        %v4178 = vadd.f32 %v4068, %v4177
        %v4179 = vpop.f32.mrf.mxu0
        %v4180 = vadd.f32 %v4068, %v4179
        %4181 = vmatmul.bf16.gmra.mxu0 %v4045
        %v4182 = vpop.f32.mrf.mxu0
        %v4183 = vadd.f32 %v4068, %v4182
        %v4184 = vpop.f32.mrf.mxu0
        %v4185 = vadd.f32 %v4068, %v4184
        %4186 = vmatmul.bf16.gmra.mxu0 %v4046
        %v4187 = vpop.f32.mrf.mxu0
        %v4188 = vadd.f32 %v4068, %v4187
        %v4189 = vpop.f32.mrf.mxu0
        %v4190 = vadd.f32 %v4068, %v4189
        %4191 = vmatmul.bf16.gmra.mxu0 %v4047
        %v4192 = vpop.f32.mrf.mxu0
        %v4193 = vadd.f32 %v4068, %v4192
        %v4194 = vpop.f32.mrf.mxu0
        %v4195 = vadd.f32 %v4068, %v4194
        %4196 = vmatmul.bf16.gmra.mxu0 %v4048
        %v4197 = vpop.f32.mrf.mxu0
        %v4198 = vadd.f32 %v4068, %v4197
        %v4199 = vpop.f32.mrf.mxu0
        %v4200 = vadd.f32 %v4068, %v4199
        %4201 = vmatmul.bf16.gmra.mxu0 %v4049
        %v4202 = vpop.f32.mrf.mxu0
        %v4203 = vadd.f32 %v4068, %v4202
        %v4204 = vpop.f32.mrf.mxu0
        %v4205 = vadd.f32 %v4068, %v4204
        %4206 = vdwg.mxu0
        %v4207 = vmax.f32 %v4128, 0.0
        %v4208 = vmax.f32 %v4130, 0.0
        %v4209 = vmax.f32 %v4133, 0.0
        %v4210 = vmax.f32 %v4135, 0.0
        %v4211 = vmax.f32 %v4138, 0.0
        %v4212 = vmax.f32 %v4140, 0.0
        %v4213 = vmax.f32 %v4143, 0.0
        %v4214 = vmax.f32 %v4145, 0.0
        %v4215 = vmax.f32 %v4148, 0.0
        %v4216 = vmax.f32 %v4150, 0.0
        %v4217 = vmax.f32 %v4153, 0.0
        %v4218 = vmax.f32 %v4155, 0.0
        %v4219 = vmax.f32 %v4158, 0.0
        %v4220 = vmax.f32 %v4160, 0.0
        %v4221 = vmax.f32 %v4163, 0.0
        %v4222 = vmax.f32 %v4165, 0.0
        %v4223 = vmax.f32 %v4168, 0.0
        %v4224 = vmax.f32 %v4170, 0.0
        %v4225 = vmax.f32 %v4173, 0.0
        %v4226 = vmax.f32 %v4175, 0.0
        %v4227 = vmax.f32 %v4178, 0.0
        %v4228 = vmax.f32 %v4180, 0.0
        %v4229 = vmax.f32 %v4183, 0.0
        %v4230 = vmax.f32 %v4185, 0.0
        %v4231 = vmax.f32 %v4188, 0.0
        %v4232 = vmax.f32 %v4190, 0.0
        %v4233 = vmax.f32 %v4193, 0.0
        %v4234 = vmax.f32 %v4195, 0.0
        %v4235 = vmax.f32 %v4198, 0.0
        %v4236 = vmax.f32 %v4200, 0.0
        %v4237 = vmax.f32 %v4203, 0.0
        %v4238 = vmax.f32 %v4205, 0.0
        %v4239 = vpack.c.bf16 %v4208, %v4207
        %v4240 = vpack.c.bf16 %v4210, %v4209
        %v4241 = vpack.c.bf16 %v4212, %v4211
        %v4242 = vpack.c.bf16 %v4214, %v4213
        %v4243 = vpack.c.bf16 %v4216, %v4215
        %v4244 = vpack.c.bf16 %v4218, %v4217
        %v4245 = vpack.c.bf16 %v4220, %v4219
        %v4246 = vpack.c.bf16 %v4222, %v4221
        %v4247 = vpack.c.bf16 %v4224, %v4223
        %v4248 = vpack.c.bf16 %v4226, %v4225
        %v4249 = vpack.c.bf16 %v4228, %v4227
        %v4250 = vpack.c.bf16 %v4230, %v4229
        %v4251 = vpack.c.bf16 %v4232, %v4231
        %v4252 = vpack.c.bf16 %v4234, %v4233
        %v4253 = vpack.c.bf16 %v4236, %v4235
        %v4254 = vpack.c.bf16 %v4238, %v4237
        %v4255 = vld [vmem:[%s16] sm:$0xf]
        %4256 = vmatpush.bf16.xpose.msra.mxu0 %v4246
        %4257 = vmatpush.bf16.xpose.msra.mxu0 %v4245
        %4258 = vmatpush.bf16.xpose.msra.mxu0 %v4244
        %4259 = vmatpush.bf16.xpose.msra.mxu0 %v4243
        %4260 = vmatpush.bf16.xpose.msra.mxu0 %v4242
        %4261 = vmatpush.bf16.xpose.msra.mxu0 %v4241
        %4262 = vmatpush.bf16.xpose.msra.mxu0 %v4240
        %4263 = vmatpush.bf16.xpose.msra.mxu0 %v4239
        %4264 = vmatmul.bf16.gmra.mxu0 %v4255
        %v4265 = vpop.f32.mrf.mxu0
        %v4266 = vadd.f32 0.0, %v4265
        %v4267 = vpop.f32.mrf.mxu0
        %4268 = vdwg.mxu0
        %4269 = vmatpush.bf16.xpose.msra.mxu0 %v4254
        %4270 = vmatpush.bf16.xpose.msra.mxu0 %v4253
        %4271 = vmatpush.bf16.xpose.msra.mxu0 %v4252
        %4272 = vmatpush.bf16.xpose.msra.mxu0 %v4251
        %4273 = vmatpush.bf16.xpose.msra.mxu0 %v4250
        %4274 = vmatpush.bf16.xpose.msra.mxu0 %v4249
        %4275 = vmatpush.bf16.xpose.msra.mxu0 %v4248
        %4276 = vmatpush.bf16.xpose.msra.mxu0 %v4247
        %4277 = vmatmul.bf16.gmra.mxu0 %v4255
        %v4278 = vpop.f32.mrf.mxu0
        %v4279 = vadd.f32 0.0, %v4278
        %v4280 = vpop.f32.mrf.mxu0
        %4281 = vdwg.mxu0
        %v4282 = vld [vmem:[#allocation2] sm:$0x1]
        %4284 = vset.pattern.permute.xlu0 0
        %4285 = vperm.xlu0 %4284, %v4282
        %v4286 = vpop.permute.xlu0 %4285
        %v4288 = vperm.slane %v4286, 0
        %v4289 = vadd.f32 %v4266, %v4288
        %v4290 = vadd.f32 %v4279, %v4288
        %v4293 = vrot.slane %v4290, 7
        %vm4294 = vcmask 1040384
        %v4295 = vsel %vm4294, %v4289, %v4293
        %v4297 = vlaneseq
        %vm4298 = vcmp.ge.s32.totalorder %v4297, 0
        %vm4299 = vcmp.lt.s32.totalorder %v4297, 256
        %vm4300 = vmand %vm4298, %vm4299
        %4301 = vst.msk [vmem:[%s697] sm:$0x3] %vm4300, %v4295
        %s4302 = smul.u32 2, %s35
        %p4303 = scmp.lt.s32.totalorder %s4302, 3
        %s4304 = scalar_select %p4303, %s4302, 3
        %s4305 = scalar_lea.vmem %s18, %s4304
        // Predicated region
        $region117: #{model_isp_all.1} parent=91 // pred_check
          %p4306 = pneg %p436
        $region118: #{model_isp_all.1} parent=91 // pred_check_branch
          %4308 = sbr.rel (%p4306) target = $region120
        $region119: #{model_isp_all.1} parent=91 // pred_region
          %s4309 = smul.u32 2, %s35
        $region120: #{model_isp_all.1} parent=91 // pred_fallthru
          _
      $region92: #{model_isp_all.1} parent=5 // pred_fallthru
        _
      %p4310 = scmp.le.s32.totalorder 2, %s30
      // Predicated region
      $region121: #{model_isp_all.1} parent=5 // pred_check
        %p4311 = pneg %p4310
      $region122: #{model_isp_all.1} parent=5 // pred_check_branch
        %4313 = sbr.rel (%p4311) target = $region124
      $region123: #{model_isp_all.1} parent=5 // pred_region
        %s4314 = ssub.s32 %s30, 2
        // Predicated region
        $region125: #{model_isp_all.1} parent=123 // pred_check
          %p4315 = pneg %p442
        $region126: #{model_isp_all.1} parent=123 // pred_check_branch
          %4317 = sbr.rel (%p4315) target = $region128
        $region127: #{model_isp_all.1} parent=123 // pred_region
          %s4318 = smul.u32 2, %s36
          %p4319 = scmp.lt.s32.totalorder %s4318, 3
          %s4320 = scalar_select %p4319, %s4318, 3
          %s4321 = scalar_lea.vmem %s18, %s4320
        $region128: #{model_isp_all.1} parent=123 // pred_fallthru
          _
      $region124: #{model_isp_all.1} parent=5 // pred_fallthru
        _
    $region6: #{model_isp_all.1} parent=1 // loop_footer
      %s34 = sadd.s32 1, %s30
    $region7: #{model_isp_all.1} parent=1 // loop_footer_branch
      %29 = sbr.rel target = $region3
    $region8: #{model_isp_all.1} parent=1 // loop_exit
      _
    %4322 = vsyncpa [#allocation4], 1
    %s4323 = scalar_lea.sflag [#allocation4], 1
    %4324 = vsyncpa %s4323, 1
    %4325 = vsyncpa [#allocation6], 1
    %4326 = vsyncpa [#allocation9], 1
    %4327 = vsyncpa [#allocation12], 1

</llo_original>
